<compile_context>
chip_gen: v5e
topology: v5e:2x2
jax: 0.10.0
libtpu: 0.0.40
codegen_flags: <defaults>
</compile_context>

<pallas_src>
import functools

import numpy as np
import jax
import jax.numpy as jnp
from jax import lax
from jax.experimental import pallas as pl
from jax.experimental.pallas import tpu as pltpu

C = 128        # channel dim padded 64 -> 128 (lane-dense)
CH = 64        # real channel count of the model
NBLK = 4       # number of depthwise-separable blocks
CHUNK = 8      # buffer-rows per matmul/store strip (strip M = CHUNK * Wp rows)


# ---------------------------------------------------------------------------
# Fused forward kernel
# ---------------------------------------------------------------------------
def _build_fused_forward(B, H, W, Cin):
    k, s, pad = 10, 2, 2
    Ho = (H + 2 * pad - k) // s + 1
    Wo = (W + 2 * pad - k) // s + 1
    K = Cin * k * k
    Kp = ((K + 127) // 128) * 128

    # valid activation size per stage: stage 0 = conv1 out, stages 1..4 = block outputs
    HWs = [(Ho + 2 * t, Wo + 2 * t) for t in range(NBLK + 1)]
    W4 = HWs[NBLK][1]
    Wp = ((W4 + 2 + 7) // 8) * 8        # shared, sublane-aligned row width

    # Buffer layout invariant for stage t (flattened to ((H_t+2)*Wp, C)):
    #   buffer row 0 and row H_t+1 are all-zero; within rows 1..H_t the valid data sits
    #   in columns [1, 1+W_t) and every other column is exactly zero.  That buffer IS
    #   the zero-padded input of the next depthwise conv, and the zero filler columns
    #   keep every row store full-width and aligned.

    def kernel(patches_ref, w1_ref, dww_ref, dwb_ref, pww_ref,
               fcw_ref, fcb_ref, ringbias_ref, intmask_ref,
               out_ref, *scratch):
        a_bufs = scratch[:NBLK + 1]         # per-stage activation buffers
        d2d = scratch[NBLK + 1]             # flattened pointwise-matmul operand
        f32 = jnp.float32
        zrow = jnp.zeros((Wp, C), f32)

        # ---- conv1 (k=10, s=2, p=2) + ReLU : strip-wise MXU matmuls over padded patches
        H0 = HWs[0][0]
        a0 = a_bufs[0]
        w1 = w1_ref[...]
        for r0 in range(0, H0, CHUNK):
            r1 = min(r0 + CHUNK, H0)
            m0, m1 = r0 * Wp, r1 * Wp
            yc = jnp.dot(patches_ref[0, m0:m1, :], w1, preferred_element_type=f32)
            # ring-masked bias: b1 inside cols [1, 1+Wo), 0 outside; padded patch rows
            # are exact zeros, so relu(0 + 0) = 0 keeps the ring/filler columns zero.
            yc = jnp.maximum(yc + ringbias_ref[0, 0:m1 - m0, :], 0.0)
            a0[m0 + Wp:m1 + Wp, :] = yc
        a0[0:Wp, :] = zrow
        a0[(H0 + 1) * Wp:(H0 + 2) * Wp, :] = zrow

        # ---- 4 x (depthwise 3x3 -> pointwise 1x1 (padding=1) + ReLU), VMEM-resident
        for blk in range(NBLK):
            Hs, Ws = HWs[blk]
            R = Hs + 2                      # rows of the (zero-padded) pointwise input
            a_in = a_bufs[blk]
            a_out = a_bufs[blk + 1]

            wdw = dww_ref[blk]              # (9, C): row = 3*p + q  (p vertical, q horizontal)
            taps = [jnp.broadcast_to(wdw[t], (Wp, C)) for t in range(9)]   # hoisted broadcasts
            bdw_b = jnp.broadcast_to(dwb_ref[blk], (Wp, C))
            imask_b = jnp.broadcast_to(intmask_ref[blk], (Wp, C))          # cols [2, 2+Ws)

            # zero boundary rows of the pointwise operand (become the 1x1-pad ring rows)
            d2d[0:Wp, :] = zrow
            d2d[(R - 1) * Wp:R * Wp, :] = zrow

            # depthwise 3x3 fused with the flatten: one aligned (Wp, C) store per row
            def dw_row(r, carry):
                off0 = pl.multiple_of((r - 1) * Wp, 8)
                off1 = pl.multiple_of(r * Wp, 8)
                off2 = pl.multiple_of((r + 1) * Wp, 8)
                top = a_in[pl.ds(off0, Wp), :]
                mid = a_in[pl.ds(off1, Wp), :]
                bot = a_in[pl.ds(off2, Wp), :]
                # combine vertical taps first (free leading-axis offsets), then shift
                q0 = top * taps[0] + mid * taps[3] + bot * taps[6]   # horizontal tap q=0
                q1 = top * taps[1] + mid * taps[4] + bot * taps[7]   # horizontal tap q=1
                q2 = top * taps[2] + mid * taps[5] + bot * taps[8]   # horizontal tap q=2
                row = bdw_b + pltpu.roll(q0, 2, 0) + pltpu.roll(q1, 1, 0) + q2
                row = row * imask_b          # exact zeros outside the depthwise interior
                d2d[pl.ds(off1, Wp), :] = row
                return carry

            lax.fori_loop(1, Hs + 1, dw_row, 0)

            # pointwise 1x1 + ring-masked bias + ReLU, strip-wise; single store pass
            wpw = pww_ref[blk]
            for r0 in range(0, R, CHUNK):
                r1 = min(r0 + CHUNK, R)
                m0, m1 = r0 * Wp, r1 * Wp
                yc = jnp.dot(d2d[m0:m1, :], wpw, preferred_element_type=f32)
                yc = jnp.maximum(yc + ringbias_ref[blk + 1, 0:m1 - m0, :], 0.0)
                a_out[m0 + Wp:m1 + Wp, :] = yc
            a_out[0:Wp, :] = zrow
            a_out[(R + 1) * Wp:(R + 2) * Wp, :] = zrow

        # ---- adaptive_avg_pool2d((1,1)) + fc  (zero ring/filler contribute 0 to the sum)
        H4, W4v = HWs[NBLK]
        a4 = a_bufs[NBLK]
        tot = jnp.zeros((1, C), f32)
        for m0 in range(0, (H4 + 2) * Wp, CHUNK * Wp):
            m1 = min(m0 + CHUNK * Wp, (H4 + 2) * Wp)
            tot = tot + jnp.sum(a4[m0:m1, :], axis=0, keepdims=True)
        pooled = tot * (1.0 / (H4 * W4v))
        logits = jnp.dot(jnp.broadcast_to(pooled, (8, C)), fcw_ref[...],
                         preferred_element_type=f32)[0:1, :] + fcb_ref[...]
        out_ref[0] = logits

    scratch_shapes = [pltpu.VMEM(((h + 2) * Wp, C), jnp.float32) for (h, _) in HWs]
    scratch_shapes.append(
        pltpu.VMEM(((HWs[NBLK - 1][0] + 2) * Wp, C), jnp.float32))   # d2d (largest block)

    fwd = pl.pallas_call(
        kernel,
        out_shape=jax.ShapeDtypeStruct((B, 1, C), jnp.float32),
        grid=(B,),
        in_specs=[
            pl.BlockSpec((1, Ho * Wp, Kp), lambda b: (b, 0, 0)),          # im2col patches (padded rows)
            pl.BlockSpec((Kp, C), lambda b: (0, 0)),                      # conv1 weight
            pl.BlockSpec((NBLK, 9, C), lambda b: (0, 0, 0)),              # depthwise taps
            pl.BlockSpec((NBLK, 1, C), lambda b: (0, 0, 0)),              # depthwise biases
            pl.BlockSpec((NBLK, C, C), lambda b: (0, 0, 0)),              # pointwise weights
            pl.BlockSpec((C, C), lambda b: (0, 0)),                       # fc weight
            pl.BlockSpec((1, C), lambda b: (0, 0)),                       # fc bias
            pl.BlockSpec((NBLK + 1, CHUNK * Wp, C), lambda b: (0, 0, 0)), # ring-masked biases
            pl.BlockSpec((NBLK, Wp, 1), lambda b: (0, 0, 0)),             # depthwise interior masks
        ],
        out_specs=pl.BlockSpec((1, 1, C), lambda b: (b, 0, 0)),
        scratch_shapes=scratch_shapes,
        compiler_params=pltpu.CompilerParams(
            dimension_semantics=("parallel",),      # v7x: shard images over the 2 TCs
            vmem_limit_bytes=32 * 1024 * 1024),
    )
    return fwd, (Ho, Wo, K, Kp, Wp)


# ---------------------------------------------------------------------------
# Parameters (torch-layout) and lane-dense packing
# ---------------------------------------------------------------------------
def init_params(key, num_classes=12, input_channels=1):
    ks = jax.random.split(key, 20)

    def u(k_, shape, fan_in):
        bound = 1.0 / (fan_in ** 0.5)
        return jax.random.uniform(k_, shape, jnp.float32, -bound, bound)

    p = {}
    p["conv1_w"] = u(ks[0], (64, input_channels, 10, 10), input_channels * 100)
    p["conv1_b"] = u(ks[1], (64,), input_channels * 100)
    ki = 2
    for i in range(1, 5):
        p[f"dw{i}_w"] = u(ks[ki], (64, 1, 3, 3), 9); ki += 1
        p[f"dw{i}_b"] = u(ks[ki], (64,), 9); ki += 1
        p[f"pw{i}_w"] = u(ks[ki], (64, 64, 1, 1), 64); ki += 1
        p[f"pw{i}_b"] = u(ks[ki], (64,), 64); ki += 1
    p["fc_w"] = u(ks[ki], (num_classes, 64), 64); ki += 1
    p["fc_b"] = u(ks[ki], (num_classes,), 64)
    return p


def pack_params(params):
    """Pack torch-layout weights into zero-padded, lane-dense (C=128) kernel operands."""
    f32 = jnp.float32
    num_classes = params["fc_w"].shape[0]
    assert num_classes <= C
    Cin = params["conv1_w"].shape[1]
    K = Cin * 100
    Kp = ((K + 127) // 128) * 128

    packed = {}
    w1 = params["conv1_w"].reshape(CH, K).T.astype(f32)           # (K, 64), (cin,kh,kw)-major rows
    packed["w1"] = jnp.zeros((Kp, C), f32).at[:K, :CH].set(w1)
    packed["b1"] = jnp.zeros((1, C), f32).at[0, :CH].set(params["conv1_b"])

    dww = jnp.zeros((NBLK, 9, C), f32)
    dwb = jnp.zeros((NBLK, 1, C), f32)
    pww = jnp.zeros((NBLK, C, C), f32)
    pwb = jnp.zeros((NBLK, 1, C), f32)
    for i in range(NBLK):
        dw_w = params[f"dw{i + 1}_w"][:, 0].reshape(CH, 9).T      # (9, 64): row = tap 3*p+q
        dww = dww.at[i, :, :CH].set(dw_w)
        dwb = dwb.at[i, 0, :CH].set(params[f"dw{i + 1}_b"])
        pww = pww.at[i, :CH, :CH].set(params[f"pw{i + 1}_w"][:, :, 0, 0].T)   # (Cin, Cout)
        pwb = pwb.at[i, 0, :CH].set(params[f"pw{i + 1}_b"])
    packed.update(dww=dww, dwb=dwb, pww=pww, pwb=pwb)

    packed["fcw"] = jnp.zeros((C, C), f32).at[:CH, :num_classes].set(params["fc_w"].T)
    packed["fcb"] = jnp.zeros((1, C), f32).at[0, :num_classes].set(params["fc_b"])
    return packed


# ---------------------------------------------------------------------------
# Forward pass
# ---------------------------------------------------------------------------
@functools.partial(jax.jit, static_argnames=("num_classes",))
def depthwise_separable_conv_forward(x_nchw, packed, num_classes=12):
    x = x_nchw.astype(jnp.float32)
    B, Cin, H, W = x.shape
    fwd, (Ho, Wo, K, Kp, Wp) = _build_fused_forward(B, H, W, Cin)

    # conv1 im2col (pure data movement) laid out in the kernel's padded-row format:
    # per output row, Wp positions with the Wo valid patches at cols [1, 1+Wo) and
    # exact-zero patch rows elsewhere.  (bf16 patches would halve this DMA on v6e/v7x;
    # kept f32 here for accuracy headroom.)
    patches = lax.conv_general_dilated_patches(
        x, filter_shape=(10, 10), window_strides=(2, 2),
        padding=((2, 2), (2, 2)))                                  # (B, Cin*100, Ho, Wo)
    patches = jnp.transpose(patches, (0, 2, 3, 1))                 # (B, Ho, Wo, K)
    patches = jnp.pad(patches, ((0, 0), (0, 0), (1, Wp - 1 - Wo), (0, Kp - K)))
    patches = patches.reshape(B, Ho * Wp, Kp)

    # ring-masked biases: bias value inside cols [1, 1+W_t), exact zero outside.
    pat = np.zeros((NBLK + 1, CHUNK * Wp, 1), np.float32)
    for t in range(NBLK + 1):
        col = np.zeros((Wp,), np.float32)
        col[1:1 + (Wo + 2 * t)] = 1.0
        pat[t, :, 0] = np.tile(col, CHUNK)
    biases = jnp.concatenate([packed["b1"][None], packed["pwb"]], axis=0)   # (5, 1, C)
    ringbias = jnp.asarray(pat) * biases                                    # (5, CHUNK*Wp, C)

    # depthwise interior masks: keep cols [2, 2+W_s), zero elsewhere.
    im = np.zeros((NBLK, Wp, 1), np.float32)
    for t in range(NBLK):
        im[t, 2:2 + (Wo + 2 * t), 0] = 1.0
    intmask = jnp.asarray(im)

    out = fwd(patches, packed["w1"], packed["dww"], packed["dwb"], packed["pww"],
              packed["fcw"], packed["fcb"], ringbias, intmask)              # (B, 1, 128)
    return out[:, 0, :num_classes]


# ---------------------------------------------------------------------------
# Pure-JAX reference (mirrors the PyTorch module) for validation
# ---------------------------------------------------------------------------
def _reference_forward(x, params):
    dn = ("NCHW", "OIHW", "NCHW")
    hp = lax.Precision.HIGHEST
    y = lax.conv_general_dilated(x, params["conv1_w"], (2, 2), ((2, 2), (2, 2)),
                                 dimension_numbers=dn, precision=hp)
    y = jax.nn.relu(y + params["conv1_b"][None, :, None, None])
    for i in range(1, 5):
        d = lax.conv_general_dilated(y, params[f"dw{i}_w"], (1, 1), ((1, 1), (1, 1)),
                                     dimension_numbers=dn, feature_group_count=64,
                                     precision=hp)
        d = d + params[f"dw{i}_b"][None, :, None, None]
        p = lax.conv_general_dilated(d, params[f"pw{i}_w"], (1, 1), ((1, 1), (1, 1)),
                                     dimension_numbers=dn, precision=hp)
        y = jax.nn.relu(p + params[f"pw{i}_b"][None, :, None, None])
    pooled = y.mean(axis=(2, 3))
    return pooled @ params["fc_w"].T + params["fc_b"]


# ---------------------------------------------------------------------------
if __name__ == "__main__":
    key = jax.random.PRNGKey(0)
    pkey, xkey = jax.random.split(key)
    params = init_params(pkey, num_classes=12, input_channels=1)
    packed = pack_params(params)
    x = jax.random.normal(xkey, (2, 1, 32, 32), jnp.float32)       # NCHW, like PyTorch

    out = depthwise_separable_conv_forward(x, packed, num_classes=12)
    out = jax.block_until_ready(out)
    assert out.shape == (2, 12), out.shape
    assert bool(jnp.all(jnp.isfinite(out)))

    ref = _reference_forward(x, params)
    max_err = float(jnp.max(jnp.abs(out - ref)))
    assert max_err < 5e-2, f"mismatch vs reference: max abs err {max_err}"

    print("KERNEL_OK")
</pallas_src>

<mosaic_0001>
module attributes {stable_mosaic.version = 11 : i64} {
  func.func @kernel(%arg0: i32, %arg1: memref<1x336x128xf32, #tpu.memory_space<vmem>>, %arg2: memref<128x128xf32, #tpu.memory_space<vmem>>, %arg3: memref<4x9x128xf32, #tpu.memory_space<vmem>>, %arg4: memref<4x1x128xf32, #tpu.memory_space<vmem>>, %arg5: memref<4x128x128xf32, #tpu.memory_space<vmem>>, %arg6: memref<128x128xf32, #tpu.memory_space<vmem>>, %arg7: memref<1x128xf32, #tpu.memory_space<vmem>>, %arg8: memref<5x192x128xf32, #tpu.memory_space<vmem>>, %arg9: memref<4x24x1xf32, #tpu.memory_space<vmem>>, %arg10: memref<1x1x128xf32, #tpu.memory_space<vmem>>, %arg11: memref<384x128xf32, #tpu.memory_space<vmem>>, %arg12: memref<432x128xf32, #tpu.memory_space<vmem>>, %arg13: memref<480x128xf32, #tpu.memory_space<vmem>>, %arg14: memref<528x128xf32, #tpu.memory_space<vmem>>, %arg15: memref<576x128xf32, #tpu.memory_space<vmem>>, %arg16: memref<528x128xf32, #tpu.memory_space<vmem>>) attributes {dimension_semantics = [#tpu.dimension_semantics<parallel>], iteration_bounds = array<i64: 2>, scalar_prefetch = 0 : i64, scratch_operands = 6 : i64, tpu.core_type = #tpu.core_type<tc>, window_params = [{transform_indices = @transform_0, window_bounds = array<i64: 1, 336, 128>}, {pipeline_mode = #tpu.pipeline_mode<synchronous>, transform_indices = @transform_1, window_bounds = array<i64: 128, 128>}, {pipeline_mode = #tpu.pipeline_mode<synchronous>, transform_indices = @transform_2, window_bounds = array<i64: 4, 9, 128>}, {pipeline_mode = #tpu.pipeline_mode<synchronous>, transform_indices = @transform_3, window_bounds = array<i64: 4, 1, 128>}, {pipeline_mode = #tpu.pipeline_mode<synchronous>, transform_indices = @transform_4, window_bounds = array<i64: 4, 128, 128>}, {pipeline_mode = #tpu.pipeline_mode<synchronous>, transform_indices = @transform_5, window_bounds = array<i64: 128, 128>}, {pipeline_mode = #tpu.pipeline_mode<synchronous>, transform_indices = @transform_6, window_bounds = array<i64: 1, 128>}, {pipeline_mode = #tpu.pipeline_mode<synchronous>, transform_indices = @transform_7, window_bounds = array<i64: 5, 192, 128>}, {pipeline_mode = #tpu.pipeline_mode<synchronous>, transform_indices = @transform_8, window_bounds = array<i64: 4, 24, 1>}, {transform_indices = @transform_9, window_bounds = array<i64: 1, 1, 128>}]} {
    %cst = arith.constant 0.000000e+00 : f32
    %0 = vector.broadcast %cst : f32 to vector<24x128xf32>
    %c0 = arith.constant 0 : index
    %c0_0 = arith.constant 0 : index
    %1 = vector.load %arg2[%c0, %c0_0] : memref<128x128xf32, #tpu.memory_space<vmem>>, vector<128x128xf32>
    %c0_1 = arith.constant 0 : index
    %c0_2 = arith.constant 0 : index
    %c0_3 = arith.constant 0 : index
    %2 = vector.load %arg1[%c0_1, %c0_2, %c0_3] : memref<1x336x128xf32, #tpu.memory_space<vmem>>, vector<1x192x128xf32>
    %3 = vector.shape_cast %2 : vector<1x192x128xf32> to vector<192x128xf32>
    %cst_4 = arith.constant dense<0.000000e+00> : vector<192x128xf32>
    %4 = tpu.matmul %3, %1, %cst_4 {dimension_numbers = #tpu.dot_dimension_numbers<[1], [0], [0], [1], [0, 0, 1, 1], [], []>} : vector<192x128xf32>, vector<128x128xf32>, vector<192x128xf32> -> vector<192x128xf32>
    %c0_5 = arith.constant 0 : index
    %c0_6 = arith.constant 0 : index
    %c0_7 = arith.constant 0 : index
    %5 = vector.load %arg8[%c0_5, %c0_6, %c0_7] : memref<5x192x128xf32, #tpu.memory_space<vmem>>, vector<1x192x128xf32>
    %6 = vector.shape_cast %5 : vector<1x192x128xf32> to vector<192x128xf32>
    %7 = arith.addf %4, %6 : vector<192x128xf32>
    %cst_8 = arith.constant 0.000000e+00 : f32
    %8 = vector.broadcast %cst_8 : f32 to vector<192x128xf32>
    %9 = arith.maximumf %7, %8 : vector<192x128xf32>
    %c24 = arith.constant 24 : index
    %c0_9 = arith.constant 0 : index
    %10 = vector.load %arg11[%c24, %c0_9] : memref<384x128xf32, #tpu.memory_space<vmem>>, vector<192x128xf32>
    tpu.vector_store %arg11[%c24, %c0_9], %9 {strides = array<i32>} : memref<384x128xf32, #tpu.memory_space<vmem>>, vector<192x128xf32>,
    %c0_10 = arith.constant 0 : index
    %c192 = arith.constant 192 : index
    %c0_11 = arith.constant 0 : index
    %11 = vector.load %arg1[%c0_10, %c192, %c0_11] : memref<1x336x128xf32, #tpu.memory_space<vmem>>, vector<1x144x128xf32>
    %12 = vector.shape_cast %11 : vector<1x144x128xf32> to vector<144x128xf32>
    %cst_12 = arith.constant dense<0.000000e+00> : vector<144x128xf32>
    %13 = tpu.matmul %12, %1, %cst_12 {dimension_numbers = #tpu.dot_dimension_numbers<[1], [0], [0], [1], [0, 0, 1, 1], [], []>} : vector<144x128xf32>, vector<128x128xf32>, vector<144x128xf32> -> vector<144x128xf32>
    %c0_13 = arith.constant 0 : index
    %c0_14 = arith.constant 0 : index
    %c0_15 = arith.constant 0 : index
    %14 = vector.load %arg8[%c0_13, %c0_14, %c0_15] : memref<5x192x128xf32, #tpu.memory_space<vmem>>, vector<1x144x128xf32>
    %15 = vector.shape_cast %14 : vector<1x144x128xf32> to vector<144x128xf32>
    %16 = arith.addf %13, %15 : vector<144x128xf32>
    %cst_16 = arith.constant 0.000000e+00 : f32
    %17 = vector.broadcast %cst_16 : f32 to vector<144x128xf32>
    %18 = arith.maximumf %16, %17 : vector<144x128xf32>
    %c216 = arith.constant 216 : index
    %c0_17 = arith.constant 0 : index
    %19 = vector.load %arg11[%c216, %c0_17] : memref<384x128xf32, #tpu.memory_space<vmem>>, vector<144x128xf32>
    tpu.vector_store %arg11[%c216, %c0_17], %18 {strides = array<i32>} : memref<384x128xf32, #tpu.memory_space<vmem>>, vector<144x128xf32>,
    %c0_18 = arith.constant 0 : index
    %c0_19 = arith.constant 0 : index
    %20 = vector.load %arg11[%c0_18, %c0_19] : memref<384x128xf32, #tpu.memory_space<vmem>>, vector<24x128xf32>
    tpu.vector_store %arg11[%c0_18, %c0_19], %0 {strides = array<i32>} : memref<384x128xf32, #tpu.memory_space<vmem>>, vector<24x128xf32>,
    %c360 = arith.constant 360 : index
    %c0_20 = arith.constant 0 : index
    %21 = vector.load %arg11[%c360, %c0_20] : memref<384x128xf32, #tpu.memory_space<vmem>>, vector<24x128xf32>
    tpu.vector_store %arg11[%c360, %c0_20], %0 {strides = array<i32>} : memref<384x128xf32, #tpu.memory_space<vmem>>, vector<24x128xf32>,
    %c0_21 = arith.constant 0 : index
    %c0_22 = arith.constant 0 : index
    %c0_23 = arith.constant 0 : index
    %22 = vector.load %arg3[%c0_21, %c0_22, %c0_23] : memref<4x9x128xf32, #tpu.memory_space<vmem>>, vector<1x9x128xf32>
    %23 = vector.shape_cast %22 : vector<1x9x128xf32> to vector<9x128xf32>
    %24 = vector.extract_strided_slice %23 {offsets = [0, 0], sizes = [1, 128], strides = [1, 1]} : vector<9x128xf32> to vector<1x128xf32>
    %25 = vector.shape_cast %24 : vector<1x128xf32> to vector<128xf32>
    %26 = vector.shape_cast %25 : vector<128xf32> to vector<1x128xf32>
    %27 = vector.broadcast %26 : vector<1x128xf32> to vector<24x128xf32>
    %28 = vector.extract_strided_slice %23 {offsets = [1, 0], sizes = [1, 128], strides = [1, 1]} : vector<9x128xf32> to vector<1x128xf32>
    %29 = vector.shape_cast %28 : vector<1x128xf32> to vector<128xf32>
    %30 = vector.shape_cast %29 : vector<128xf32> to vector<1x128xf32>
    %31 = vector.broadcast %30 : vector<1x128xf32> to vector<24x128xf32>
    %32 = vector.extract_strided_slice %23 {offsets = [2, 0], sizes = [1, 128], strides = [1, 1]} : vector<9x128xf32> to vector<1x128xf32>
    %33 = vector.shape_cast %32 : vector<1x128xf32> to vector<128xf32>
    %34 = vector.shape_cast %33 : vector<128xf32> to vector<1x128xf32>
    %35 = vector.broadcast %34 : vector<1x128xf32> to vector<24x128xf32>
    %36 = vector.extract_strided_slice %23 {offsets = [3, 0], sizes = [1, 128], strides = [1, 1]} : vector<9x128xf32> to vector<1x128xf32>
    %37 = vector.shape_cast %36 : vector<1x128xf32> to vector<128xf32>
    %38 = vector.shape_cast %37 : vector<128xf32> to vector<1x128xf32>
    %39 = vector.broadcast %38 : vector<1x128xf32> to vector<24x128xf32>
    %40 = vector.extract_strided_slice %23 {offsets = [4, 0], sizes = [1, 128], strides = [1, 1]} : vector<9x128xf32> to vector<1x128xf32>
    %41 = vector.shape_cast %40 : vector<1x128xf32> to vector<128xf32>
    %42 = vector.shape_cast %41 : vector<128xf32> to vector<1x128xf32>
    %43 = vector.broadcast %42 : vector<1x128xf32> to vector<24x128xf32>
    %44 = vector.extract_strided_slice %23 {offsets = [5, 0], sizes = [1, 128], strides = [1, 1]} : vector<9x128xf32> to vector<1x128xf32>
    %45 = vector.shape_cast %44 : vector<1x128xf32> to vector<128xf32>
    %46 = vector.shape_cast %45 : vector<128xf32> to vector<1x128xf32>
    %47 = vector.broadcast %46 : vector<1x128xf32> to vector<24x128xf32>
    %48 = vector.extract_strided_slice %23 {offsets = [6, 0], sizes = [1, 128], strides = [1, 1]} : vector<9x128xf32> to vector<1x128xf32>
    %49 = vector.shape_cast %48 : vector<1x128xf32> to vector<128xf32>
    %50 = vector.shape_cast %49 : vector<128xf32> to vector<1x128xf32>
    %51 = vector.broadcast %50 : vector<1x128xf32> to vector<24x128xf32>
    %52 = vector.extract_strided_slice %23 {offsets = [7, 0], sizes = [1, 128], strides = [1, 1]} : vector<9x128xf32> to vector<1x128xf32>
    %53 = vector.shape_cast %52 : vector<1x128xf32> to vector<128xf32>
    %54 = vector.shape_cast %53 : vector<128xf32> to vector<1x128xf32>
    %55 = vector.broadcast %54 : vector<1x128xf32> to vector<24x128xf32>
    %56 = vector.extract_strided_slice %23 {offsets = [8, 0], sizes = [1, 128], strides = [1, 1]} : vector<9x128xf32> to vector<1x128xf32>
    %57 = vector.shape_cast %56 : vector<1x128xf32> to vector<128xf32>
    %58 = vector.shape_cast %57 : vector<128xf32> to vector<1x128xf32>
    %59 = vector.broadcast %58 : vector<1x128xf32> to vector<24x128xf32>
    %c0_24 = arith.constant 0 : index
    %c0_25 = arith.constant 0 : index
    %c0_26 = arith.constant 0 : index
    %60 = vector.load %arg4[%c0_24, %c0_25, %c0_26] : memref<4x1x128xf32, #tpu.memory_space<vmem>>, vector<1x1x128xf32>
    %61 = vector.shape_cast %60 : vector<1x1x128xf32> to vector<1x128xf32>
    %62 = vector.shape_cast %61 : vector<1x128xf32> to vector<1x128xf32>
    %63 = vector.broadcast %62 : vector<1x128xf32> to vector<24x128xf32>
    %c0_27 = arith.constant 0 : index
    %c0_28 = arith.constant 0 : index
    %c0_29 = arith.constant 0 : index
    %64 = vector.load %arg9[%c0_27, %c0_28, %c0_29] : memref<4x24x1xf32, #tpu.memory_space<vmem>>, vector<1x24x1xf32>
    %65 = vector.shape_cast %64 : vector<1x24x1xf32> to vector<24x1xf32>
    %66 = vector.shape_cast %65 : vector<24x1xf32> to vector<24x1xf32>
    %67 = vector.broadcast %66 : vector<24x1xf32> to vector<24x128xf32>
    %c0_30 = arith.constant 0 : index
    %c0_31 = arith.constant 0 : index
    %68 = vector.load %arg16[%c0_30, %c0_31] : memref<528x128xf32, #tpu.memory_space<vmem>>, vector<24x128xf32>
    tpu.vector_store %arg16[%c0_30, %c0_31], %0 {strides = array<i32>} : memref<528x128xf32, #tpu.memory_space<vmem>>, vector<24x128xf32>,
    %c360_32 = arith.constant 360 : index
    %c0_33 = arith.constant 0 : index
    %69 = vector.load %arg16[%c360_32, %c0_33] : memref<528x128xf32, #tpu.memory_space<vmem>>, vector<24x128xf32>
    tpu.vector_store %arg16[%c360_32, %c0_33], %0 {strides = array<i32>} : memref<528x128xf32, #tpu.memory_space<vmem>>, vector<24x128xf32>,
    %c1_i32 = arith.constant 1 : i32
    %c14_i32 = arith.constant 14 : i32
    %70 = arith.addi %c1_i32, %c14_i32 : i32
    %c1_i32_34 = arith.constant 1 : i32
    scf.for %arg17 = %c1_i32 to %70 step %c1_i32_34  : i32 {
      %c1_i32_221 = arith.constant 1 : i32
      %347 = arith.subi %arg17, %c1_i32_221 : i32
      %c24_i32 = arith.constant 24 : i32
      %348 = arith.muli %347, %c24_i32 : i32
      %349 = tpu.assume_multiple %348, 8 : i32
      %c24_i32_222 = arith.constant 24 : i32
      %350 = arith.muli %arg17, %c24_i32_222 : i32
      %351 = tpu.assume_multiple %350, 8 : i32
      %c1_i32_223 = arith.constant 1 : i32
      %352 = arith.addi %arg17, %c1_i32_223 : i32
      %c24_i32_224 = arith.constant 24 : i32
      %353 = arith.muli %352, %c24_i32_224 : i32
      %354 = tpu.assume_multiple %353, 8 : i32
      %355 = arith.index_cast %349 : i32 to index
      %c0_225 = arith.constant 0 : index
      %356 = vector.load %arg11[%355, %c0_225] : memref<384x128xf32, #tpu.memory_space<vmem>>, vector<24x128xf32>
      %357 = arith.index_cast %351 : i32 to index
      %c0_226 = arith.constant 0 : index
      %358 = vector.load %arg11[%357, %c0_226] : memref<384x128xf32, #tpu.memory_space<vmem>>, vector<24x128xf32>
      %359 = arith.index_cast %354 : i32 to index
      %c0_227 = arith.constant 0 : index
      %360 = vector.load %arg11[%359, %c0_227] : memref<384x128xf32, #tpu.memory_space<vmem>>, vector<24x128xf32>
      %361 = arith.mulf %356, %27 : vector<24x128xf32>
      %362 = arith.mulf %358, %39 : vector<24x128xf32>
      %363 = arith.addf %361, %362 : vector<24x128xf32>
      %364 = arith.mulf %360, %51 : vector<24x128xf32>
      %365 = arith.addf %363, %364 : vector<24x128xf32>
      %366 = arith.mulf %356, %31 : vector<24x128xf32>
      %367 = arith.mulf %358, %43 : vector<24x128xf32>
      %368 = arith.addf %366, %367 : vector<24x128xf32>
      %369 = arith.mulf %360, %55 : vector<24x128xf32>
      %370 = arith.addf %368, %369 : vector<24x128xf32>
      %371 = arith.mulf %356, %35 : vector<24x128xf32>
      %372 = arith.mulf %358, %47 : vector<24x128xf32>
      %373 = arith.addf %371, %372 : vector<24x128xf32>
      %374 = arith.mulf %360, %59 : vector<24x128xf32>
      %375 = arith.addf %373, %374 : vector<24x128xf32>
      %c2_i32 = arith.constant 2 : i32
      %376 = tpu.dynamic_rotate %365 by %c2_i32 dim 0 : vector<24x128xf32>, i32 -> vector<24x128xf32>
      %377 = arith.addf %63, %376 : vector<24x128xf32>
      %c1_i32_228 = arith.constant 1 : i32
      %378 = tpu.dynamic_rotate %370 by %c1_i32_228 dim 0 : vector<24x128xf32>, i32 -> vector<24x128xf32>
      %379 = arith.addf %377, %378 : vector<24x128xf32>
      %380 = arith.addf %379, %375 : vector<24x128xf32>
      %381 = arith.mulf %380, %67 : vector<24x128xf32>
      %382 = arith.index_cast %351 : i32 to index
      %c0_229 = arith.constant 0 : index
      %383 = vector.load %arg16[%382, %c0_229] : memref<528x128xf32, #tpu.memory_space<vmem>>, vector<24x128xf32>
      tpu.vector_store %arg16[%382, %c0_229], %381 {strides = array<i32>} : memref<528x128xf32, #tpu.memory_space<vmem>>, vector<24x128xf32>,
    }
    %c14_i32_35 = arith.constant 14 : i32
    %c0_36 = arith.constant 0 : index
    %c0_37 = arith.constant 0 : index
    %c0_38 = arith.constant 0 : index
    %71 = vector.load %arg5[%c0_36, %c0_37, %c0_38] : memref<4x128x128xf32, #tpu.memory_space<vmem>>, vector<1x128x128xf32>
    %72 = vector.shape_cast %71 : vector<1x128x128xf32> to vector<128x128xf32>
    %c0_39 = arith.constant 0 : index
    %c0_40 = arith.constant 0 : index
    %73 = vector.load %arg16[%c0_39, %c0_40] : memref<528x128xf32, #tpu.memory_space<vmem>>, vector<192x128xf32>
    %cst_41 = arith.constant dense<0.000000e+00> : vector<192x128xf32>
    %74 = tpu.matmul %73, %72, %cst_41 {dimension_numbers = #tpu.dot_dimension_numbers<[1], [0], [0], [1], [0, 0, 1, 1], [], []>} : vector<192x128xf32>, vector<128x128xf32>, vector<192x128xf32> -> vector<192x128xf32>
    %c1 = arith.constant 1 : index
    %c0_42 = arith.constant 0 : index
    %c0_43 = arith.constant 0 : index
    %75 = vector.load %arg8[%c1, %c0_42, %c0_43] : memref<5x192x128xf32, #tpu.memory_space<vmem>>, vector<1x192x128xf32>
    %76 = vector.shape_cast %75 : vector<1x192x128xf32> to vector<192x128xf32>
    %77 = arith.addf %74, %76 : vector<192x128xf32>
    %cst_44 = arith.constant 0.000000e+00 : f32
    %78 = vector.broadcast %cst_44 : f32 to vector<192x128xf32>
    %79 = arith.maximumf %77, %78 : vector<192x128xf32>
    %c24_45 = arith.constant 24 : index
    %c0_46 = arith.constant 0 : index
    %80 = vector.load %arg12[%c24_45, %c0_46] : memref<432x128xf32, #tpu.memory_space<vmem>>, vector<192x128xf32>
    tpu.vector_store %arg12[%c24_45, %c0_46], %79 {strides = array<i32>} : memref<432x128xf32, #tpu.memory_space<vmem>>, vector<192x128xf32>,
    %c192_47 = arith.constant 192 : index
    %c0_48 = arith.constant 0 : index
    %81 = vector.load %arg16[%c192_47, %c0_48] : memref<528x128xf32, #tpu.memory_space<vmem>>, vector<192x128xf32>
    %cst_49 = arith.constant dense<0.000000e+00> : vector<192x128xf32>
    %82 = tpu.matmul %81, %72, %cst_49 {dimension_numbers = #tpu.dot_dimension_numbers<[1], [0], [0], [1], [0, 0, 1, 1], [], []>} : vector<192x128xf32>, vector<128x128xf32>, vector<192x128xf32> -> vector<192x128xf32>
    %c1_50 = arith.constant 1 : index
    %c0_51 = arith.constant 0 : index
    %c0_52 = arith.constant 0 : index
    %83 = vector.load %arg8[%c1_50, %c0_51, %c0_52] : memref<5x192x128xf32, #tpu.memory_space<vmem>>, vector<1x192x128xf32>
    %84 = vector.shape_cast %83 : vector<1x192x128xf32> to vector<192x128xf32>
    %85 = arith.addf %82, %84 : vector<192x128xf32>
    %cst_53 = arith.constant 0.000000e+00 : f32
    %86 = vector.broadcast %cst_53 : f32 to vector<192x128xf32>
    %87 = arith.maximumf %85, %86 : vector<192x128xf32>
    %c216_54 = arith.constant 216 : index
    %c0_55 = arith.constant 0 : index
    %88 = vector.load %arg12[%c216_54, %c0_55] : memref<432x128xf32, #tpu.memory_space<vmem>>, vector<192x128xf32>
    tpu.vector_store %arg12[%c216_54, %c0_55], %87 {strides = array<i32>} : memref<432x128xf32, #tpu.memory_space<vmem>>, vector<192x128xf32>,
    %c0_56 = arith.constant 0 : index
    %c0_57 = arith.constant 0 : index
    %89 = vector.load %arg12[%c0_56, %c0_57] : memref<432x128xf32, #tpu.memory_space<vmem>>, vector<24x128xf32>
    tpu.vector_store %arg12[%c0_56, %c0_57], %0 {strides = array<i32>} : memref<432x128xf32, #tpu.memory_space<vmem>>, vector<24x128xf32>,
    %c408 = arith.constant 408 : index
    %c0_58 = arith.constant 0 : index
    %90 = vector.load %arg12[%c408, %c0_58] : memref<432x128xf32, #tpu.memory_space<vmem>>, vector<24x128xf32>
    tpu.vector_store %arg12[%c408, %c0_58], %0 {strides = array<i32>} : memref<432x128xf32, #tpu.memory_space<vmem>>, vector<24x128xf32>,
    %c1_59 = arith.constant 1 : index
    %c0_60 = arith.constant 0 : index
    %c0_61 = arith.constant 0 : index
    %91 = vector.load %arg3[%c1_59, %c0_60, %c0_61] : memref<4x9x128xf32, #tpu.memory_space<vmem>>, vector<1x9x128xf32>
    %92 = vector.shape_cast %91 : vector<1x9x128xf32> to vector<9x128xf32>
    %93 = vector.extract_strided_slice %92 {offsets = [0, 0], sizes = [1, 128], strides = [1, 1]} : vector<9x128xf32> to vector<1x128xf32>
    %94 = vector.shape_cast %93 : vector<1x128xf32> to vector<128xf32>
    %95 = vector.shape_cast %94 : vector<128xf32> to vector<1x128xf32>
    %96 = vector.broadcast %95 : vector<1x128xf32> to vector<24x128xf32>
    %97 = vector.extract_strided_slice %92 {offsets = [1, 0], sizes = [1, 128], strides = [1, 1]} : vector<9x128xf32> to vector<1x128xf32>
    %98 = vector.shape_cast %97 : vector<1x128xf32> to vector<128xf32>
    %99 = vector.shape_cast %98 : vector<128xf32> to vector<1x128xf32>
    %100 = vector.broadcast %99 : vector<1x128xf32> to vector<24x128xf32>
    %101 = vector.extract_strided_slice %92 {offsets = [2, 0], sizes = [1, 128], strides = [1, 1]} : vector<9x128xf32> to vector<1x128xf32>
    %102 = vector.shape_cast %101 : vector<1x128xf32> to vector<128xf32>
    %103 = vector.shape_cast %102 : vector<128xf32> to vector<1x128xf32>
    %104 = vector.broadcast %103 : vector<1x128xf32> to vector<24x128xf32>
    %105 = vector.extract_strided_slice %92 {offsets = [3, 0], sizes = [1, 128], strides = [1, 1]} : vector<9x128xf32> to vector<1x128xf32>
    %106 = vector.shape_cast %105 : vector<1x128xf32> to vector<128xf32>
    %107 = vector.shape_cast %106 : vector<128xf32> to vector<1x128xf32>
    %108 = vector.broadcast %107 : vector<1x128xf32> to vector<24x128xf32>
    %109 = vector.extract_strided_slice %92 {offsets = [4, 0], sizes = [1, 128], strides = [1, 1]} : vector<9x128xf32> to vector<1x128xf32>
    %110 = vector.shape_cast %109 : vector<1x128xf32> to vector<128xf32>
    %111 = vector.shape_cast %110 : vector<128xf32> to vector<1x128xf32>
    %112 = vector.broadcast %111 : vector<1x128xf32> to vector<24x128xf32>
    %113 = vector.extract_strided_slice %92 {offsets = [5, 0], sizes = [1, 128], strides = [1, 1]} : vector<9x128xf32> to vector<1x128xf32>
    %114 = vector.shape_cast %113 : vector<1x128xf32> to vector<128xf32>
    %115 = vector.shape_cast %114 : vector<128xf32> to vector<1x128xf32>
    %116 = vector.broadcast %115 : vector<1x128xf32> to vector<24x128xf32>
    %117 = vector.extract_strided_slice %92 {offsets = [6, 0], sizes = [1, 128], strides = [1, 1]} : vector<9x128xf32> to vector<1x128xf32>
    %118 = vector.shape_cast %117 : vector<1x128xf32> to vector<128xf32>
    %119 = vector.shape_cast %118 : vector<128xf32> to vector<1x128xf32>
    %120 = vector.broadcast %119 : vector<1x128xf32> to vector<24x128xf32>
    %121 = vector.extract_strided_slice %92 {offsets = [7, 0], sizes = [1, 128], strides = [1, 1]} : vector<9x128xf32> to vector<1x128xf32>
    %122 = vector.shape_cast %121 : vector<1x128xf32> to vector<128xf32>
    %123 = vector.shape_cast %122 : vector<128xf32> to vector<1x128xf32>
    %124 = vector.broadcast %123 : vector<1x128xf32> to vector<24x128xf32>
    %125 = vector.extract_strided_slice %92 {offsets = [8, 0], sizes = [1, 128], strides = [1, 1]} : vector<9x128xf32> to vector<1x128xf32>
    %126 = vector.shape_cast %125 : vector<1x128xf32> to vector<128xf32>
    %127 = vector.shape_cast %126 : vector<128xf32> to vector<1x128xf32>
    %128 = vector.broadcast %127 : vector<1x128xf32> to vector<24x128xf32>
    %c1_62 = arith.constant 1 : index
    %c0_63 = arith.constant 0 : index
    %c0_64 = arith.constant 0 : index
    %129 = vector.load %arg4[%c1_62, %c0_63, %c0_64] : memref<4x1x128xf32, #tpu.memory_space<vmem>>, vector<1x1x128xf32>
    %130 = vector.shape_cast %129 : vector<1x1x128xf32> to vector<1x128xf32>
    %131 = vector.shape_cast %130 : vector<1x128xf32> to vector<1x128xf32>
    %132 = vector.broadcast %131 : vector<1x128xf32> to vector<24x128xf32>
    %c1_65 = arith.constant 1 : index
    %c0_66 = arith.constant 0 : index
    %c0_67 = arith.constant 0 : index
    %133 = vector.load %arg9[%c1_65, %c0_66, %c0_67] : memref<4x24x1xf32, #tpu.memory_space<vmem>>, vector<1x24x1xf32>
    %134 = vector.shape_cast %133 : vector<1x24x1xf32> to vector<24x1xf32>
    %135 = vector.shape_cast %134 : vector<24x1xf32> to vector<24x1xf32>
    %136 = vector.broadcast %135 : vector<24x1xf32> to vector<24x128xf32>
    %c0_68 = arith.constant 0 : index
    %c0_69 = arith.constant 0 : index
    %137 = vector.load %arg16[%c0_68, %c0_69] : memref<528x128xf32, #tpu.memory_space<vmem>>, vector<24x128xf32>
    tpu.vector_store %arg16[%c0_68, %c0_69], %0 {strides = array<i32>} : memref<528x128xf32, #tpu.memory_space<vmem>>, vector<24x128xf32>,
    %c408_70 = arith.constant 408 : index
    %c0_71 = arith.constant 0 : index
    %138 = vector.load %arg16[%c408_70, %c0_71] : memref<528x128xf32, #tpu.memory_space<vmem>>, vector<24x128xf32>
    tpu.vector_store %arg16[%c408_70, %c0_71], %0 {strides = array<i32>} : memref<528x128xf32, #tpu.memory_space<vmem>>, vector<24x128xf32>,
    %c1_i32_72 = arith.constant 1 : i32
    %c16_i32 = arith.constant 16 : i32
    %139 = arith.addi %c1_i32_72, %c16_i32 : i32
    %c1_i32_73 = arith.constant 1 : i32
    scf.for %arg17 = %c1_i32_72 to %139 step %c1_i32_73  : i32 {
      %c1_i32_221 = arith.constant 1 : i32
      %347 = arith.subi %arg17, %c1_i32_221 : i32
      %c24_i32 = arith.constant 24 : i32
      %348 = arith.muli %347, %c24_i32 : i32
      %349 = tpu.assume_multiple %348, 8 : i32
      %c24_i32_222 = arith.constant 24 : i32
      %350 = arith.muli %arg17, %c24_i32_222 : i32
      %351 = tpu.assume_multiple %350, 8 : i32
      %c1_i32_223 = arith.constant 1 : i32
      %352 = arith.addi %arg17, %c1_i32_223 : i32
      %c24_i32_224 = arith.constant 24 : i32
      %353 = arith.muli %352, %c24_i32_224 : i32
      %354 = tpu.assume_multiple %353, 8 : i32
      %355 = arith.index_cast %349 : i32 to index
      %c0_225 = arith.constant 0 : index
      %356 = vector.load %arg12[%355, %c0_225] : memref<432x128xf32, #tpu.memory_space<vmem>>, vector<24x128xf32>
      %357 = arith.index_cast %351 : i32 to index
      %c0_226 = arith.constant 0 : index
      %358 = vector.load %arg12[%357, %c0_226] : memref<432x128xf32, #tpu.memory_space<vmem>>, vector<24x128xf32>
      %359 = arith.index_cast %354 : i32 to index
      %c0_227 = arith.constant 0 : index
      %360 = vector.load %arg12[%359, %c0_227] : memref<432x128xf32, #tpu.memory_space<vmem>>, vector<24x128xf32>
      %361 = arith.mulf %356, %96 : vector<24x128xf32>
      %362 = arith.mulf %358, %108 : vector<24x128xf32>
      %363 = arith.addf %361, %362 : vector<24x128xf32>
      %364 = arith.mulf %360, %120 : vector<24x128xf32>
      %365 = arith.addf %363, %364 : vector<24x128xf32>
      %366 = arith.mulf %356, %100 : vector<24x128xf32>
      %367 = arith.mulf %358, %112 : vector<24x128xf32>
      %368 = arith.addf %366, %367 : vector<24x128xf32>
      %369 = arith.mulf %360, %124 : vector<24x128xf32>
      %370 = arith.addf %368, %369 : vector<24x128xf32>
      %371 = arith.mulf %356, %104 : vector<24x128xf32>
      %372 = arith.mulf %358, %116 : vector<24x128xf32>
      %373 = arith.addf %371, %372 : vector<24x128xf32>
      %374 = arith.mulf %360, %128 : vector<24x128xf32>
      %375 = arith.addf %373, %374 : vector<24x128xf32>
      %c2_i32 = arith.constant 2 : i32
      %376 = tpu.dynamic_rotate %365 by %c2_i32 dim 0 : vector<24x128xf32>, i32 -> vector<24x128xf32>
      %377 = arith.addf %132, %376 : vector<24x128xf32>
      %c1_i32_228 = arith.constant 1 : i32
      %378 = tpu.dynamic_rotate %370 by %c1_i32_228 dim 0 : vector<24x128xf32>, i32 -> vector<24x128xf32>
      %379 = arith.addf %377, %378 : vector<24x128xf32>
      %380 = arith.addf %379, %375 : vector<24x128xf32>
      %381 = arith.mulf %380, %136 : vector<24x128xf32>
      %382 = arith.index_cast %351 : i32 to index
      %c0_229 = arith.constant 0 : index
      %383 = vector.load %arg16[%382, %c0_229] : memref<528x128xf32, #tpu.memory_space<vmem>>, vector<24x128xf32>
      tpu.vector_store %arg16[%382, %c0_229], %381 {strides = array<i32>} : memref<528x128xf32, #tpu.memory_space<vmem>>, vector<24x128xf32>,
    }
    %c16_i32_74 = arith.constant 16 : i32
    %c1_75 = arith.constant 1 : index
    %c0_76 = arith.constant 0 : index
    %c0_77 = arith.constant 0 : index
    %140 = vector.load %arg5[%c1_75, %c0_76, %c0_77] : memref<4x128x128xf32, #tpu.memory_space<vmem>>, vector<1x128x128xf32>
    %141 = vector.shape_cast %140 : vector<1x128x128xf32> to vector<128x128xf32>
    %c0_78 = arith.constant 0 : index
    %c0_79 = arith.constant 0 : index
    %142 = vector.load %arg16[%c0_78, %c0_79] : memref<528x128xf32, #tpu.memory_space<vmem>>, vector<192x128xf32>
    %cst_80 = arith.constant dense<0.000000e+00> : vector<192x128xf32>
    %143 = tpu.matmul %142, %141, %cst_80 {dimension_numbers = #tpu.dot_dimension_numbers<[1], [0], [0], [1], [0, 0, 1, 1], [], []>} : vector<192x128xf32>, vector<128x128xf32>, vector<192x128xf32> -> vector<192x128xf32>
    %c2 = arith.constant 2 : index
    %c0_81 = arith.constant 0 : index
    %c0_82 = arith.constant 0 : index
    %144 = vector.load %arg8[%c2, %c0_81, %c0_82] : memref<5x192x128xf32, #tpu.memory_space<vmem>>, vector<1x192x128xf32>
    %145 = vector.shape_cast %144 : vector<1x192x128xf32> to vector<192x128xf32>
    %146 = arith.addf %143, %145 : vector<192x128xf32>
    %cst_83 = arith.constant 0.000000e+00 : f32
    %147 = vector.broadcast %cst_83 : f32 to vector<192x128xf32>
    %148 = arith.maximumf %146, %147 : vector<192x128xf32>
    %c24_84 = arith.constant 24 : index
    %c0_85 = arith.constant 0 : index
    %149 = vector.load %arg13[%c24_84, %c0_85] : memref<480x128xf32, #tpu.memory_space<vmem>>, vector<192x128xf32>
    tpu.vector_store %arg13[%c24_84, %c0_85], %148 {strides = array<i32>} : memref<480x128xf32, #tpu.memory_space<vmem>>, vector<192x128xf32>,
    %c192_86 = arith.constant 192 : index
    %c0_87 = arith.constant 0 : index
    %150 = vector.load %arg16[%c192_86, %c0_87] : memref<528x128xf32, #tpu.memory_space<vmem>>, vector<192x128xf32>
    %cst_88 = arith.constant dense<0.000000e+00> : vector<192x128xf32>
    %151 = tpu.matmul %150, %141, %cst_88 {dimension_numbers = #tpu.dot_dimension_numbers<[1], [0], [0], [1], [0, 0, 1, 1], [], []>} : vector<192x128xf32>, vector<128x128xf32>, vector<192x128xf32> -> vector<192x128xf32>
    %c2_89 = arith.constant 2 : index
    %c0_90 = arith.constant 0 : index
    %c0_91 = arith.constant 0 : index
    %152 = vector.load %arg8[%c2_89, %c0_90, %c0_91] : memref<5x192x128xf32, #tpu.memory_space<vmem>>, vector<1x192x128xf32>
    %153 = vector.shape_cast %152 : vector<1x192x128xf32> to vector<192x128xf32>
    %154 = arith.addf %151, %153 : vector<192x128xf32>
    %cst_92 = arith.constant 0.000000e+00 : f32
    %155 = vector.broadcast %cst_92 : f32 to vector<192x128xf32>
    %156 = arith.maximumf %154, %155 : vector<192x128xf32>
    %c216_93 = arith.constant 216 : index
    %c0_94 = arith.constant 0 : index
    %157 = vector.load %arg13[%c216_93, %c0_94] : memref<480x128xf32, #tpu.memory_space<vmem>>, vector<192x128xf32>
    tpu.vector_store %arg13[%c216_93, %c0_94], %156 {strides = array<i32>} : memref<480x128xf32, #tpu.memory_space<vmem>>, vector<192x128xf32>,
    %c384 = arith.constant 384 : index
    %c0_95 = arith.constant 0 : index
    %158 = vector.load %arg16[%c384, %c0_95] : memref<528x128xf32, #tpu.memory_space<vmem>>, vector<48x128xf32>
    %cst_96 = arith.constant dense<0.000000e+00> : vector<48x128xf32>
    %159 = tpu.matmul %158, %141, %cst_96 {dimension_numbers = #tpu.dot_dimension_numbers<[1], [0], [0], [1], [0, 0, 1, 1], [], []>} : vector<48x128xf32>, vector<128x128xf32>, vector<48x128xf32> -> vector<48x128xf32>
    %c2_97 = arith.constant 2 : index
    %c0_98 = arith.constant 0 : index
    %c0_99 = arith.constant 0 : index
    %160 = vector.load %arg8[%c2_97, %c0_98, %c0_99] : memref<5x192x128xf32, #tpu.memory_space<vmem>>, vector<1x48x128xf32>
    %161 = vector.shape_cast %160 : vector<1x48x128xf32> to vector<48x128xf32>
    %162 = arith.addf %159, %161 : vector<48x128xf32>
    %cst_100 = arith.constant 0.000000e+00 : f32
    %163 = vector.broadcast %cst_100 : f32 to vector<48x128xf32>
    %164 = arith.maximumf %162, %163 : vector<48x128xf32>
    %c408_101 = arith.constant 408 : index
    %c0_102 = arith.constant 0 : index
    %165 = vector.load %arg13[%c408_101, %c0_102] : memref<480x128xf32, #tpu.memory_space<vmem>>, vector<48x128xf32>
    tpu.vector_store %arg13[%c408_101, %c0_102], %164 {strides = array<i32>} : memref<480x128xf32, #tpu.memory_space<vmem>>, vector<48x128xf32>,
    %c0_103 = arith.constant 0 : index
    %c0_104 = arith.constant 0 : index
    %166 = vector.load %arg13[%c0_103, %c0_104] : memref<480x128xf32, #tpu.memory_space<vmem>>, vector<24x128xf32>
    tpu.vector_store %arg13[%c0_103, %c0_104], %0 {strides = array<i32>} : memref<480x128xf32, #tpu.memory_space<vmem>>, vector<24x128xf32>,
    %c456 = arith.constant 456 : index
    %c0_105 = arith.constant 0 : index
    %167 = vector.load %arg13[%c456, %c0_105] : memref<480x128xf32, #tpu.memory_space<vmem>>, vector<24x128xf32>
    tpu.vector_store %arg13[%c456, %c0_105], %0 {strides = array<i32>} : memref<480x128xf32, #tpu.memory_space<vmem>>, vector<24x128xf32>,
    %c2_106 = arith.constant 2 : index
    %c0_107 = arith.constant 0 : index
    %c0_108 = arith.constant 0 : index
    %168 = vector.load %arg3[%c2_106, %c0_107, %c0_108] : memref<4x9x128xf32, #tpu.memory_space<vmem>>, vector<1x9x128xf32>
    %169 = vector.shape_cast %168 : vector<1x9x128xf32> to vector<9x128xf32>
    %170 = vector.extract_strided_slice %169 {offsets = [0, 0], sizes = [1, 128], strides = [1, 1]} : vector<9x128xf32> to vector<1x128xf32>
    %171 = vector.shape_cast %170 : vector<1x128xf32> to vector<128xf32>
    %172 = vector.shape_cast %171 : vector<128xf32> to vector<1x128xf32>
    %173 = vector.broadcast %172 : vector<1x128xf32> to vector<24x128xf32>
    %174 = vector.extract_strided_slice %169 {offsets = [1, 0], sizes = [1, 128], strides = [1, 1]} : vector<9x128xf32> to vector<1x128xf32>
    %175 = vector.shape_cast %174 : vector<1x128xf32> to vector<128xf32>
    %176 = vector.shape_cast %175 : vector<128xf32> to vector<1x128xf32>
    %177 = vector.broadcast %176 : vector<1x128xf32> to vector<24x128xf32>
    %178 = vector.extract_strided_slice %169 {offsets = [2, 0], sizes = [1, 128], strides = [1, 1]} : vector<9x128xf32> to vector<1x128xf32>
    %179 = vector.shape_cast %178 : vector<1x128xf32> to vector<128xf32>
    %180 = vector.shape_cast %179 : vector<128xf32> to vector<1x128xf32>
    %181 = vector.broadcast %180 : vector<1x128xf32> to vector<24x128xf32>
    %182 = vector.extract_strided_slice %169 {offsets = [3, 0], sizes = [1, 128], strides = [1, 1]} : vector<9x128xf32> to vector<1x128xf32>
    %183 = vector.shape_cast %182 : vector<1x128xf32> to vector<128xf32>
    %184 = vector.shape_cast %183 : vector<128xf32> to vector<1x128xf32>
    %185 = vector.broadcast %184 : vector<1x128xf32> to vector<24x128xf32>
    %186 = vector.extract_strided_slice %169 {offsets = [4, 0], sizes = [1, 128], strides = [1, 1]} : vector<9x128xf32> to vector<1x128xf32>
    %187 = vector.shape_cast %186 : vector<1x128xf32> to vector<128xf32>
    %188 = vector.shape_cast %187 : vector<128xf32> to vector<1x128xf32>
    %189 = vector.broadcast %188 : vector<1x128xf32> to vector<24x128xf32>
    %190 = vector.extract_strided_slice %169 {offsets = [5, 0], sizes = [1, 128], strides = [1, 1]} : vector<9x128xf32> to vector<1x128xf32>
    %191 = vector.shape_cast %190 : vector<1x128xf32> to vector<128xf32>
    %192 = vector.shape_cast %191 : vector<128xf32> to vector<1x128xf32>
    %193 = vector.broadcast %192 : vector<1x128xf32> to vector<24x128xf32>
    %194 = vector.extract_strided_slice %169 {offsets = [6, 0], sizes = [1, 128], strides = [1, 1]} : vector<9x128xf32> to vector<1x128xf32>
    %195 = vector.shape_cast %194 : vector<1x128xf32> to vector<128xf32>
    %196 = vector.shape_cast %195 : vector<128xf32> to vector<1x128xf32>
    %197 = vector.broadcast %196 : vector<1x128xf32> to vector<24x128xf32>
    %198 = vector.extract_strided_slice %169 {offsets = [7, 0], sizes = [1, 128], strides = [1, 1]} : vector<9x128xf32> to vector<1x128xf32>
    %199 = vector.shape_cast %198 : vector<1x128xf32> to vector<128xf32>
    %200 = vector.shape_cast %199 : vector<128xf32> to vector<1x128xf32>
    %201 = vector.broadcast %200 : vector<1x128xf32> to vector<24x128xf32>
    %202 = vector.extract_strided_slice %169 {offsets = [8, 0], sizes = [1, 128], strides = [1, 1]} : vector<9x128xf32> to vector<1x128xf32>
    %203 = vector.shape_cast %202 : vector<1x128xf32> to vector<128xf32>
    %204 = vector.shape_cast %203 : vector<128xf32> to vector<1x128xf32>
    %205 = vector.broadcast %204 : vector<1x128xf32> to vector<24x128xf32>
    %c2_109 = arith.constant 2 : index
    %c0_110 = arith.constant 0 : index
    %c0_111 = arith.constant 0 : index
    %206 = vector.load %arg4[%c2_109, %c0_110, %c0_111] : memref<4x1x128xf32, #tpu.memory_space<vmem>>, vector<1x1x128xf32>
    %207 = vector.shape_cast %206 : vector<1x1x128xf32> to vector<1x128xf32>
    %208 = vector.shape_cast %207 : vector<1x128xf32> to vector<1x128xf32>
    %209 = vector.broadcast %208 : vector<1x128xf32> to vector<24x128xf32>
    %c2_112 = arith.constant 2 : index
    %c0_113 = arith.constant 0 : index
    %c0_114 = arith.constant 0 : index
    %210 = vector.load %arg9[%c2_112, %c0_113, %c0_114] : memref<4x24x1xf32, #tpu.memory_space<vmem>>, vector<1x24x1xf32>
    %211 = vector.shape_cast %210 : vector<1x24x1xf32> to vector<24x1xf32>
    %212 = vector.shape_cast %211 : vector<24x1xf32> to vector<24x1xf32>
    %213 = vector.broadcast %212 : vector<24x1xf32> to vector<24x128xf32>
    %c0_115 = arith.constant 0 : index
    %c0_116 = arith.constant 0 : index
    %214 = vector.load %arg16[%c0_115, %c0_116] : memref<528x128xf32, #tpu.memory_space<vmem>>, vector<24x128xf32>
    tpu.vector_store %arg16[%c0_115, %c0_116], %0 {strides = array<i32>} : memref<528x128xf32, #tpu.memory_space<vmem>>, vector<24x128xf32>,
    %c456_117 = arith.constant 456 : index
    %c0_118 = arith.constant 0 : index
    %215 = vector.load %arg16[%c456_117, %c0_118] : memref<528x128xf32, #tpu.memory_space<vmem>>, vector<24x128xf32>
    tpu.vector_store %arg16[%c456_117, %c0_118], %0 {strides = array<i32>} : memref<528x128xf32, #tpu.memory_space<vmem>>, vector<24x128xf32>,
    %c1_i32_119 = arith.constant 1 : i32
    %c18_i32 = arith.constant 18 : i32
    %216 = arith.addi %c1_i32_119, %c18_i32 : i32
    %c1_i32_120 = arith.constant 1 : i32
    scf.for %arg17 = %c1_i32_119 to %216 step %c1_i32_120  : i32 {
      %c1_i32_221 = arith.constant 1 : i32
      %347 = arith.subi %arg17, %c1_i32_221 : i32
      %c24_i32 = arith.constant 24 : i32
      %348 = arith.muli %347, %c24_i32 : i32
      %349 = tpu.assume_multiple %348, 8 : i32
      %c24_i32_222 = arith.constant 24 : i32
      %350 = arith.muli %arg17, %c24_i32_222 : i32
      %351 = tpu.assume_multiple %350, 8 : i32
      %c1_i32_223 = arith.constant 1 : i32
      %352 = arith.addi %arg17, %c1_i32_223 : i32
      %c24_i32_224 = arith.constant 24 : i32
      %353 = arith.muli %352, %c24_i32_224 : i32
      %354 = tpu.assume_multiple %353, 8 : i32
      %355 = arith.index_cast %349 : i32 to index
      %c0_225 = arith.constant 0 : index
      %356 = vector.load %arg13[%355, %c0_225] : memref<480x128xf32, #tpu.memory_space<vmem>>, vector<24x128xf32>
      %357 = arith.index_cast %351 : i32 to index
      %c0_226 = arith.constant 0 : index
      %358 = vector.load %arg13[%357, %c0_226] : memref<480x128xf32, #tpu.memory_space<vmem>>, vector<24x128xf32>
      %359 = arith.index_cast %354 : i32 to index
      %c0_227 = arith.constant 0 : index
      %360 = vector.load %arg13[%359, %c0_227] : memref<480x128xf32, #tpu.memory_space<vmem>>, vector<24x128xf32>
      %361 = arith.mulf %356, %173 : vector<24x128xf32>
      %362 = arith.mulf %358, %185 : vector<24x128xf32>
      %363 = arith.addf %361, %362 : vector<24x128xf32>
      %364 = arith.mulf %360, %197 : vector<24x128xf32>
      %365 = arith.addf %363, %364 : vector<24x128xf32>
      %366 = arith.mulf %356, %177 : vector<24x128xf32>
      %367 = arith.mulf %358, %189 : vector<24x128xf32>
      %368 = arith.addf %366, %367 : vector<24x128xf32>
      %369 = arith.mulf %360, %201 : vector<24x128xf32>
      %370 = arith.addf %368, %369 : vector<24x128xf32>
      %371 = arith.mulf %356, %181 : vector<24x128xf32>
      %372 = arith.mulf %358, %193 : vector<24x128xf32>
      %373 = arith.addf %371, %372 : vector<24x128xf32>
      %374 = arith.mulf %360, %205 : vector<24x128xf32>
      %375 = arith.addf %373, %374 : vector<24x128xf32>
      %c2_i32 = arith.constant 2 : i32
      %376 = tpu.dynamic_rotate %365 by %c2_i32 dim 0 : vector<24x128xf32>, i32 -> vector<24x128xf32>
      %377 = arith.addf %209, %376 : vector<24x128xf32>
      %c1_i32_228 = arith.constant 1 : i32
      %378 = tpu.dynamic_rotate %370 by %c1_i32_228 dim 0 : vector<24x128xf32>, i32 -> vector<24x128xf32>
      %379 = arith.addf %377, %378 : vector<24x128xf32>
      %380 = arith.addf %379, %375 : vector<24x128xf32>
      %381 = arith.mulf %380, %213 : vector<24x128xf32>
      %382 = arith.index_cast %351 : i32 to index
      %c0_229 = arith.constant 0 : index
      %383 = vector.load %arg16[%382, %c0_229] : memref<528x128xf32, #tpu.memory_space<vmem>>, vector<24x128xf32>
      tpu.vector_store %arg16[%382, %c0_229], %381 {strides = array<i32>} : memref<528x128xf32, #tpu.memory_space<vmem>>, vector<24x128xf32>,
    }
    %c18_i32_121 = arith.constant 18 : i32
    %c2_122 = arith.constant 2 : index
    %c0_123 = arith.constant 0 : index
    %c0_124 = arith.constant 0 : index
    %217 = vector.load %arg5[%c2_122, %c0_123, %c0_124] : memref<4x128x128xf32, #tpu.memory_space<vmem>>, vector<1x128x128xf32>
    %218 = vector.shape_cast %217 : vector<1x128x128xf32> to vector<128x128xf32>
    %c0_125 = arith.constant 0 : index
    %c0_126 = arith.constant 0 : index
    %219 = vector.load %arg16[%c0_125, %c0_126] : memref<528x128xf32, #tpu.memory_space<vmem>>, vector<192x128xf32>
    %cst_127 = arith.constant dense<0.000000e+00> : vector<192x128xf32>
    %220 = tpu.matmul %219, %218, %cst_127 {dimension_numbers = #tpu.dot_dimension_numbers<[1], [0], [0], [1], [0, 0, 1, 1], [], []>} : vector<192x128xf32>, vector<128x128xf32>, vector<192x128xf32> -> vector<192x128xf32>
    %c3 = arith.constant 3 : index
    %c0_128 = arith.constant 0 : index
    %c0_129 = arith.constant 0 : index
    %221 = vector.load %arg8[%c3, %c0_128, %c0_129] : memref<5x192x128xf32, #tpu.memory_space<vmem>>, vector<1x192x128xf32>
    %222 = vector.shape_cast %221 : vector<1x192x128xf32> to vector<192x128xf32>
    %223 = arith.addf %220, %222 : vector<192x128xf32>
    %cst_130 = arith.constant 0.000000e+00 : f32
    %224 = vector.broadcast %cst_130 : f32 to vector<192x128xf32>
    %225 = arith.maximumf %223, %224 : vector<192x128xf32>
    %c24_131 = arith.constant 24 : index
    %c0_132 = arith.constant 0 : index
    %226 = vector.load %arg14[%c24_131, %c0_132] : memref<528x128xf32, #tpu.memory_space<vmem>>, vector<192x128xf32>
    tpu.vector_store %arg14[%c24_131, %c0_132], %225 {strides = array<i32>} : memref<528x128xf32, #tpu.memory_space<vmem>>, vector<192x128xf32>,
    %c192_133 = arith.constant 192 : index
    %c0_134 = arith.constant 0 : index
    %227 = vector.load %arg16[%c192_133, %c0_134] : memref<528x128xf32, #tpu.memory_space<vmem>>, vector<192x128xf32>
    %cst_135 = arith.constant dense<0.000000e+00> : vector<192x128xf32>
    %228 = tpu.matmul %227, %218, %cst_135 {dimension_numbers = #tpu.dot_dimension_numbers<[1], [0], [0], [1], [0, 0, 1, 1], [], []>} : vector<192x128xf32>, vector<128x128xf32>, vector<192x128xf32> -> vector<192x128xf32>
    %c3_136 = arith.constant 3 : index
    %c0_137 = arith.constant 0 : index
    %c0_138 = arith.constant 0 : index
    %229 = vector.load %arg8[%c3_136, %c0_137, %c0_138] : memref<5x192x128xf32, #tpu.memory_space<vmem>>, vector<1x192x128xf32>
    %230 = vector.shape_cast %229 : vector<1x192x128xf32> to vector<192x128xf32>
    %231 = arith.addf %228, %230 : vector<192x128xf32>
    %cst_139 = arith.constant 0.000000e+00 : f32
    %232 = vector.broadcast %cst_139 : f32 to vector<192x128xf32>
    %233 = arith.maximumf %231, %232 : vector<192x128xf32>
    %c216_140 = arith.constant 216 : index
    %c0_141 = arith.constant 0 : index
    %234 = vector.load %arg14[%c216_140, %c0_141] : memref<528x128xf32, #tpu.memory_space<vmem>>, vector<192x128xf32>
    tpu.vector_store %arg14[%c216_140, %c0_141], %233 {strides = array<i32>} : memref<528x128xf32, #tpu.memory_space<vmem>>, vector<192x128xf32>,
    %c384_142 = arith.constant 384 : index
    %c0_143 = arith.constant 0 : index
    %235 = vector.load %arg16[%c384_142, %c0_143] : memref<528x128xf32, #tpu.memory_space<vmem>>, vector<96x128xf32>
    %cst_144 = arith.constant dense<0.000000e+00> : vector<96x128xf32>
    %236 = tpu.matmul %235, %218, %cst_144 {dimension_numbers = #tpu.dot_dimension_numbers<[1], [0], [0], [1], [0, 0, 1, 1], [], []>} : vector<96x128xf32>, vector<128x128xf32>, vector<96x128xf32> -> vector<96x128xf32>
    %c3_145 = arith.constant 3 : index
    %c0_146 = arith.constant 0 : index
    %c0_147 = arith.constant 0 : index
    %237 = vector.load %arg8[%c3_145, %c0_146, %c0_147] : memref<5x192x128xf32, #tpu.memory_space<vmem>>, vector<1x96x128xf32>
    %238 = vector.shape_cast %237 : vector<1x96x128xf32> to vector<96x128xf32>
    %239 = arith.addf %236, %238 : vector<96x128xf32>
    %cst_148 = arith.constant 0.000000e+00 : f32
    %240 = vector.broadcast %cst_148 : f32 to vector<96x128xf32>
    %241 = arith.maximumf %239, %240 : vector<96x128xf32>
    %c408_149 = arith.constant 408 : index
    %c0_150 = arith.constant 0 : index
    %242 = vector.load %arg14[%c408_149, %c0_150] : memref<528x128xf32, #tpu.memory_space<vmem>>, vector<96x128xf32>
    tpu.vector_store %arg14[%c408_149, %c0_150], %241 {strides = array<i32>} : memref<528x128xf32, #tpu.memory_space<vmem>>, vector<96x128xf32>,
    %c0_151 = arith.constant 0 : index
    %c0_152 = arith.constant 0 : index
    %243 = vector.load %arg14[%c0_151, %c0_152] : memref<528x128xf32, #tpu.memory_space<vmem>>, vector<24x128xf32>
    tpu.vector_store %arg14[%c0_151, %c0_152], %0 {strides = array<i32>} : memref<528x128xf32, #tpu.memory_space<vmem>>, vector<24x128xf32>,
    %c504 = arith.constant 504 : index
    %c0_153 = arith.constant 0 : index
    %244 = vector.load %arg14[%c504, %c0_153] : memref<528x128xf32, #tpu.memory_space<vmem>>, vector<24x128xf32>
    tpu.vector_store %arg14[%c504, %c0_153], %0 {strides = array<i32>} : memref<528x128xf32, #tpu.memory_space<vmem>>, vector<24x128xf32>,
    %c3_154 = arith.constant 3 : index
    %c0_155 = arith.constant 0 : index
    %c0_156 = arith.constant 0 : index
    %245 = vector.load %arg3[%c3_154, %c0_155, %c0_156] : memref<4x9x128xf32, #tpu.memory_space<vmem>>, vector<1x9x128xf32>
    %246 = vector.shape_cast %245 : vector<1x9x128xf32> to vector<9x128xf32>
    %247 = vector.extract_strided_slice %246 {offsets = [0, 0], sizes = [1, 128], strides = [1, 1]} : vector<9x128xf32> to vector<1x128xf32>
    %248 = vector.shape_cast %247 : vector<1x128xf32> to vector<128xf32>
    %249 = vector.shape_cast %248 : vector<128xf32> to vector<1x128xf32>
    %250 = vector.broadcast %249 : vector<1x128xf32> to vector<24x128xf32>
    %251 = vector.extract_strided_slice %246 {offsets = [1, 0], sizes = [1, 128], strides = [1, 1]} : vector<9x128xf32> to vector<1x128xf32>
    %252 = vector.shape_cast %251 : vector<1x128xf32> to vector<128xf32>
    %253 = vector.shape_cast %252 : vector<128xf32> to vector<1x128xf32>
    %254 = vector.broadcast %253 : vector<1x128xf32> to vector<24x128xf32>
    %255 = vector.extract_strided_slice %246 {offsets = [2, 0], sizes = [1, 128], strides = [1, 1]} : vector<9x128xf32> to vector<1x128xf32>
    %256 = vector.shape_cast %255 : vector<1x128xf32> to vector<128xf32>
    %257 = vector.shape_cast %256 : vector<128xf32> to vector<1x128xf32>
    %258 = vector.broadcast %257 : vector<1x128xf32> to vector<24x128xf32>
    %259 = vector.extract_strided_slice %246 {offsets = [3, 0], sizes = [1, 128], strides = [1, 1]} : vector<9x128xf32> to vector<1x128xf32>
    %260 = vector.shape_cast %259 : vector<1x128xf32> to vector<128xf32>
    %261 = vector.shape_cast %260 : vector<128xf32> to vector<1x128xf32>
    %262 = vector.broadcast %261 : vector<1x128xf32> to vector<24x128xf32>
    %263 = vector.extract_strided_slice %246 {offsets = [4, 0], sizes = [1, 128], strides = [1, 1]} : vector<9x128xf32> to vector<1x128xf32>
    %264 = vector.shape_cast %263 : vector<1x128xf32> to vector<128xf32>
    %265 = vector.shape_cast %264 : vector<128xf32> to vector<1x128xf32>
    %266 = vector.broadcast %265 : vector<1x128xf32> to vector<24x128xf32>
    %267 = vector.extract_strided_slice %246 {offsets = [5, 0], sizes = [1, 128], strides = [1, 1]} : vector<9x128xf32> to vector<1x128xf32>
    %268 = vector.shape_cast %267 : vector<1x128xf32> to vector<128xf32>
    %269 = vector.shape_cast %268 : vector<128xf32> to vector<1x128xf32>
    %270 = vector.broadcast %269 : vector<1x128xf32> to vector<24x128xf32>
    %271 = vector.extract_strided_slice %246 {offsets = [6, 0], sizes = [1, 128], strides = [1, 1]} : vector<9x128xf32> to vector<1x128xf32>
    %272 = vector.shape_cast %271 : vector<1x128xf32> to vector<128xf32>
    %273 = vector.shape_cast %272 : vector<128xf32> to vector<1x128xf32>
    %274 = vector.broadcast %273 : vector<1x128xf32> to vector<24x128xf32>
    %275 = vector.extract_strided_slice %246 {offsets = [7, 0], sizes = [1, 128], strides = [1, 1]} : vector<9x128xf32> to vector<1x128xf32>
    %276 = vector.shape_cast %275 : vector<1x128xf32> to vector<128xf32>
    %277 = vector.shape_cast %276 : vector<128xf32> to vector<1x128xf32>
    %278 = vector.broadcast %277 : vector<1x128xf32> to vector<24x128xf32>
    %279 = vector.extract_strided_slice %246 {offsets = [8, 0], sizes = [1, 128], strides = [1, 1]} : vector<9x128xf32> to vector<1x128xf32>
    %280 = vector.shape_cast %279 : vector<1x128xf32> to vector<128xf32>
    %281 = vector.shape_cast %280 : vector<128xf32> to vector<1x128xf32>
    %282 = vector.broadcast %281 : vector<1x128xf32> to vector<24x128xf32>
    %c3_157 = arith.constant 3 : index
    %c0_158 = arith.constant 0 : index
    %c0_159 = arith.constant 0 : index
    %283 = vector.load %arg4[%c3_157, %c0_158, %c0_159] : memref<4x1x128xf32, #tpu.memory_space<vmem>>, vector<1x1x128xf32>
    %284 = vector.shape_cast %283 : vector<1x1x128xf32> to vector<1x128xf32>
    %285 = vector.shape_cast %284 : vector<1x128xf32> to vector<1x128xf32>
    %286 = vector.broadcast %285 : vector<1x128xf32> to vector<24x128xf32>
    %c3_160 = arith.constant 3 : index
    %c0_161 = arith.constant 0 : index
    %c0_162 = arith.constant 0 : index
    %287 = vector.load %arg9[%c3_160, %c0_161, %c0_162] : memref<4x24x1xf32, #tpu.memory_space<vmem>>, vector<1x24x1xf32>
    %288 = vector.shape_cast %287 : vector<1x24x1xf32> to vector<24x1xf32>
    %289 = vector.shape_cast %288 : vector<24x1xf32> to vector<24x1xf32>
    %290 = vector.broadcast %289 : vector<24x1xf32> to vector<24x128xf32>
    %c0_163 = arith.constant 0 : index
    %c0_164 = arith.constant 0 : index
    %291 = vector.load %arg16[%c0_163, %c0_164] : memref<528x128xf32, #tpu.memory_space<vmem>>, vector<24x128xf32>
    tpu.vector_store %arg16[%c0_163, %c0_164], %0 {strides = array<i32>} : memref<528x128xf32, #tpu.memory_space<vmem>>, vector<24x128xf32>,
    %c504_165 = arith.constant 504 : index
    %c0_166 = arith.constant 0 : index
    %292 = vector.load %arg16[%c504_165, %c0_166] : memref<528x128xf32, #tpu.memory_space<vmem>>, vector<24x128xf32>
    tpu.vector_store %arg16[%c504_165, %c0_166], %0 {strides = array<i32>} : memref<528x128xf32, #tpu.memory_space<vmem>>, vector<24x128xf32>,
    %c1_i32_167 = arith.constant 1 : i32
    %c20_i32 = arith.constant 20 : i32
    %293 = arith.addi %c1_i32_167, %c20_i32 : i32
    %c1_i32_168 = arith.constant 1 : i32
    scf.for %arg17 = %c1_i32_167 to %293 step %c1_i32_168  : i32 {
      %c1_i32_221 = arith.constant 1 : i32
      %347 = arith.subi %arg17, %c1_i32_221 : i32
      %c24_i32 = arith.constant 24 : i32
      %348 = arith.muli %347, %c24_i32 : i32
      %349 = tpu.assume_multiple %348, 8 : i32
      %c24_i32_222 = arith.constant 24 : i32
      %350 = arith.muli %arg17, %c24_i32_222 : i32
      %351 = tpu.assume_multiple %350, 8 : i32
      %c1_i32_223 = arith.constant 1 : i32
      %352 = arith.addi %arg17, %c1_i32_223 : i32
      %c24_i32_224 = arith.constant 24 : i32
      %353 = arith.muli %352, %c24_i32_224 : i32
      %354 = tpu.assume_multiple %353, 8 : i32
      %355 = arith.index_cast %349 : i32 to index
      %c0_225 = arith.constant 0 : index
      %356 = vector.load %arg14[%355, %c0_225] : memref<528x128xf32, #tpu.memory_space<vmem>>, vector<24x128xf32>
      %357 = arith.index_cast %351 : i32 to index
      %c0_226 = arith.constant 0 : index
      %358 = vector.load %arg14[%357, %c0_226] : memref<528x128xf32, #tpu.memory_space<vmem>>, vector<24x128xf32>
      %359 = arith.index_cast %354 : i32 to index
      %c0_227 = arith.constant 0 : index
      %360 = vector.load %arg14[%359, %c0_227] : memref<528x128xf32, #tpu.memory_space<vmem>>, vector<24x128xf32>
      %361 = arith.mulf %356, %250 : vector<24x128xf32>
      %362 = arith.mulf %358, %262 : vector<24x128xf32>
      %363 = arith.addf %361, %362 : vector<24x128xf32>
      %364 = arith.mulf %360, %274 : vector<24x128xf32>
      %365 = arith.addf %363, %364 : vector<24x128xf32>
      %366 = arith.mulf %356, %254 : vector<24x128xf32>
      %367 = arith.mulf %358, %266 : vector<24x128xf32>
      %368 = arith.addf %366, %367 : vector<24x128xf32>
      %369 = arith.mulf %360, %278 : vector<24x128xf32>
      %370 = arith.addf %368, %369 : vector<24x128xf32>
      %371 = arith.mulf %356, %258 : vector<24x128xf32>
      %372 = arith.mulf %358, %270 : vector<24x128xf32>
      %373 = arith.addf %371, %372 : vector<24x128xf32>
      %374 = arith.mulf %360, %282 : vector<24x128xf32>
      %375 = arith.addf %373, %374 : vector<24x128xf32>
      %c2_i32 = arith.constant 2 : i32
      %376 = tpu.dynamic_rotate %365 by %c2_i32 dim 0 : vector<24x128xf32>, i32 -> vector<24x128xf32>
      %377 = arith.addf %286, %376 : vector<24x128xf32>
      %c1_i32_228 = arith.constant 1 : i32
      %378 = tpu.dynamic_rotate %370 by %c1_i32_228 dim 0 : vector<24x128xf32>, i32 -> vector<24x128xf32>
      %379 = arith.addf %377, %378 : vector<24x128xf32>
      %380 = arith.addf %379, %375 : vector<24x128xf32>
      %381 = arith.mulf %380, %290 : vector<24x128xf32>
      %382 = arith.index_cast %351 : i32 to index
      %c0_229 = arith.constant 0 : index
      %383 = vector.load %arg16[%382, %c0_229] : memref<528x128xf32, #tpu.memory_space<vmem>>, vector<24x128xf32>
      tpu.vector_store %arg16[%382, %c0_229], %381 {strides = array<i32>} : memref<528x128xf32, #tpu.memory_space<vmem>>, vector<24x128xf32>,
    }
    %c20_i32_169 = arith.constant 20 : i32
    %c3_170 = arith.constant 3 : index
    %c0_171 = arith.constant 0 : index
    %c0_172 = arith.constant 0 : index
    %294 = vector.load %arg5[%c3_170, %c0_171, %c0_172] : memref<4x128x128xf32, #tpu.memory_space<vmem>>, vector<1x128x128xf32>
    %295 = vector.shape_cast %294 : vector<1x128x128xf32> to vector<128x128xf32>
    %c0_173 = arith.constant 0 : index
    %c0_174 = arith.constant 0 : index
    %296 = vector.load %arg16[%c0_173, %c0_174] : memref<528x128xf32, #tpu.memory_space<vmem>>, vector<192x128xf32>
    %cst_175 = arith.constant dense<0.000000e+00> : vector<192x128xf32>
    %297 = tpu.matmul %296, %295, %cst_175 {dimension_numbers = #tpu.dot_dimension_numbers<[1], [0], [0], [1], [0, 0, 1, 1], [], []>} : vector<192x128xf32>, vector<128x128xf32>, vector<192x128xf32> -> vector<192x128xf32>
    %c4 = arith.constant 4 : index
    %c0_176 = arith.constant 0 : index
    %c0_177 = arith.constant 0 : index
    %298 = vector.load %arg8[%c4, %c0_176, %c0_177] : memref<5x192x128xf32, #tpu.memory_space<vmem>>, vector<1x192x128xf32>
    %299 = vector.shape_cast %298 : vector<1x192x128xf32> to vector<192x128xf32>
    %300 = arith.addf %297, %299 : vector<192x128xf32>
    %cst_178 = arith.constant 0.000000e+00 : f32
    %301 = vector.broadcast %cst_178 : f32 to vector<192x128xf32>
    %302 = arith.maximumf %300, %301 : vector<192x128xf32>
    %c24_179 = arith.constant 24 : index
    %c0_180 = arith.constant 0 : index
    %303 = vector.load %arg15[%c24_179, %c0_180] : memref<576x128xf32, #tpu.memory_space<vmem>>, vector<192x128xf32>
    tpu.vector_store %arg15[%c24_179, %c0_180], %302 {strides = array<i32>} : memref<576x128xf32, #tpu.memory_space<vmem>>, vector<192x128xf32>,
    %c192_181 = arith.constant 192 : index
    %c0_182 = arith.constant 0 : index
    %304 = vector.load %arg16[%c192_181, %c0_182] : memref<528x128xf32, #tpu.memory_space<vmem>>, vector<192x128xf32>
    %cst_183 = arith.constant dense<0.000000e+00> : vector<192x128xf32>
    %305 = tpu.matmul %304, %295, %cst_183 {dimension_numbers = #tpu.dot_dimension_numbers<[1], [0], [0], [1], [0, 0, 1, 1], [], []>} : vector<192x128xf32>, vector<128x128xf32>, vector<192x128xf32> -> vector<192x128xf32>
    %c4_184 = arith.constant 4 : index
    %c0_185 = arith.constant 0 : index
    %c0_186 = arith.constant 0 : index
    %306 = vector.load %arg8[%c4_184, %c0_185, %c0_186] : memref<5x192x128xf32, #tpu.memory_space<vmem>>, vector<1x192x128xf32>
    %307 = vector.shape_cast %306 : vector<1x192x128xf32> to vector<192x128xf32>
    %308 = arith.addf %305, %307 : vector<192x128xf32>
    %cst_187 = arith.constant 0.000000e+00 : f32
    %309 = vector.broadcast %cst_187 : f32 to vector<192x128xf32>
    %310 = arith.maximumf %308, %309 : vector<192x128xf32>
    %c216_188 = arith.constant 216 : index
    %c0_189 = arith.constant 0 : index
    %311 = vector.load %arg15[%c216_188, %c0_189] : memref<576x128xf32, #tpu.memory_space<vmem>>, vector<192x128xf32>
    tpu.vector_store %arg15[%c216_188, %c0_189], %310 {strides = array<i32>} : memref<576x128xf32, #tpu.memory_space<vmem>>, vector<192x128xf32>,
    %c384_190 = arith.constant 384 : index
    %c0_191 = arith.constant 0 : index
    %312 = vector.load %arg16[%c384_190, %c0_191] : memref<528x128xf32, #tpu.memory_space<vmem>>, vector<144x128xf32>
    %cst_192 = arith.constant dense<0.000000e+00> : vector<144x128xf32>
    %313 = tpu.matmul %312, %295, %cst_192 {dimension_numbers = #tpu.dot_dimension_numbers<[1], [0], [0], [1], [0, 0, 1, 1], [], []>} : vector<144x128xf32>, vector<128x128xf32>, vector<144x128xf32> -> vector<144x128xf32>
    %c4_193 = arith.constant 4 : index
    %c0_194 = arith.constant 0 : index
    %c0_195 = arith.constant 0 : index
    %314 = vector.load %arg8[%c4_193, %c0_194, %c0_195] : memref<5x192x128xf32, #tpu.memory_space<vmem>>, vector<1x144x128xf32>
    %315 = vector.shape_cast %314 : vector<1x144x128xf32> to vector<144x128xf32>
    %316 = arith.addf %313, %315 : vector<144x128xf32>
    %cst_196 = arith.constant 0.000000e+00 : f32
    %317 = vector.broadcast %cst_196 : f32 to vector<144x128xf32>
    %318 = arith.maximumf %316, %317 : vector<144x128xf32>
    %c408_197 = arith.constant 408 : index
    %c0_198 = arith.constant 0 : index
    %319 = vector.load %arg15[%c408_197, %c0_198] : memref<576x128xf32, #tpu.memory_space<vmem>>, vector<144x128xf32>
    tpu.vector_store %arg15[%c408_197, %c0_198], %318 {strides = array<i32>} : memref<576x128xf32, #tpu.memory_space<vmem>>, vector<144x128xf32>,
    %c0_199 = arith.constant 0 : index
    %c0_200 = arith.constant 0 : index
    %320 = vector.load %arg15[%c0_199, %c0_200] : memref<576x128xf32, #tpu.memory_space<vmem>>, vector<24x128xf32>
    tpu.vector_store %arg15[%c0_199, %c0_200], %0 {strides = array<i32>} : memref<576x128xf32, #tpu.memory_space<vmem>>, vector<24x128xf32>,
    %c552 = arith.constant 552 : index
    %c0_201 = arith.constant 0 : index
    %321 = vector.load %arg15[%c552, %c0_201] : memref<576x128xf32, #tpu.memory_space<vmem>>, vector<24x128xf32>
    tpu.vector_store %arg15[%c552, %c0_201], %0 {strides = array<i32>} : memref<576x128xf32, #tpu.memory_space<vmem>>, vector<24x128xf32>,
    %cst_202 = arith.constant 0.000000e+00 : f32
    %322 = vector.broadcast %cst_202 : f32 to vector<1x128xf32>
    %c0_203 = arith.constant 0 : index
    %c0_204 = arith.constant 0 : index
    %323 = vector.load %arg15[%c0_203, %c0_204] : memref<576x128xf32, #tpu.memory_space<vmem>>, vector<192x128xf32>
    %cst_205 = arith.constant dense<0.000000e+00> : vector<128xf32>
    %324 = vector.multi_reduction <add>, %323, %cst_205 [0] : vector<192x128xf32> to vector<128xf32>
    %325 = vector.shape_cast %324 : vector<128xf32> to vector<1x128xf32>
    %326 = arith.addf %322, %325 : vector<1x128xf32>
    %c192_206 = arith.constant 192 : index
    %c0_207 = arith.constant 0 : index
    %327 = vector.load %arg15[%c192_206, %c0_207] : memref<576x128xf32, #tpu.memory_space<vmem>>, vector<192x128xf32>
    %cst_208 = arith.constant dense<0.000000e+00> : vector<128xf32>
    %328 = vector.multi_reduction <add>, %327, %cst_208 [0] : vector<192x128xf32> to vector<128xf32>
    %329 = vector.shape_cast %328 : vector<128xf32> to vector<1x128xf32>
    %330 = arith.addf %326, %329 : vector<1x128xf32>
    %c384_209 = arith.constant 384 : index
    %c0_210 = arith.constant 0 : index
    %331 = vector.load %arg15[%c384_209, %c0_210] : memref<576x128xf32, #tpu.memory_space<vmem>>, vector<192x128xf32>
    %cst_211 = arith.constant dense<0.000000e+00> : vector<128xf32>
    %332 = vector.multi_reduction <add>, %331, %cst_211 [0] : vector<192x128xf32> to vector<128xf32>
    %333 = vector.shape_cast %332 : vector<128xf32> to vector<1x128xf32>
    %334 = arith.addf %330, %333 : vector<1x128xf32>
    %cst_212 = arith.constant 0.00206611562 : f32
    %335 = vector.broadcast %cst_212 : f32 to vector<1x128xf32>
    %336 = arith.mulf %334, %335 : vector<1x128xf32>
    %337 = vector.shape_cast %336 : vector<1x128xf32> to vector<1x128xf32>
    %338 = vector.broadcast %337 : vector<1x128xf32> to vector<8x128xf32>
    %c0_213 = arith.constant 0 : index
    %c0_214 = arith.constant 0 : index
    %339 = vector.load %arg6[%c0_213, %c0_214] : memref<128x128xf32, #tpu.memory_space<vmem>>, vector<128x128xf32>
    %cst_215 = arith.constant dense<0.000000e+00> : vector<8x128xf32>
    %340 = tpu.matmul %338, %339, %cst_215 {dimension_numbers = #tpu.dot_dimension_numbers<[1], [0], [0], [1], [0, 0, 1, 1], [], []>} : vector<8x128xf32>, vector<128x128xf32>, vector<8x128xf32> -> vector<8x128xf32>
    %341 = vector.extract_strided_slice %340 {offsets = [0, 0], sizes = [1, 128], strides = [1, 1]} : vector<8x128xf32> to vector<1x128xf32>
    %c0_216 = arith.constant 0 : index
    %c0_217 = arith.constant 0 : index
    %342 = vector.load %arg7[%c0_216, %c0_217] : memref<1x128xf32, #tpu.memory_space<vmem>>, vector<1x128xf32>
    %343 = arith.addf %341, %342 : vector<1x128xf32>
    %c0_218 = arith.constant 0 : index
    %c0_219 = arith.constant 0 : index
    %c0_220 = arith.constant 0 : index
    %344 = vector.load %arg10[%c0_218, %c0_219, %c0_220] : memref<1x1x128xf32, #tpu.memory_space<vmem>>, vector<1x1x128xf32>
    %345 = vector.shape_cast %344 : vector<1x1x128xf32> to vector<1x128xf32>
    %346 = vector.shape_cast %343 : vector<1x128xf32> to vector<1x1x128xf32>
    tpu.vector_store %arg10[%c0_218, %c0_219, %c0_220], %346 {strides = array<i32>} : memref<1x1x128xf32, #tpu.memory_space<vmem>>, vector<1x1x128xf32>,
    return
  }
  func.func @transform_0(%arg0: i32) -> (i32, i32, i32) {
    %c0_i32 = arith.constant 0 : i32
    %c0_i32_0 = arith.constant 0 : i32
    %c0_i32_1 = arith.constant 0 : i32
    return %arg0, %c0_i32, %c0_i32_0 : i32, i32, i32
  }
  func.func @transform_1(%arg0: i32) -> (i32, i32) {
    %c0_i32 = arith.constant 0 : i32
    %c0_i32_0 = arith.constant 0 : i32
    %c0_i32_1 = arith.constant 0 : i32
    return %c0_i32, %c0_i32_0 : i32, i32
  }
  func.func @transform_2(%arg0: i32) -> (i32, i32, i32) {
    %c0_i32 = arith.constant 0 : i32
    %c0_i32_0 = arith.constant 0 : i32
    %c0_i32_1 = arith.constant 0 : i32
    %c0_i32_2 = arith.constant 0 : i32
    return %c0_i32, %c0_i32_0, %c0_i32_1 : i32, i32, i32
  }
  func.func @transform_3(%arg0: i32) -> (i32, i32, i32) {
    %c0_i32 = arith.constant 0 : i32
    %c0_i32_0 = arith.constant 0 : i32
    %c0_i32_1 = arith.constant 0 : i32
    %c0_i32_2 = arith.constant 0 : i32
    return %c0_i32, %c0_i32_0, %c0_i32_1 : i32, i32, i32
  }
  func.func @transform_4(%arg0: i32) -> (i32, i32, i32) {
    %c0_i32 = arith.constant 0 : i32
    %c0_i32_0 = arith.constant 0 : i32
    %c0_i32_1 = arith.constant 0 : i32
    %c0_i32_2 = arith.constant 0 : i32
    return %c0_i32, %c0_i32_0, %c0_i32_1 : i32, i32, i32
  }
  func.func @transform_5(%arg0: i32) -> (i32, i32) {
    %c0_i32 = arith.constant 0 : i32
    %c0_i32_0 = arith.constant 0 : i32
    %c0_i32_1 = arith.constant 0 : i32
    return %c0_i32, %c0_i32_0 : i32, i32
  }
  func.func @transform_6(%arg0: i32) -> (i32, i32) {
    %c0_i32 = arith.constant 0 : i32
    %c0_i32_0 = arith.constant 0 : i32
    %c0_i32_1 = arith.constant 0 : i32
    return %c0_i32, %c0_i32_0 : i32, i32
  }
  func.func @transform_7(%arg0: i32) -> (i32, i32, i32) {
    %c0_i32 = arith.constant 0 : i32
    %c0_i32_0 = arith.constant 0 : i32
    %c0_i32_1 = arith.constant 0 : i32
    %c0_i32_2 = arith.constant 0 : i32
    return %c0_i32, %c0_i32_0, %c0_i32_1 : i32, i32, i32
  }
  func.func @transform_8(%arg0: i32) -> (i32, i32, i32) {
    %c0_i32 = arith.constant 0 : i32
    %c0_i32_0 = arith.constant 0 : i32
    %c0_i32_1 = arith.constant 0 : i32
    %c0_i32_2 = arith.constant 0 : i32
    return %c0_i32, %c0_i32_0, %c0_i32_1 : i32, i32, i32
  }
  func.func @transform_9(%arg0: i32) -> (i32, i32, i32) {
    %c0_i32 = arith.constant 0 : i32
    %c0_i32_0 = arith.constant 0 : i32
    %c0_i32_1 = arith.constant 0 : i32
    return %arg0, %c0_i32, %c0_i32_0 : i32, i32, i32
  }
}

</mosaic_0001>

<llo_original>
// kernel: depthwise_separable_conv_forward.1
$region0: #{depthwise_separable_conv_forward.1}
  #allocation0 [shape = 'u32[]', space=smem, size = 0x4, offset = 0x4, fixed_abs, tag = 'smem constant byte address 0x4 - core index']
  #allocation1 [shape = 'u32[72,128]{1,0:T(1,128)}', space=vmem, size = 0x9000, scoped, tag = 'internal scratch']
  #allocation2 [shape = 'f32[384,128]{1,0:T(8,128)}', space=vmem, size = 0x30000, scoped, tag = 'scratch operand']
  #allocation3 [shape = 'f32[432,128]{1,0:T(8,128)}', space=vmem, size = 0x36000, scoped, tag = 'scratch operand']
  #allocation4 [shape = 'f32[480,128]{1,0:T(8,128)}', space=vmem, size = 0x3c000, scoped, tag = 'scratch operand']
  #allocation5 [shape = 'f32[528,128]{1,0:T(8,128)}', space=vmem, size = 0x42000, scoped, tag = 'scratch operand']
  #allocation6 [shape = 'f32[576,128]{1,0:T(8,128)}', space=vmem, size = 0x48000, scoped, tag = 'scratch operand']
  #allocation7 [shape = 'f32[528,128]{1,0:T(8,128)}', space=vmem, size = 0x42000, scoped, tag = 'scratch operand']
  %s0 = inlined_call_operand.vmem [shape: f32[2,336,128], index: 0, kind: input, shape index: {}]
  %s1 = inlined_call_operand.vmem [shape: f32[128,128], index: 1, kind: input, shape index: {}]
  %s2 = inlined_call_operand.vmem [shape: f32[4,9,128], index: 2, kind: input, shape index: {}]
  %s3 = inlined_call_operand.vmem [shape: f32[4,1,128], index: 3, kind: input, shape index: {}]
  %s4 = inlined_call_operand.vmem [shape: f32[4,128,128], index: 4, kind: input, shape index: {}]
  %s5 = inlined_call_operand.vmem [shape: f32[128,128], index: 5, kind: input, shape index: {}]
  %s6 = inlined_call_operand.vmem [shape: f32[1,128], index: 6, kind: input, shape index: {}]
  %s7 = inlined_call_operand.vmem [shape: f32[5,192,128], index: 7, kind: input, shape index: {}]
  %s8 = inlined_call_operand.vmem [shape: f32[4,24,1], index: 8, kind: input, shape index: {}]
  %s9 = inlined_call_operand.hbm [shape: f32[2,1,128], index: 9, kind: output, shape index: {}]
  %s10 = sld [smem:[#allocation0]]
  $region97: #{depthwise_separable_conv_forward.1} parent=0
    _
  %s12 = ssub.s32 1, %s10
  %s13 = scalar_select 0, %s12, %s10
  $region1: #{depthwise_separable_conv_forward.1} parent=0
    #allocation8 [shape = 'u8[1024]{0}', space=vmem, size = 0x400, scoped, tag = 'output window, operand 0']
    #allocation9 [shape = 's32[2]{0}', space=sflag, size = 0x8, scoped, tag = 'scoped memory for depthwise_separable_conv_forward.1']
    %14 = vsyncpa [#allocation9], 0
    %s15 = scalar_lea.sflag [#allocation9], 1
    %16 = vsyncpa %s15, 0
    loop: start=0, step=1, limit=4
    $region2: #{depthwise_separable_conv_forward.1} parent=1 // loop_pre_header
      _
    $region3: #{depthwise_separable_conv_forward.1} parent=1 // loop_header
      %s18 = sphi 0, %s22
      %p19 = scmp.ge.s32.totalorder %s18, 4
      %s28 = sphi 0, %s30
      %s31 = sphi 0, %s28
      %s32 = sphi 0, %s31
      %s48 = sphi 0, %s32
      %s52 = sphi 0, %s52
      %s54 = sphi 0, %s52
      %s55 = sphi 0, %s54
      %s69 = sphi 0, %s55
      %s73 = sphi 0, %s73
      %s75 = sphi 0, %s73
      %s76 = sphi 0, %s75
      %s90 = sphi 0, %s76
      %s94 = sphi 0, %s94
      %s96 = sphi 0, %s94
      %s97 = sphi 0, %s96
      %s111 = sphi 0, %s97
      %s115 = sphi 0, %s115
      %s117 = sphi 0, %s115
      %s118 = sphi 0, %s117
      %s132 = sphi 0, %s118
      %s136 = sphi 0, %s136
      %s138 = sphi 0, %s136
      %s139 = sphi 0, %s138
      %s153 = sphi 0, %s139
      %s157 = sphi 0, %s157
      %s159 = sphi 0, %s157
      %s160 = sphi 0, %s159
      %s174 = sphi 0, %s160
      %s178 = sphi 0, %s178
      %s180 = sphi 0, %s178
      %s181 = sphi 0, %s180
      %s195 = sphi 0, %s181
      %s199 = sphi 0, %s199
      %s201 = sphi 0, %s199
      %s202 = sphi 0, %s201
      %s216 = sphi 0, %s202
      %s222 = sphi 0, %s224
      %s225 = sphi 0, %s222
      %s226 = sphi 0, %s225
      %s242 = sphi 0, %s226
    $region4: #{depthwise_separable_conv_forward.1} parent=1 // loop_header_branch
      %21 = sbr.rel (%p19) target = $region8
    $region5: #{depthwise_separable_conv_forward.1} parent=1 // loop_body
      %s23 = ssub.s32 %s18, 1
      %s24 = ssub.s32 %s18, 2
      %s25 = sadd.s32 %s18, 1
      %s26 = ssub.s32 %s18, %s25
      %p27 = scmp.eq.s32.totalorder %s26, 0
      %s29 = sadd.s32 %s28, 1
      %s30 = scalar_select %p27, %s28, %s29
      %p33 = pneg %p27
      %p34 = scmp.eq.s32.totalorder %s18, 1
      %p35 = por %p33, %p34
      %p36 = scmp.ne.s32.totalorder %s28, %s31
      %p37 = scmp.eq.s32.totalorder %s18, 0
      %p38 = por %p36, %p37
      %p39 = scmp.ne.s32.totalorder %s28, %s31
      %p40 = scmp.eq.s32.totalorder %s23, 1
      %p41 = por %p39, %p40
      %p42 = scmp.ne.s32.totalorder %s31, %s32
      %p43 = scmp.eq.s32.totalorder %s23, 0
      %p44 = por %p42, %p43
      %p45 = scmp.ne.s32.totalorder %s31, %s32
      %p46 = scmp.eq.s32.totalorder %s24, 1
      %p47 = por %p45, %p46
      %p49 = scmp.ne.s32.totalorder %s32, %s48
      %p50 = scmp.eq.s32.totalorder %s24, 0
      %p51 = por %p49, %p50
      %s53 = sadd.s32 %s52, 1
      %p56 = scmp.eq.s32.totalorder %s18, 1
      %p57 = scmp.ne.s32.totalorder %s52, %s54
      %p58 = scmp.eq.s32.totalorder %s18, 0
      %p59 = por %p57, %p58
      %p60 = scmp.ne.s32.totalorder %s52, %s54
      %p61 = scmp.eq.s32.totalorder %s23, 1
      %p62 = por %p60, %p61
      %p63 = scmp.ne.s32.totalorder %s54, %s55
      %p64 = scmp.eq.s32.totalorder %s23, 0
      %p65 = por %p63, %p64
      %p66 = scmp.ne.s32.totalorder %s54, %s55
      %p67 = scmp.eq.s32.totalorder %s24, 1
      %p68 = por %p66, %p67
      %p70 = scmp.ne.s32.totalorder %s55, %s69
      %p71 = scmp.eq.s32.totalorder %s24, 0
      %p72 = por %p70, %p71
      %s74 = sadd.s32 %s73, 1
      %p77 = scmp.eq.s32.totalorder %s18, 1
      %p78 = scmp.ne.s32.totalorder %s73, %s75
      %p79 = scmp.eq.s32.totalorder %s18, 0
      %p80 = por %p78, %p79
      %p81 = scmp.ne.s32.totalorder %s73, %s75
      %p82 = scmp.eq.s32.totalorder %s23, 1
      %p83 = por %p81, %p82
      %p84 = scmp.ne.s32.totalorder %s75, %s76
      %p85 = scmp.eq.s32.totalorder %s23, 0
      %p86 = por %p84, %p85
      %p87 = scmp.ne.s32.totalorder %s75, %s76
      %p88 = scmp.eq.s32.totalorder %s24, 1
      %p89 = por %p87, %p88
      %p91 = scmp.ne.s32.totalorder %s76, %s90
      %p92 = scmp.eq.s32.totalorder %s24, 0
      %p93 = por %p91, %p92
      %s95 = sadd.s32 %s94, 1
      %p98 = scmp.eq.s32.totalorder %s18, 1
      %p99 = scmp.ne.s32.totalorder %s94, %s96
      %p100 = scmp.eq.s32.totalorder %s18, 0
      %p101 = por %p99, %p100
      %p102 = scmp.ne.s32.totalorder %s94, %s96
      %p103 = scmp.eq.s32.totalorder %s23, 1
      %p104 = por %p102, %p103
      %p105 = scmp.ne.s32.totalorder %s96, %s97
      %p106 = scmp.eq.s32.totalorder %s23, 0
      %p107 = por %p105, %p106
      %p108 = scmp.ne.s32.totalorder %s96, %s97
      %p109 = scmp.eq.s32.totalorder %s24, 1
      %p110 = por %p108, %p109
      %p112 = scmp.ne.s32.totalorder %s97, %s111
      %p113 = scmp.eq.s32.totalorder %s24, 0
      %p114 = por %p112, %p113
      %s116 = sadd.s32 %s115, 1
      %p119 = scmp.eq.s32.totalorder %s18, 1
      %p120 = scmp.ne.s32.totalorder %s115, %s117
      %p121 = scmp.eq.s32.totalorder %s18, 0
      %p122 = por %p120, %p121
      %p123 = scmp.ne.s32.totalorder %s115, %s117
      %p124 = scmp.eq.s32.totalorder %s23, 1
      %p125 = por %p123, %p124
      %p126 = scmp.ne.s32.totalorder %s117, %s118
      %p127 = scmp.eq.s32.totalorder %s23, 0
      %p128 = por %p126, %p127
      %p129 = scmp.ne.s32.totalorder %s117, %s118
      %p130 = scmp.eq.s32.totalorder %s24, 1
      %p131 = por %p129, %p130
      %p133 = scmp.ne.s32.totalorder %s118, %s132
      %p134 = scmp.eq.s32.totalorder %s24, 0
      %p135 = por %p133, %p134
      %s137 = sadd.s32 %s136, 1
      %p140 = scmp.eq.s32.totalorder %s18, 1
      %p141 = scmp.ne.s32.totalorder %s136, %s138
      %p142 = scmp.eq.s32.totalorder %s18, 0
      %p143 = por %p141, %p142
      %p144 = scmp.ne.s32.totalorder %s136, %s138
      %p145 = scmp.eq.s32.totalorder %s23, 1
      %p146 = por %p144, %p145
      %p147 = scmp.ne.s32.totalorder %s138, %s139
      %p148 = scmp.eq.s32.totalorder %s23, 0
      %p149 = por %p147, %p148
      %p150 = scmp.ne.s32.totalorder %s138, %s139
      %p151 = scmp.eq.s32.totalorder %s24, 1
      %p152 = por %p150, %p151
      %p154 = scmp.ne.s32.totalorder %s139, %s153
      %p155 = scmp.eq.s32.totalorder %s24, 0
      %p156 = por %p154, %p155
      %s158 = sadd.s32 %s157, 1
      %p161 = scmp.eq.s32.totalorder %s18, 1
      %p162 = scmp.ne.s32.totalorder %s157, %s159
      %p163 = scmp.eq.s32.totalorder %s18, 0
      %p164 = por %p162, %p163
      %p165 = scmp.ne.s32.totalorder %s157, %s159
      %p166 = scmp.eq.s32.totalorder %s23, 1
      %p167 = por %p165, %p166
      %p168 = scmp.ne.s32.totalorder %s159, %s160
      %p169 = scmp.eq.s32.totalorder %s23, 0
      %p170 = por %p168, %p169
      %p171 = scmp.ne.s32.totalorder %s159, %s160
      %p172 = scmp.eq.s32.totalorder %s24, 1
      %p173 = por %p171, %p172
      %p175 = scmp.ne.s32.totalorder %s160, %s174
      %p176 = scmp.eq.s32.totalorder %s24, 0
      %p177 = por %p175, %p176
      %s179 = sadd.s32 %s178, 1
      %p182 = scmp.eq.s32.totalorder %s18, 1
      %p183 = scmp.ne.s32.totalorder %s178, %s180
      %p184 = scmp.eq.s32.totalorder %s18, 0
      %p185 = por %p183, %p184
      %p186 = scmp.ne.s32.totalorder %s178, %s180
      %p187 = scmp.eq.s32.totalorder %s23, 1
      %p188 = por %p186, %p187
      %p189 = scmp.ne.s32.totalorder %s180, %s181
      %p190 = scmp.eq.s32.totalorder %s23, 0
      %p191 = por %p189, %p190
      %p192 = scmp.ne.s32.totalorder %s180, %s181
      %p193 = scmp.eq.s32.totalorder %s24, 1
      %p194 = por %p192, %p193
      %p196 = scmp.ne.s32.totalorder %s181, %s195
      %p197 = scmp.eq.s32.totalorder %s24, 0
      %p198 = por %p196, %p197
      %s200 = sadd.s32 %s199, 1
      %p203 = scmp.eq.s32.totalorder %s18, 1
      %p204 = scmp.ne.s32.totalorder %s199, %s201
      %p205 = scmp.eq.s32.totalorder %s18, 0
      %p206 = por %p204, %p205
      %p207 = scmp.ne.s32.totalorder %s199, %s201
      %p208 = scmp.eq.s32.totalorder %s23, 1
      %p209 = por %p207, %p208
      %p210 = scmp.ne.s32.totalorder %s201, %s202
      %p211 = scmp.eq.s32.totalorder %s23, 0
      %p212 = por %p210, %p211
      %p213 = scmp.ne.s32.totalorder %s201, %s202
      %p214 = scmp.eq.s32.totalorder %s24, 1
      %p215 = por %p213, %p214
      %p217 = scmp.ne.s32.totalorder %s202, %s216
      %p218 = scmp.eq.s32.totalorder %s24, 0
      %p219 = por %p217, %p218
      %s220 = ssub.s32 %s18, %s25
      %p221 = scmp.eq.s32.totalorder %s220, 0
      %s223 = sadd.s32 %s222, 1
      %s224 = scalar_select %p221, %s222, %s223
      %p227 = pneg %p221
      %p228 = scmp.eq.s32.totalorder %s18, 1
      %p229 = por %p227, %p228
      %p230 = scmp.ne.s32.totalorder %s222, %s225
      %p231 = scmp.eq.s32.totalorder %s18, 0
      %p232 = por %p230, %p231
      %p233 = scmp.ne.s32.totalorder %s222, %s225
      %p234 = scmp.eq.s32.totalorder %s23, 1
      %p235 = por %p233, %p234
      %p236 = scmp.ne.s32.totalorder %s225, %s226
      %p237 = scmp.eq.s32.totalorder %s23, 0
      %p238 = por %p236, %p237
      %p239 = scmp.ne.s32.totalorder %s225, %s226
      %p240 = scmp.eq.s32.totalorder %s24, 1
      %p241 = por %p239, %p240
      %p243 = scmp.ne.s32.totalorder %s226, %s242
      %p244 = scmp.eq.s32.totalorder %s24, 0
      %p245 = por %p243, %p244
      %p246 = scmp.le.s32.totalorder 1, %s18
      %p247 = scmp.lt.s32.totalorder %s18, 3
      %p248 = pnand %p246, %p247
      %p249 = pneg %p248
      // Predicated region
      $region9: #{depthwise_separable_conv_forward.1} parent=5 // pred_check
        _
      $region10: #{depthwise_separable_conv_forward.1} parent=5 // pred_check_branch
        %251 = sbr.rel (%p248) target = $region12
      $region11: #{depthwise_separable_conv_forward.1} parent=5 // pred_region
        %s252 = ssub.s32 %s18, 1
        // Predicated region
        $region13: #{depthwise_separable_conv_forward.1} parent=11 // pred_check
          %p253 = pneg %p65
        $region14: #{depthwise_separable_conv_forward.1} parent=11 // pred_check_branch
          %255 = sbr.rel (%p253) target = $region16
        $region15: #{depthwise_separable_conv_forward.1} parent=11 // pred_region
          _
        $region16: #{depthwise_separable_conv_forward.1} parent=11 // pred_fallthru
          _
        // Predicated region
        $region17: #{depthwise_separable_conv_forward.1} parent=11 // pred_check
          %p256 = pneg %p86
        $region18: #{depthwise_separable_conv_forward.1} parent=11 // pred_check_branch
          %258 = sbr.rel (%p256) target = $region20
        $region19: #{depthwise_separable_conv_forward.1} parent=11 // pred_region
          _
        $region20: #{depthwise_separable_conv_forward.1} parent=11 // pred_fallthru
          _
        // Predicated region
        $region21: #{depthwise_separable_conv_forward.1} parent=11 // pred_check
          %p259 = pneg %p107
        $region22: #{depthwise_separable_conv_forward.1} parent=11 // pred_check_branch
          %261 = sbr.rel (%p259) target = $region24
        $region23: #{depthwise_separable_conv_forward.1} parent=11 // pred_region
          _
        $region24: #{depthwise_separable_conv_forward.1} parent=11 // pred_fallthru
          _
        // Predicated region
        $region25: #{depthwise_separable_conv_forward.1} parent=11 // pred_check
          %p262 = pneg %p128
        $region26: #{depthwise_separable_conv_forward.1} parent=11 // pred_check_branch
          %264 = sbr.rel (%p262) target = $region28
        $region27: #{depthwise_separable_conv_forward.1} parent=11 // pred_region
          _
        $region28: #{depthwise_separable_conv_forward.1} parent=11 // pred_fallthru
          _
        // Predicated region
        $region29: #{depthwise_separable_conv_forward.1} parent=11 // pred_check
          %p265 = pneg %p149
        $region30: #{depthwise_separable_conv_forward.1} parent=11 // pred_check_branch
          %267 = sbr.rel (%p265) target = $region32
        $region31: #{depthwise_separable_conv_forward.1} parent=11 // pred_region
          _
        $region32: #{depthwise_separable_conv_forward.1} parent=11 // pred_fallthru
          _
        // Predicated region
        $region33: #{depthwise_separable_conv_forward.1} parent=11 // pred_check
          %p268 = pneg %p170
        $region34: #{depthwise_separable_conv_forward.1} parent=11 // pred_check_branch
          %270 = sbr.rel (%p268) target = $region36
        $region35: #{depthwise_separable_conv_forward.1} parent=11 // pred_region
          _
        $region36: #{depthwise_separable_conv_forward.1} parent=11 // pred_fallthru
          _
        // Predicated region
        $region37: #{depthwise_separable_conv_forward.1} parent=11 // pred_check
          %p271 = pneg %p191
        $region38: #{depthwise_separable_conv_forward.1} parent=11 // pred_check_branch
          %273 = sbr.rel (%p271) target = $region40
        $region39: #{depthwise_separable_conv_forward.1} parent=11 // pred_region
          _
        $region40: #{depthwise_separable_conv_forward.1} parent=11 // pred_fallthru
          _
        // Predicated region
        $region41: #{depthwise_separable_conv_forward.1} parent=11 // pred_check
          %p274 = pneg %p212
        $region42: #{depthwise_separable_conv_forward.1} parent=11 // pred_check_branch
          %276 = sbr.rel (%p274) target = $region44
        $region43: #{depthwise_separable_conv_forward.1} parent=11 // pred_region
          _
        $region44: #{depthwise_separable_conv_forward.1} parent=11 // pred_fallthru
          _
      $region12: #{depthwise_separable_conv_forward.1} parent=5 // pred_fallthru
        _
      %p277 = scmp.lt.s32.totalorder %s18, 2
      // Predicated region
      $region45: #{depthwise_separable_conv_forward.1} parent=5 // pred_check
        %p278 = pneg %p277
      $region46: #{depthwise_separable_conv_forward.1} parent=5 // pred_check_branch
        %280 = sbr.rel (%p278) target = $region48
      $region47: #{depthwise_separable_conv_forward.1} parent=5 // pred_region
        // Predicated region
        $region49: #{depthwise_separable_conv_forward.1} parent=47 // pred_check
          %p281 = pneg %p38
        $region50: #{depthwise_separable_conv_forward.1} parent=47 // pred_check_branch
          %283 = sbr.rel (%p281) target = $region52
        $region51: #{depthwise_separable_conv_forward.1} parent=47 // pred_region
          %p284 = scmp.lt.s32.totalorder %s18, 1
          %s285 = scalar_select %p284, %s18, 1
          %s286 = smul.addr %s285, 42
          %s287 = smul.addr %s286, 8
          %s288 = scalar_lea.vmem %s0, %s287
        $region52: #{depthwise_separable_conv_forward.1} parent=47 // pred_fallthru
          _
      $region48: #{depthwise_separable_conv_forward.1} parent=5 // pred_fallthru
        _
      %p289 = scmp.le.s32.totalorder 1, %s18
      %p290 = scmp.lt.s32.totalorder %s18, 3
      %p291 = pnand %p289, %p290
      %p292 = pneg %p291
      // Predicated region
      $region53: #{depthwise_separable_conv_forward.1} parent=5 // pred_check
        _
      $region54: #{depthwise_separable_conv_forward.1} parent=5 // pred_check_branch
        %294 = sbr.rel (%p291) target = $region56
      $region55: #{depthwise_separable_conv_forward.1} parent=5 // pred_region
        %s295 = ssub.s32 %s18, 1
        %p296 = scmp.lt.s32.totalorder %s23, 1
        %s297 = scalar_select %p296, %s23, 1
        %s298 = smul.addr %s297, 42
        %s299 = smul.addr %s298, 8
        %s300 = scalar_lea.vmem %s0, %s299
        %p301 = pneg %p44
        %p302 = pneg %p41
        %p303 = pneg %p65
        %p304 = pneg %p62
        %p305 = pneg %p86
        %p306 = pneg %p83
        %p307 = pneg %p107
        %p308 = pneg %p104
        %p309 = pneg %p128
        %p310 = pneg %p125
        %p311 = pneg %p149
        %p312 = pneg %p146
        %p313 = pneg %p170
        %p314 = pneg %p167
        %p315 = pneg %p191
        %p316 = pneg %p188
        %p317 = pneg %p212
        %p318 = pneg %p209
        %p319 = pneg %p238
        %p320 = pneg %p235
        %s321 = sand.u32 %s225, 1
        %s322 = scalar_lea.sflag [#allocation9], %s321
        %s323 = sand.u32 %s225, 1
        %s324 = scalar_lea.vmem [#allocation8], %s323
        %p325 = scmp.lt.s32.totalorder %s23, 1
        %s326 = scalar_select %p325, %s23, 1
        %s327 = smul.addr %s326, 42
        %s328 = smul.addr %s327, 8
        %s329 = scalar_lea.vmem %s0, %s328
        %v330 = vld [vmem:[%s1] sm:$0xff]
        %v331 = vld [vmem:[%s1 + $0x8] sm:$0xff]
        %v332 = vld [vmem:[%s1 + $0x10] sm:$0xff]
        %v333 = vld [vmem:[%s1 + $0x18] sm:$0xff]
        %v334 = vld [vmem:[%s1 + $0x20] sm:$0xff]
        %v335 = vld [vmem:[%s1 + $0x28] sm:$0xff]
        %v336 = vld [vmem:[%s1 + $0x30] sm:$0xff]
        %v337 = vld [vmem:[%s1 + $0x38] sm:$0xff]
        %v338 = vld [vmem:[%s1 + $0x40] sm:$0xff]
        %v339 = vld [vmem:[%s1 + $0x48] sm:$0xff]
        %v340 = vld [vmem:[%s1 + $0x50] sm:$0xff]
        %v341 = vld [vmem:[%s1 + $0x58] sm:$0xff]
        %v342 = vld [vmem:[%s1 + $0x60] sm:$0xff]
        %v343 = vld [vmem:[%s1 + $0x68] sm:$0xff]
        %v344 = vld [vmem:[%s1 + $0x70] sm:$0xff]
        %v345 = vld [vmem:[%s1 + $0x78] sm:$0xff]
        %v346 = vld [vmem:[%s329] sm:$0xff]
        %v347 = vld [vmem:[%s329 + $0x8] sm:$0xff]
        %v348 = vld [vmem:[%s329 + $0x10] sm:$0xff]
        %v349 = vld [vmem:[%s329 + $0x18] sm:$0xff]
        %v350 = vld [vmem:[%s329 + $0x20] sm:$0xff]
        %v351 = vld [vmem:[%s329 + $0x28] sm:$0xff]
        %v352 = vld [vmem:[%s329 + $0x30] sm:$0xff]
        %v353 = vld [vmem:[%s329 + $0x38] sm:$0xff]
        %v354 = vld [vmem:[%s329 + $0x40] sm:$0xff]
        %v355 = vld [vmem:[%s329 + $0x48] sm:$0xff]
        %v356 = vld [vmem:[%s329 + $0x50] sm:$0xff]
        %v357 = vld [vmem:[%s329 + $0x58] sm:$0xff]
        %v358 = vld [vmem:[%s329 + $0x60] sm:$0xff]
        %v359 = vld [vmem:[%s329 + $0x68] sm:$0xff]
        %v360 = vld [vmem:[%s329 + $0x70] sm:$0xff]
        %v361 = vld [vmem:[%s329 + $0x78] sm:$0xff]
        %v362 = vld [vmem:[%s329 + $0x80] sm:$0xff]
        %v363 = vld [vmem:[%s329 + $0x88] sm:$0xff]
        %v364 = vld [vmem:[%s329 + $0x90] sm:$0xff]
        %v365 = vld [vmem:[%s329 + $0x98] sm:$0xff]
        %v366 = vld [vmem:[%s329 + $0xa0] sm:$0xff]
        %v367 = vld [vmem:[%s329 + $0xa8] sm:$0xff]
        %v368 = vld [vmem:[%s329 + $0xb0] sm:$0xff]
        %v369 = vld [vmem:[%s329 + $0xb8] sm:$0xff]
        %v370 = vld [vmem:[%s7] sm:$0xff]
        %v371 = vld [vmem:[%s7 + $0x8] sm:$0xff]
        %v372 = vld [vmem:[%s7 + $0x10] sm:$0xff]
        %v373 = vld [vmem:[%s7 + $0x18] sm:$0xff]
        %v374 = vld [vmem:[%s7 + $0x20] sm:$0xff]
        %v375 = vld [vmem:[%s7 + $0x28] sm:$0xff]
        %v376 = vld [vmem:[%s7 + $0x30] sm:$0xff]
        %v377 = vld [vmem:[%s7 + $0x38] sm:$0xff]
        %v378 = vld [vmem:[%s7 + $0x40] sm:$0xff]
        %v379 = vld [vmem:[%s7 + $0x48] sm:$0xff]
        %v380 = vld [vmem:[%s7 + $0x50] sm:$0xff]
        %v381 = vld [vmem:[%s7 + $0x58] sm:$0xff]
        %v382 = vld [vmem:[%s7 + $0x60] sm:$0xff]
        %v383 = vld [vmem:[%s7 + $0x68] sm:$0xff]
        %v384 = vld [vmem:[%s7 + $0x70] sm:$0xff]
        %v385 = vld [vmem:[%s7 + $0x78] sm:$0xff]
        %v386 = vld [vmem:[%s7 + $0x80] sm:$0xff]
        %v387 = vld [vmem:[%s7 + $0x88] sm:$0xff]
        %v388 = vld [vmem:[%s7 + $0x90] sm:$0xff]
        %v389 = vld [vmem:[%s7 + $0x98] sm:$0xff]
        %v390 = vld [vmem:[%s7 + $0xa0] sm:$0xff]
        %v391 = vld [vmem:[%s7 + $0xa8] sm:$0xff]
        %v392 = vld [vmem:[%s7 + $0xb0] sm:$0xff]
        %v393 = vld [vmem:[%s7 + $0xb8] sm:$0xff]
        %394 = vmatpush.msra.mxu0 %v345
        %395 = vmatpush.msra.mxu0 %v344
        %396 = vmatpush.msra.mxu0 %v343
        %397 = vmatpush.msra.mxu0 %v342
        %398 = vmatpush.msra.mxu0 %v341
        %399 = vmatpush.msra.mxu0 %v340
        %400 = vmatpush.msra.mxu0 %v339
        %401 = vmatpush.msra.mxu0 %v338
        %402 = vmatpush.msra.mxu0 %v337
        %403 = vmatpush.msra.mxu0 %v336
        %404 = vmatpush.msra.mxu0 %v335
        %405 = vmatpush.msra.mxu0 %v334
        %406 = vmatpush.msra.mxu0 %v333
        %407 = vmatpush.msra.mxu0 %v332
        %408 = vmatpush.msra.mxu0 %v331
        %409 = vmatpush.msra.mxu0 %v330
        %410 = vmatmul.f32.gmra.mxu0 %v346
        %v411 = vpop.f32.mrf.mxu0
        %v412 = vadd.f32 %v370, %v411
        %413 = vmatmul.f32.gmra.mxu0 %v347
        %v414 = vpop.f32.mrf.mxu0
        %v415 = vadd.f32 %v371, %v414
        %416 = vmatmul.f32.gmra.mxu0 %v348
        %v417 = vpop.f32.mrf.mxu0
        %v418 = vadd.f32 %v372, %v417
        %419 = vmatmul.f32.gmra.mxu0 %v349
        %v420 = vpop.f32.mrf.mxu0
        %v421 = vadd.f32 %v373, %v420
        %422 = vmatmul.f32.gmra.mxu0 %v350
        %v423 = vpop.f32.mrf.mxu0
        %v424 = vadd.f32 %v374, %v423
        %425 = vmatmul.f32.gmra.mxu0 %v351
        %v426 = vpop.f32.mrf.mxu0
        %v427 = vadd.f32 %v375, %v426
        %428 = vmatmul.f32.gmra.mxu0 %v352
        %v429 = vpop.f32.mrf.mxu0
        %v430 = vadd.f32 %v376, %v429
        %431 = vmatmul.f32.gmra.mxu0 %v353
        %v432 = vpop.f32.mrf.mxu0
        %v433 = vadd.f32 %v377, %v432
        %434 = vmatmul.f32.gmra.mxu0 %v354
        %v435 = vpop.f32.mrf.mxu0
        %v436 = vadd.f32 %v378, %v435
        %437 = vmatmul.f32.gmra.mxu0 %v355
        %v438 = vpop.f32.mrf.mxu0
        %v439 = vadd.f32 %v379, %v438
        %440 = vmatmul.f32.gmra.mxu0 %v356
        %v441 = vpop.f32.mrf.mxu0
        %v442 = vadd.f32 %v380, %v441
        %443 = vmatmul.f32.gmra.mxu0 %v357
        %v444 = vpop.f32.mrf.mxu0
        %v445 = vadd.f32 %v381, %v444
        %446 = vmatmul.f32.gmra.mxu0 %v358
        %v447 = vpop.f32.mrf.mxu0
        %v448 = vadd.f32 %v382, %v447
        %449 = vmatmul.f32.gmra.mxu0 %v359
        %v450 = vpop.f32.mrf.mxu0
        %v451 = vadd.f32 %v383, %v450
        %452 = vmatmul.f32.gmra.mxu0 %v360
        %v453 = vpop.f32.mrf.mxu0
        %v454 = vadd.f32 %v384, %v453
        %455 = vmatmul.f32.gmra.mxu0 %v361
        %v456 = vpop.f32.mrf.mxu0
        %v457 = vadd.f32 %v385, %v456
        %458 = vmatmul.f32.gmra.mxu0 %v362
        %v459 = vpop.f32.mrf.mxu0
        %v460 = vadd.f32 %v386, %v459
        %461 = vmatmul.f32.gmra.mxu0 %v363
        %v462 = vpop.f32.mrf.mxu0
        %v463 = vadd.f32 %v387, %v462
        %464 = vmatmul.f32.gmra.mxu0 %v364
        %v465 = vpop.f32.mrf.mxu0
        %v466 = vadd.f32 %v388, %v465
        %467 = vmatmul.f32.gmra.mxu0 %v365
        %v468 = vpop.f32.mrf.mxu0
        %v469 = vadd.f32 %v389, %v468
        %470 = vmatmul.f32.gmra.mxu0 %v366
        %v471 = vpop.f32.mrf.mxu0
        %v472 = vadd.f32 %v390, %v471
        %473 = vmatmul.f32.gmra.mxu0 %v367
        %v474 = vpop.f32.mrf.mxu0
        %v475 = vadd.f32 %v391, %v474
        %476 = vmatmul.f32.gmra.mxu0 %v368
        %v477 = vpop.f32.mrf.mxu0
        %v478 = vadd.f32 %v392, %v477
        %479 = vmatmul.f32.gmra.mxu0 %v369
        %v480 = vpop.f32.mrf.mxu0
        %v481 = vadd.f32 %v393, %v480
        %482 = vdwg.mxu0
        %v483 = vmax.f32 %v412, 0.0
        %v484 = vmax.f32 %v415, 0.0
        %v485 = vmax.f32 %v418, 0.0
        %v486 = vmax.f32 %v421, 0.0
        %v487 = vmax.f32 %v424, 0.0
        %v488 = vmax.f32 %v427, 0.0
        %v489 = vmax.f32 %v430, 0.0
        %v490 = vmax.f32 %v433, 0.0
        %v491 = vmax.f32 %v436, 0.0
        %v492 = vmax.f32 %v439, 0.0
        %v493 = vmax.f32 %v442, 0.0
        %v494 = vmax.f32 %v445, 0.0
        %v495 = vmax.f32 %v448, 0.0
        %v496 = vmax.f32 %v451, 0.0
        %v497 = vmax.f32 %v454, 0.0
        %v498 = vmax.f32 %v457, 0.0
        %v499 = vmax.f32 %v460, 0.0
        %v500 = vmax.f32 %v463, 0.0
        %v501 = vmax.f32 %v466, 0.0
        %v502 = vmax.f32 %v469, 0.0
        %v503 = vmax.f32 %v472, 0.0
        %v504 = vmax.f32 %v475, 0.0
        %v505 = vmax.f32 %v478, 0.0
        %v506 = vmax.f32 %v481, 0.0
        %507 = vst [vmem:[#allocation2 + $0x18] sm:$0xff] %v483
        %508 = vst [vmem:[#allocation2 + $0x20] sm:$0xff] %v484
        %509 = vst [vmem:[#allocation2 + $0x28] sm:$0xff] %v485
        %510 = vst [vmem:[#allocation2 + $0x30] sm:$0xff] %v486
        %511 = vst [vmem:[#allocation2 + $0x38] sm:$0xff] %v487
        %512 = vst [vmem:[#allocation2 + $0x40] sm:$0xff] %v488
        %513 = vst [vmem:[#allocation2 + $0x48] sm:$0xff] %v489
        %514 = vst [vmem:[#allocation2 + $0x50] sm:$0xff] %v490
        %515 = vst [vmem:[#allocation2 + $0x58] sm:$0xff] %v491
        %516 = vst [vmem:[#allocation2 + $0x60] sm:$0xff] %v492
        %517 = vst [vmem:[#allocation2 + $0x68] sm:$0xff] %v493
        %518 = vst [vmem:[#allocation2 + $0x70] sm:$0xff] %v494
        %519 = vst [vmem:[#allocation2 + $0x78] sm:$0xff] %v495
        %520 = vst [vmem:[#allocation2 + $0x80] sm:$0xff] %v496
        %521 = vst [vmem:[#allocation2 + $0x88] sm:$0xff] %v497
        %522 = vst [vmem:[#allocation2 + $0x90] sm:$0xff] %v498
        %523 = vst [vmem:[#allocation2 + $0x98] sm:$0xff] %v499
        %524 = vst [vmem:[#allocation2 + $0xa0] sm:$0xff] %v500
        %525 = vst [vmem:[#allocation2 + $0xa8] sm:$0xff] %v501
        %526 = vst [vmem:[#allocation2 + $0xb0] sm:$0xff] %v502
        %527 = vst [vmem:[#allocation2 + $0xb8] sm:$0xff] %v503
        %528 = vst [vmem:[#allocation2 + $0xc0] sm:$0xff] %v504
        %529 = vst [vmem:[#allocation2 + $0xc8] sm:$0xff] %v505
        %530 = vst [vmem:[#allocation2 + $0xd0] sm:$0xff] %v506
        %v531 = vld [vmem:[%s329 + $0xc0] sm:$0xff]
        %v532 = vld [vmem:[%s329 + $0xc8] sm:$0xff]
        %v533 = vld [vmem:[%s329 + $0xd0] sm:$0xff]
        %v534 = vld [vmem:[%s329 + $0xd8] sm:$0xff]
        %v535 = vld [vmem:[%s329 + $0xe0] sm:$0xff]
        %v536 = vld [vmem:[%s329 + $0xe8] sm:$0xff]
        %v537 = vld [vmem:[%s329 + $0xf0] sm:$0xff]
        %v538 = vld [vmem:[%s329 + $0xf8] sm:$0xff]
        %v539 = vld [vmem:[%s329 + $0x100] sm:$0xff]
        %v540 = vld [vmem:[%s329 + $0x108] sm:$0xff]
        %v541 = vld [vmem:[%s329 + $0x110] sm:$0xff]
        %v542 = vld [vmem:[%s329 + $0x118] sm:$0xff]
        %v543 = vld [vmem:[%s329 + $0x120] sm:$0xff]
        %v544 = vld [vmem:[%s329 + $0x128] sm:$0xff]
        %v545 = vld [vmem:[%s329 + $0x130] sm:$0xff]
        %v546 = vld [vmem:[%s329 + $0x138] sm:$0xff]
        %v547 = vld [vmem:[%s329 + $0x140] sm:$0xff]
        %v548 = vld [vmem:[%s329 + $0x148] sm:$0xff]
        %v549 = vld [vmem:[%s7] sm:$0xff]
        %v550 = vld [vmem:[%s7 + $0x8] sm:$0xff]
        %v551 = vld [vmem:[%s7 + $0x10] sm:$0xff]
        %v552 = vld [vmem:[%s7 + $0x18] sm:$0xff]
        %v553 = vld [vmem:[%s7 + $0x20] sm:$0xff]
        %v554 = vld [vmem:[%s7 + $0x28] sm:$0xff]
        %v555 = vld [vmem:[%s7 + $0x30] sm:$0xff]
        %v556 = vld [vmem:[%s7 + $0x38] sm:$0xff]
        %v557 = vld [vmem:[%s7 + $0x40] sm:$0xff]
        %v558 = vld [vmem:[%s7 + $0x48] sm:$0xff]
        %v559 = vld [vmem:[%s7 + $0x50] sm:$0xff]
        %v560 = vld [vmem:[%s7 + $0x58] sm:$0xff]
        %v561 = vld [vmem:[%s7 + $0x60] sm:$0xff]
        %v562 = vld [vmem:[%s7 + $0x68] sm:$0xff]
        %v563 = vld [vmem:[%s7 + $0x70] sm:$0xff]
        %v564 = vld [vmem:[%s7 + $0x78] sm:$0xff]
        %v565 = vld [vmem:[%s7 + $0x80] sm:$0xff]
        %v566 = vld [vmem:[%s7 + $0x88] sm:$0xff]
        %567 = vmatpush.msra.mxu0 %v345
        %568 = vmatpush.msra.mxu0 %v344
        %569 = vmatpush.msra.mxu0 %v343
        %570 = vmatpush.msra.mxu0 %v342
        %571 = vmatpush.msra.mxu0 %v341
        %572 = vmatpush.msra.mxu0 %v340
        %573 = vmatpush.msra.mxu0 %v339
        %574 = vmatpush.msra.mxu0 %v338
        %575 = vmatpush.msra.mxu0 %v337
        %576 = vmatpush.msra.mxu0 %v336
        %577 = vmatpush.msra.mxu0 %v335
        %578 = vmatpush.msra.mxu0 %v334
        %579 = vmatpush.msra.mxu0 %v333
        %580 = vmatpush.msra.mxu0 %v332
        %581 = vmatpush.msra.mxu0 %v331
        %582 = vmatpush.msra.mxu0 %v330
        %583 = vmatmul.f32.gmra.mxu0 %v531
        %v584 = vpop.f32.mrf.mxu0
        %v585 = vadd.f32 %v549, %v584
        %586 = vmatmul.f32.gmra.mxu0 %v532
        %v587 = vpop.f32.mrf.mxu0
        %v588 = vadd.f32 %v550, %v587
        %589 = vmatmul.f32.gmra.mxu0 %v533
        %v590 = vpop.f32.mrf.mxu0
        %v591 = vadd.f32 %v551, %v590
        %592 = vmatmul.f32.gmra.mxu0 %v534
        %v593 = vpop.f32.mrf.mxu0
        %v594 = vadd.f32 %v552, %v593
        %595 = vmatmul.f32.gmra.mxu0 %v535
        %v596 = vpop.f32.mrf.mxu0
        %v597 = vadd.f32 %v553, %v596
        %598 = vmatmul.f32.gmra.mxu0 %v536
        %v599 = vpop.f32.mrf.mxu0
        %v600 = vadd.f32 %v554, %v599
        %601 = vmatmul.f32.gmra.mxu0 %v537
        %v602 = vpop.f32.mrf.mxu0
        %v603 = vadd.f32 %v555, %v602
        %604 = vmatmul.f32.gmra.mxu0 %v538
        %v605 = vpop.f32.mrf.mxu0
        %v606 = vadd.f32 %v556, %v605
        %607 = vmatmul.f32.gmra.mxu0 %v539
        %v608 = vpop.f32.mrf.mxu0
        %v609 = vadd.f32 %v557, %v608
        %610 = vmatmul.f32.gmra.mxu0 %v540
        %v611 = vpop.f32.mrf.mxu0
        %v612 = vadd.f32 %v558, %v611
        %613 = vmatmul.f32.gmra.mxu0 %v541
        %v614 = vpop.f32.mrf.mxu0
        %v615 = vadd.f32 %v559, %v614
        %616 = vmatmul.f32.gmra.mxu0 %v542
        %v617 = vpop.f32.mrf.mxu0
        %v618 = vadd.f32 %v560, %v617
        %619 = vmatmul.f32.gmra.mxu0 %v543
        %v620 = vpop.f32.mrf.mxu0
        %v621 = vadd.f32 %v561, %v620
        %622 = vmatmul.f32.gmra.mxu0 %v544
        %v623 = vpop.f32.mrf.mxu0
        %v624 = vadd.f32 %v562, %v623
        %625 = vmatmul.f32.gmra.mxu0 %v545
        %v626 = vpop.f32.mrf.mxu0
        %v627 = vadd.f32 %v563, %v626
        %628 = vmatmul.f32.gmra.mxu0 %v546
        %v629 = vpop.f32.mrf.mxu0
        %v630 = vadd.f32 %v564, %v629
        %631 = vmatmul.f32.gmra.mxu0 %v547
        %v632 = vpop.f32.mrf.mxu0
        %v633 = vadd.f32 %v565, %v632
        %634 = vmatmul.f32.gmra.mxu0 %v548
        %v635 = vpop.f32.mrf.mxu0
        %v636 = vadd.f32 %v566, %v635
        %637 = vdwg.mxu0
        %v638 = vmax.f32 %v585, 0.0
        %v639 = vmax.f32 %v588, 0.0
        %v640 = vmax.f32 %v591, 0.0
        %v641 = vmax.f32 %v594, 0.0
        %v642 = vmax.f32 %v597, 0.0
        %v643 = vmax.f32 %v600, 0.0
        %v644 = vmax.f32 %v603, 0.0
        %v645 = vmax.f32 %v606, 0.0
        %v646 = vmax.f32 %v609, 0.0
        %v647 = vmax.f32 %v612, 0.0
        %v648 = vmax.f32 %v615, 0.0
        %v649 = vmax.f32 %v618, 0.0
        %v650 = vmax.f32 %v621, 0.0
        %v651 = vmax.f32 %v624, 0.0
        %v652 = vmax.f32 %v627, 0.0
        %v653 = vmax.f32 %v630, 0.0
        %v654 = vmax.f32 %v633, 0.0
        %v655 = vmax.f32 %v636, 0.0
        %656 = vst [vmem:[#allocation2 + $0xd8] sm:$0xff] %v638
        %657 = vst [vmem:[#allocation2 + $0xe0] sm:$0xff] %v639
        %658 = vst [vmem:[#allocation2 + $0xe8] sm:$0xff] %v640
        %659 = vst [vmem:[#allocation2 + $0xf0] sm:$0xff] %v641
        %660 = vst [vmem:[#allocation2 + $0xf8] sm:$0xff] %v642
        %661 = vst [vmem:[#allocation2 + $0x100] sm:$0xff] %v643
        %662 = vst [vmem:[#allocation2 + $0x108] sm:$0xff] %v644
        %663 = vst [vmem:[#allocation2 + $0x110] sm:$0xff] %v645
        %664 = vst [vmem:[#allocation2 + $0x118] sm:$0xff] %v646
        %665 = vst [vmem:[#allocation2 + $0x120] sm:$0xff] %v647
        %666 = vst [vmem:[#allocation2 + $0x128] sm:$0xff] %v648
        %667 = vst [vmem:[#allocation2 + $0x130] sm:$0xff] %v649
        %668 = vst [vmem:[#allocation2 + $0x138] sm:$0xff] %v650
        %669 = vst [vmem:[#allocation2 + $0x140] sm:$0xff] %v651
        %670 = vst [vmem:[#allocation2 + $0x148] sm:$0xff] %v652
        %671 = vst [vmem:[#allocation2 + $0x150] sm:$0xff] %v653
        %672 = vst [vmem:[#allocation2 + $0x158] sm:$0xff] %v654
        %673 = vst [vmem:[#allocation2 + $0x160] sm:$0xff] %v655
        %674 = vst [vmem:[#allocation2] sm:$0xff] 0.0
        %675 = vst [vmem:[#allocation2 + $0x8] sm:$0xff] 0.0
        %676 = vst [vmem:[#allocation2 + $0x10] sm:$0xff] 0.0
        %677 = vst [vmem:[#allocation2 + $0x168] sm:$0xff] 0.0
        %678 = vst [vmem:[#allocation2 + $0x170] sm:$0xff] 0.0
        %679 = vst [vmem:[#allocation2 + $0x178] sm:$0xff] 0.0
        %v680 = vld [vmem:[%s2] sm:$0xff]
        %v681 = vld [vmem:[%s2 + $0x8] sm:$0x1]
        %v682 = vperm.slane %v680, 0
        %v683 = vperm.slane %v680, 1
        %v684 = vperm.slane %v680, 2
        %v685 = vperm.slane %v680, 3
        %v686 = vperm.slane %v680, 4
        %v687 = vperm.slane %v680, 5
        %v688 = vperm.slane %v680, 6
        %v689 = vperm.slane %v680, 7
        %v690 = vperm.slane %v681, 0
        %v691 = vld [vmem:[%s3] sm:$0x1]
        %v693 = vperm.slane %v691, 0
        %v695 = vld [vmem:[%s8] sm:$0xff]
        %v696 = vld [vmem:[%s8 + $0x8] sm:$0xff]
        %v697 = vld [vmem:[%s8 + $0x10] sm:$0xff]
        %699 = vset.pattern.permute.xlu0 0
        %700 = vperm.xlu0 %699, %v695
        %v701 = vpop.permute.xlu0 %700
        %704 = vset.pattern.permute.xlu0 0
        %705 = vperm.xlu0 %704, %v696
        %v706 = vpop.permute.xlu0 %705
        %709 = vset.pattern.permute.xlu0 0
        %710 = vperm.xlu0 %709, %v697
        %v711 = vpop.permute.xlu0 %710
        %713 = vst [vmem:[#allocation7] sm:$0xff] 0.0
        %714 = vst [vmem:[#allocation7 + $0x8] sm:$0xff] 0.0
        %715 = vst [vmem:[#allocation7 + $0x10] sm:$0xff] 0.0
        %716 = vst [vmem:[#allocation7 + $0x168] sm:$0xff] 0.0
        %717 = vst [vmem:[#allocation7 + $0x170] sm:$0xff] 0.0
        %718 = vst [vmem:[#allocation7 + $0x178] sm:$0xff] 0.0
        loop: start=1, step=1, limit=15
        $region57: #{depthwise_separable_conv_forward.1} parent=55 // loop_pre_header
          _
        $region58: #{depthwise_separable_conv_forward.1} parent=55 // loop_header
          %s720 = sphi 1, %s724
          %p721 = scmp.ge.s32.totalorder %s720, 15
        $region59: #{depthwise_separable_conv_forward.1} parent=55 // loop_header_branch
          %723 = sbr.rel (%p721) target = $region63
        $region60: #{depthwise_separable_conv_forward.1} parent=55 // loop_body
          %s725 = ssub.s32 %s720, 1
          %s726 = smul.u32 %s725, 24
          %s727 = smul.u32 %s720, 24
          %s728 = sadd.s32 %s720, 1
          %s729 = smul.u32 %s728, 24
          %s730 = scalar_lea.vmem [#allocation2], %s726
          %v731 = vld [vmem:[%s730] sm:$0xff]
          %v732 = vld [vmem:[%s730 + $0x8] sm:$0xff]
          %v733 = vld [vmem:[%s730 + $0x10] sm:$0xff]
          %s734 = scalar_lea.vmem [#allocation2], %s727
          %v735 = vld [vmem:[%s734] sm:$0xff]
          %v736 = vld [vmem:[%s734 + $0x8] sm:$0xff]
          %v737 = vld [vmem:[%s734 + $0x10] sm:$0xff]
          %s738 = scalar_lea.vmem [#allocation2], %s729
          %v739 = vld [vmem:[%s738] sm:$0xff]
          %v740 = vld [vmem:[%s738 + $0x8] sm:$0xff]
          %v741 = vld [vmem:[%s738 + $0x10] sm:$0xff]
          %v742 = vmul.f32 %v731, %v682
          %v743 = vmul.f32 %v732, %v682
          %v744 = vmul.f32 %v733, %v682
          %v745 = vmul.f32 %v735, %v685
          %v746 = vmul.f32 %v736, %v685
          %v747 = vmul.f32 %v737, %v685
          %v748 = vadd.f32 %v742, %v745
          %v749 = vadd.f32 %v743, %v746
          %v750 = vadd.f32 %v744, %v747
          %v751 = vmul.f32 %v739, %v688
          %v752 = vmul.f32 %v740, %v688
          %v753 = vmul.f32 %v741, %v688
          %v754 = vadd.f32 %v748, %v751
          %v755 = vadd.f32 %v749, %v752
          %v756 = vadd.f32 %v750, %v753
          %v757 = vmul.f32 %v731, %v683
          %v758 = vmul.f32 %v732, %v683
          %v759 = vmul.f32 %v733, %v683
          %v760 = vmul.f32 %v735, %v686
          %v761 = vmul.f32 %v736, %v686
          %v762 = vmul.f32 %v737, %v686
          %v763 = vadd.f32 %v757, %v760
          %v764 = vadd.f32 %v758, %v761
          %v765 = vadd.f32 %v759, %v762
          %v766 = vmul.f32 %v739, %v689
          %v767 = vmul.f32 %v740, %v689
          %v768 = vmul.f32 %v741, %v689
          %v769 = vadd.f32 %v763, %v766
          %v770 = vadd.f32 %v764, %v767
          %v771 = vadd.f32 %v765, %v768
          %v772 = vmul.f32 %v731, %v684
          %v773 = vmul.f32 %v732, %v684
          %v774 = vmul.f32 %v733, %v684
          %v775 = vmul.f32 %v735, %v687
          %v776 = vmul.f32 %v736, %v687
          %v777 = vmul.f32 %v737, %v687
          %v778 = vadd.f32 %v772, %v775
          %v779 = vadd.f32 %v773, %v776
          %v780 = vadd.f32 %v774, %v777
          %v781 = vmul.f32 %v739, %v690
          %v782 = vmul.f32 %v740, %v690
          %v783 = vmul.f32 %v741, %v690
          %v784 = vadd.f32 %v778, %v781
          %v785 = vadd.f32 %v779, %v782
          %v786 = vadd.f32 %v780, %v783
          %v787 = vrot.slane %v754, 6
          %v788 = vrot.slane %v755, 6
          %v789 = vrot.slane %v756, 6
          %v790 = vlaneseq
          %v791 = vshrl.u32 %v790, 7
          %vm792 = vcmp.lt.s32.totalorder %v791, 2
          %v793 = vsel %vm792, %v788, %v789
          %v794 = vsel %vm792, %v787, %v788
          %v795 = vsel %vm792, %v789, %v787
          %v796 = vadd.f32 %v693, %v795
          %v797 = vadd.f32 %v693, %v794
          %v798 = vadd.f32 %v693, %v793
          %v799 = vrot.slane %v769, 7
          %v800 = vrot.slane %v770, 7
          %v801 = vrot.slane %v771, 7
          %vm802 = vcmp.lt.s32.totalorder %v791, 1
          %v803 = vsel %vm802, %v800, %v801
          %v804 = vsel %vm802, %v799, %v800
          %v805 = vsel %vm802, %v801, %v799
          %v806 = vadd.f32 %v796, %v805
          %v807 = vadd.f32 %v797, %v804
          %v808 = vadd.f32 %v798, %v803
          %v809 = vadd.f32 %v806, %v784
          %v810 = vadd.f32 %v807, %v785
          %v811 = vadd.f32 %v808, %v786
          %v812 = vmul.f32 %v809, %v701
          %v813 = vmul.f32 %v810, %v706
          %v814 = vmul.f32 %v811, %v711
          %s815 = scalar_lea.vmem [#allocation7], %s727
          %816 = vst [vmem:[%s815] sm:$0xff] %v812
          %817 = vst [vmem:[%s815 + $0x8] sm:$0xff] %v813
          %818 = vst [vmem:[%s815 + $0x10] sm:$0xff] %v814
        $region61: #{depthwise_separable_conv_forward.1} parent=55 // loop_footer
          %s724 = sadd.s32 1, %s720
        $region62: #{depthwise_separable_conv_forward.1} parent=55 // loop_footer_branch
          %719 = sbr.rel target = $region58
        $region63: #{depthwise_separable_conv_forward.1} parent=55 // loop_exit
          _
        %v819 = vld [vmem:[%s4] sm:$0xff]
        %v820 = vld [vmem:[%s4 + $0x8] sm:$0xff]
        %v821 = vld [vmem:[%s4 + $0x10] sm:$0xff]
        %v822 = vld [vmem:[%s4 + $0x18] sm:$0xff]
        %v823 = vld [vmem:[%s4 + $0x20] sm:$0xff]
        %v824 = vld [vmem:[%s4 + $0x28] sm:$0xff]
        %v825 = vld [vmem:[%s4 + $0x30] sm:$0xff]
        %v826 = vld [vmem:[%s4 + $0x38] sm:$0xff]
        %v827 = vld [vmem:[%s4 + $0x40] sm:$0xff]
        %v828 = vld [vmem:[%s4 + $0x48] sm:$0xff]
        %v829 = vld [vmem:[%s4 + $0x50] sm:$0xff]
        %v830 = vld [vmem:[%s4 + $0x58] sm:$0xff]
        %v831 = vld [vmem:[%s4 + $0x60] sm:$0xff]
        %v832 = vld [vmem:[%s4 + $0x68] sm:$0xff]
        %v833 = vld [vmem:[%s4 + $0x70] sm:$0xff]
        %v834 = vld [vmem:[%s4 + $0x78] sm:$0xff]
        %v835 = vld [vmem:[#allocation7] sm:$0xff]
        %v836 = vld [vmem:[#allocation7 + $0x8] sm:$0xff]
        %v837 = vld [vmem:[#allocation7 + $0x10] sm:$0xff]
        %v838 = vld [vmem:[#allocation7 + $0x18] sm:$0xff]
        %v839 = vld [vmem:[#allocation7 + $0x20] sm:$0xff]
        %v840 = vld [vmem:[#allocation7 + $0x28] sm:$0xff]
        %v841 = vld [vmem:[#allocation7 + $0x30] sm:$0xff]
        %v842 = vld [vmem:[#allocation7 + $0x38] sm:$0xff]
        %v843 = vld [vmem:[#allocation7 + $0x40] sm:$0xff]
        %v844 = vld [vmem:[#allocation7 + $0x48] sm:$0xff]
        %v845 = vld [vmem:[#allocation7 + $0x50] sm:$0xff]
        %v846 = vld [vmem:[#allocation7 + $0x58] sm:$0xff]
        %v847 = vld [vmem:[#allocation7 + $0x60] sm:$0xff]
        %v848 = vld [vmem:[#allocation7 + $0x68] sm:$0xff]
        %v849 = vld [vmem:[#allocation7 + $0x70] sm:$0xff]
        %v850 = vld [vmem:[#allocation7 + $0x78] sm:$0xff]
        %v851 = vld [vmem:[#allocation7 + $0x80] sm:$0xff]
        %v852 = vld [vmem:[#allocation7 + $0x88] sm:$0xff]
        %v853 = vld [vmem:[#allocation7 + $0x90] sm:$0xff]
        %v854 = vld [vmem:[#allocation7 + $0x98] sm:$0xff]
        %v855 = vld [vmem:[#allocation7 + $0xa0] sm:$0xff]
        %v856 = vld [vmem:[#allocation7 + $0xa8] sm:$0xff]
        %v857 = vld [vmem:[#allocation7 + $0xb0] sm:$0xff]
        %v858 = vld [vmem:[#allocation7 + $0xb8] sm:$0xff]
        %s859 = scalar_lea.vmem %s7, 192
        %v860 = vld [vmem:[%s859] sm:$0xff]
        %v861 = vld [vmem:[%s859 + $0x8] sm:$0xff]
        %v862 = vld [vmem:[%s859 + $0x10] sm:$0xff]
        %v863 = vld [vmem:[%s859 + $0x18] sm:$0xff]
        %v864 = vld [vmem:[%s859 + $0x20] sm:$0xff]
        %v865 = vld [vmem:[%s859 + $0x28] sm:$0xff]
        %v866 = vld [vmem:[%s859 + $0x30] sm:$0xff]
        %v867 = vld [vmem:[%s859 + $0x38] sm:$0xff]
        %v868 = vld [vmem:[%s859 + $0x40] sm:$0xff]
        %v869 = vld [vmem:[%s859 + $0x48] sm:$0xff]
        %v870 = vld [vmem:[%s859 + $0x50] sm:$0xff]
        %v871 = vld [vmem:[%s859 + $0x58] sm:$0xff]
        %v872 = vld [vmem:[%s859 + $0x60] sm:$0xff]
        %v873 = vld [vmem:[%s859 + $0x68] sm:$0xff]
        %v874 = vld [vmem:[%s859 + $0x70] sm:$0xff]
        %v875 = vld [vmem:[%s859 + $0x78] sm:$0xff]
        %v876 = vld [vmem:[%s859 + $0x80] sm:$0xff]
        %v877 = vld [vmem:[%s859 + $0x88] sm:$0xff]
        %v878 = vld [vmem:[%s859 + $0x90] sm:$0xff]
        %v879 = vld [vmem:[%s859 + $0x98] sm:$0xff]
        %v880 = vld [vmem:[%s859 + $0xa0] sm:$0xff]
        %v881 = vld [vmem:[%s859 + $0xa8] sm:$0xff]
        %v882 = vld [vmem:[%s859 + $0xb0] sm:$0xff]
        %v883 = vld [vmem:[%s859 + $0xb8] sm:$0xff]
        %884 = vmatpush.msra.mxu0 %v834
        %885 = vmatpush.msra.mxu0 %v833
        %886 = vmatpush.msra.mxu0 %v832
        %887 = vmatpush.msra.mxu0 %v831
        %888 = vmatpush.msra.mxu0 %v830
        %889 = vmatpush.msra.mxu0 %v829
        %890 = vmatpush.msra.mxu0 %v828
        %891 = vmatpush.msra.mxu0 %v827
        %892 = vmatpush.msra.mxu0 %v826
        %893 = vmatpush.msra.mxu0 %v825
        %894 = vmatpush.msra.mxu0 %v824
        %895 = vmatpush.msra.mxu0 %v823
        %896 = vmatpush.msra.mxu0 %v822
        %897 = vmatpush.msra.mxu0 %v821
        %898 = vmatpush.msra.mxu0 %v820
        %899 = vmatpush.msra.mxu0 %v819
        %900 = vmatmul.f32.gmra.mxu0 %v835
        %v901 = vpop.f32.mrf.mxu0
        %v902 = vadd.f32 %v860, %v901
        %903 = vmatmul.f32.gmra.mxu0 %v836
        %v904 = vpop.f32.mrf.mxu0
        %v905 = vadd.f32 %v861, %v904
        %906 = vmatmul.f32.gmra.mxu0 %v837
        %v907 = vpop.f32.mrf.mxu0
        %v908 = vadd.f32 %v862, %v907
        %909 = vmatmul.f32.gmra.mxu0 %v838
        %v910 = vpop.f32.mrf.mxu0
        %v911 = vadd.f32 %v863, %v910
        %912 = vmatmul.f32.gmra.mxu0 %v839
        %v913 = vpop.f32.mrf.mxu0
        %v914 = vadd.f32 %v864, %v913
        %915 = vmatmul.f32.gmra.mxu0 %v840
        %v916 = vpop.f32.mrf.mxu0
        %v917 = vadd.f32 %v865, %v916
        %918 = vmatmul.f32.gmra.mxu0 %v841
        %v919 = vpop.f32.mrf.mxu0
        %v920 = vadd.f32 %v866, %v919
        %921 = vmatmul.f32.gmra.mxu0 %v842
        %v922 = vpop.f32.mrf.mxu0
        %v923 = vadd.f32 %v867, %v922
        %924 = vmatmul.f32.gmra.mxu0 %v843
        %v925 = vpop.f32.mrf.mxu0
        %v926 = vadd.f32 %v868, %v925
        %927 = vmatmul.f32.gmra.mxu0 %v844
        %v928 = vpop.f32.mrf.mxu0
        %v929 = vadd.f32 %v869, %v928
        %930 = vmatmul.f32.gmra.mxu0 %v845
        %v931 = vpop.f32.mrf.mxu0
        %v932 = vadd.f32 %v870, %v931
        %933 = vmatmul.f32.gmra.mxu0 %v846
        %v934 = vpop.f32.mrf.mxu0
        %v935 = vadd.f32 %v871, %v934
        %936 = vmatmul.f32.gmra.mxu0 %v847
        %v937 = vpop.f32.mrf.mxu0
        %v938 = vadd.f32 %v872, %v937
        %939 = vmatmul.f32.gmra.mxu0 %v848
        %v940 = vpop.f32.mrf.mxu0
        %v941 = vadd.f32 %v873, %v940
        %942 = vmatmul.f32.gmra.mxu0 %v849
        %v943 = vpop.f32.mrf.mxu0
        %v944 = vadd.f32 %v874, %v943
        %945 = vmatmul.f32.gmra.mxu0 %v850
        %v946 = vpop.f32.mrf.mxu0
        %v947 = vadd.f32 %v875, %v946
        %948 = vmatmul.f32.gmra.mxu0 %v851
        %v949 = vpop.f32.mrf.mxu0
        %v950 = vadd.f32 %v876, %v949
        %951 = vmatmul.f32.gmra.mxu0 %v852
        %v952 = vpop.f32.mrf.mxu0
        %v953 = vadd.f32 %v877, %v952
        %954 = vmatmul.f32.gmra.mxu0 %v853
        %v955 = vpop.f32.mrf.mxu0
        %v956 = vadd.f32 %v878, %v955
        %957 = vmatmul.f32.gmra.mxu0 %v854
        %v958 = vpop.f32.mrf.mxu0
        %v959 = vadd.f32 %v879, %v958
        %960 = vmatmul.f32.gmra.mxu0 %v855
        %v961 = vpop.f32.mrf.mxu0
        %v962 = vadd.f32 %v880, %v961
        %963 = vmatmul.f32.gmra.mxu0 %v856
        %v964 = vpop.f32.mrf.mxu0
        %v965 = vadd.f32 %v881, %v964
        %966 = vmatmul.f32.gmra.mxu0 %v857
        %v967 = vpop.f32.mrf.mxu0
        %v968 = vadd.f32 %v882, %v967
        %969 = vmatmul.f32.gmra.mxu0 %v858
        %v970 = vpop.f32.mrf.mxu0
        %v971 = vadd.f32 %v883, %v970
        %972 = vdwg.mxu0
        %v973 = vmax.f32 %v902, 0.0
        %v974 = vmax.f32 %v905, 0.0
        %v975 = vmax.f32 %v908, 0.0
        %v976 = vmax.f32 %v911, 0.0
        %v977 = vmax.f32 %v914, 0.0
        %v978 = vmax.f32 %v917, 0.0
        %v979 = vmax.f32 %v920, 0.0
        %v980 = vmax.f32 %v923, 0.0
        %v981 = vmax.f32 %v926, 0.0
        %v982 = vmax.f32 %v929, 0.0
        %v983 = vmax.f32 %v932, 0.0
        %v984 = vmax.f32 %v935, 0.0
        %v985 = vmax.f32 %v938, 0.0
        %v986 = vmax.f32 %v941, 0.0
        %v987 = vmax.f32 %v944, 0.0
        %v988 = vmax.f32 %v947, 0.0
        %v989 = vmax.f32 %v950, 0.0
        %v990 = vmax.f32 %v953, 0.0
        %v991 = vmax.f32 %v956, 0.0
        %v992 = vmax.f32 %v959, 0.0
        %v993 = vmax.f32 %v962, 0.0
        %v994 = vmax.f32 %v965, 0.0
        %v995 = vmax.f32 %v968, 0.0
        %v996 = vmax.f32 %v971, 0.0
        %997 = vst [vmem:[#allocation3 + $0x18] sm:$0xff] %v973
        %998 = vst [vmem:[#allocation3 + $0x20] sm:$0xff] %v974
        %999 = vst [vmem:[#allocation3 + $0x28] sm:$0xff] %v975
        %1000 = vst [vmem:[#allocation3 + $0x30] sm:$0xff] %v976
        %1001 = vst [vmem:[#allocation3 + $0x38] sm:$0xff] %v977
        %1002 = vst [vmem:[#allocation3 + $0x40] sm:$0xff] %v978
        %1003 = vst [vmem:[#allocation3 + $0x48] sm:$0xff] %v979
        %1004 = vst [vmem:[#allocation3 + $0x50] sm:$0xff] %v980
        %1005 = vst [vmem:[#allocation3 + $0x58] sm:$0xff] %v981
        %1006 = vst [vmem:[#allocation3 + $0x60] sm:$0xff] %v982
        %1007 = vst [vmem:[#allocation3 + $0x68] sm:$0xff] %v983
        %1008 = vst [vmem:[#allocation3 + $0x70] sm:$0xff] %v984
        %1009 = vst [vmem:[#allocation3 + $0x78] sm:$0xff] %v985
        %1010 = vst [vmem:[#allocation3 + $0x80] sm:$0xff] %v986
        %1011 = vst [vmem:[#allocation3 + $0x88] sm:$0xff] %v987
        %1012 = vst [vmem:[#allocation3 + $0x90] sm:$0xff] %v988
        %1013 = vst [vmem:[#allocation3 + $0x98] sm:$0xff] %v989
        %1014 = vst [vmem:[#allocation3 + $0xa0] sm:$0xff] %v990
        %1015 = vst [vmem:[#allocation3 + $0xa8] sm:$0xff] %v991
        %1016 = vst [vmem:[#allocation3 + $0xb0] sm:$0xff] %v992
        %1017 = vst [vmem:[#allocation3 + $0xb8] sm:$0xff] %v993
        %1018 = vst [vmem:[#allocation3 + $0xc0] sm:$0xff] %v994
        %1019 = vst [vmem:[#allocation3 + $0xc8] sm:$0xff] %v995
        %1020 = vst [vmem:[#allocation3 + $0xd0] sm:$0xff] %v996
        %v1021 = vld [vmem:[#allocation7 + $0xc0] sm:$0xff]
        %v1022 = vld [vmem:[#allocation7 + $0xc8] sm:$0xff]
        %v1023 = vld [vmem:[#allocation7 + $0xd0] sm:$0xff]
        %v1024 = vld [vmem:[#allocation7 + $0xd8] sm:$0xff]
        %v1025 = vld [vmem:[#allocation7 + $0xe0] sm:$0xff]
        %v1026 = vld [vmem:[#allocation7 + $0xe8] sm:$0xff]
        %v1027 = vld [vmem:[#allocation7 + $0xf0] sm:$0xff]
        %v1028 = vld [vmem:[#allocation7 + $0xf8] sm:$0xff]
        %v1029 = vld [vmem:[#allocation7 + $0x100] sm:$0xff]
        %v1030 = vld [vmem:[#allocation7 + $0x108] sm:$0xff]
        %v1031 = vld [vmem:[#allocation7 + $0x110] sm:$0xff]
        %v1032 = vld [vmem:[#allocation7 + $0x118] sm:$0xff]
        %v1033 = vld [vmem:[#allocation7 + $0x120] sm:$0xff]
        %v1034 = vld [vmem:[#allocation7 + $0x128] sm:$0xff]
        %v1035 = vld [vmem:[#allocation7 + $0x130] sm:$0xff]
        %v1036 = vld [vmem:[#allocation7 + $0x138] sm:$0xff]
        %v1037 = vld [vmem:[#allocation7 + $0x140] sm:$0xff]
        %v1038 = vld [vmem:[#allocation7 + $0x148] sm:$0xff]
        %v1039 = vld [vmem:[#allocation7 + $0x150] sm:$0xff]
        %v1040 = vld [vmem:[#allocation7 + $0x158] sm:$0xff]
        %v1041 = vld [vmem:[#allocation7 + $0x160] sm:$0xff]
        %v1042 = vld [vmem:[#allocation7 + $0x168] sm:$0xff]
        %v1043 = vld [vmem:[#allocation7 + $0x170] sm:$0xff]
        %v1044 = vld [vmem:[#allocation7 + $0x178] sm:$0xff]
        %v1045 = vld [vmem:[%s859] sm:$0xff]
        %v1046 = vld [vmem:[%s859 + $0x8] sm:$0xff]
        %v1047 = vld [vmem:[%s859 + $0x10] sm:$0xff]
        %v1048 = vld [vmem:[%s859 + $0x18] sm:$0xff]
        %v1049 = vld [vmem:[%s859 + $0x20] sm:$0xff]
        %v1050 = vld [vmem:[%s859 + $0x28] sm:$0xff]
        %v1051 = vld [vmem:[%s859 + $0x30] sm:$0xff]
        %v1052 = vld [vmem:[%s859 + $0x38] sm:$0xff]
        %v1053 = vld [vmem:[%s859 + $0x40] sm:$0xff]
        %v1054 = vld [vmem:[%s859 + $0x48] sm:$0xff]
        %v1055 = vld [vmem:[%s859 + $0x50] sm:$0xff]
        %v1056 = vld [vmem:[%s859 + $0x58] sm:$0xff]
        %v1057 = vld [vmem:[%s859 + $0x60] sm:$0xff]
        %v1058 = vld [vmem:[%s859 + $0x68] sm:$0xff]
        %v1059 = vld [vmem:[%s859 + $0x70] sm:$0xff]
        %v1060 = vld [vmem:[%s859 + $0x78] sm:$0xff]
        %v1061 = vld [vmem:[%s859 + $0x80] sm:$0xff]
        %v1062 = vld [vmem:[%s859 + $0x88] sm:$0xff]
        %v1063 = vld [vmem:[%s859 + $0x90] sm:$0xff]
        %v1064 = vld [vmem:[%s859 + $0x98] sm:$0xff]
        %v1065 = vld [vmem:[%s859 + $0xa0] sm:$0xff]
        %v1066 = vld [vmem:[%s859 + $0xa8] sm:$0xff]
        %v1067 = vld [vmem:[%s859 + $0xb0] sm:$0xff]
        %v1068 = vld [vmem:[%s859 + $0xb8] sm:$0xff]
        %1069 = vmatpush.msra.mxu0 %v834
        %1070 = vmatpush.msra.mxu0 %v833
        %1071 = vmatpush.msra.mxu0 %v832
        %1072 = vmatpush.msra.mxu0 %v831
        %1073 = vmatpush.msra.mxu0 %v830
        %1074 = vmatpush.msra.mxu0 %v829
        %1075 = vmatpush.msra.mxu0 %v828
        %1076 = vmatpush.msra.mxu0 %v827
        %1077 = vmatpush.msra.mxu0 %v826
        %1078 = vmatpush.msra.mxu0 %v825
        %1079 = vmatpush.msra.mxu0 %v824
        %1080 = vmatpush.msra.mxu0 %v823
        %1081 = vmatpush.msra.mxu0 %v822
        %1082 = vmatpush.msra.mxu0 %v821
        %1083 = vmatpush.msra.mxu0 %v820
        %1084 = vmatpush.msra.mxu0 %v819
        %1085 = vmatmul.f32.gmra.mxu0 %v1021
        %v1086 = vpop.f32.mrf.mxu0
        %v1087 = vadd.f32 %v1045, %v1086
        %1088 = vmatmul.f32.gmra.mxu0 %v1022
        %v1089 = vpop.f32.mrf.mxu0
        %v1090 = vadd.f32 %v1046, %v1089
        %1091 = vmatmul.f32.gmra.mxu0 %v1023
        %v1092 = vpop.f32.mrf.mxu0
        %v1093 = vadd.f32 %v1047, %v1092
        %1094 = vmatmul.f32.gmra.mxu0 %v1024
        %v1095 = vpop.f32.mrf.mxu0
        %v1096 = vadd.f32 %v1048, %v1095
        %1097 = vmatmul.f32.gmra.mxu0 %v1025
        %v1098 = vpop.f32.mrf.mxu0
        %v1099 = vadd.f32 %v1049, %v1098
        %1100 = vmatmul.f32.gmra.mxu0 %v1026
        %v1101 = vpop.f32.mrf.mxu0
        %v1102 = vadd.f32 %v1050, %v1101
        %1103 = vmatmul.f32.gmra.mxu0 %v1027
        %v1104 = vpop.f32.mrf.mxu0
        %v1105 = vadd.f32 %v1051, %v1104
        %1106 = vmatmul.f32.gmra.mxu0 %v1028
        %v1107 = vpop.f32.mrf.mxu0
        %v1108 = vadd.f32 %v1052, %v1107
        %1109 = vmatmul.f32.gmra.mxu0 %v1029
        %v1110 = vpop.f32.mrf.mxu0
        %v1111 = vadd.f32 %v1053, %v1110
        %1112 = vmatmul.f32.gmra.mxu0 %v1030
        %v1113 = vpop.f32.mrf.mxu0
        %v1114 = vadd.f32 %v1054, %v1113
        %1115 = vmatmul.f32.gmra.mxu0 %v1031
        %v1116 = vpop.f32.mrf.mxu0
        %v1117 = vadd.f32 %v1055, %v1116
        %1118 = vmatmul.f32.gmra.mxu0 %v1032
        %v1119 = vpop.f32.mrf.mxu0
        %v1120 = vadd.f32 %v1056, %v1119
        %1121 = vmatmul.f32.gmra.mxu0 %v1033
        %v1122 = vpop.f32.mrf.mxu0
        %v1123 = vadd.f32 %v1057, %v1122
        %1124 = vmatmul.f32.gmra.mxu0 %v1034
        %v1125 = vpop.f32.mrf.mxu0
        %v1126 = vadd.f32 %v1058, %v1125
        %1127 = vmatmul.f32.gmra.mxu0 %v1035
        %v1128 = vpop.f32.mrf.mxu0
        %v1129 = vadd.f32 %v1059, %v1128
        %1130 = vmatmul.f32.gmra.mxu0 %v1036
        %v1131 = vpop.f32.mrf.mxu0
        %v1132 = vadd.f32 %v1060, %v1131
        %1133 = vmatmul.f32.gmra.mxu0 %v1037
        %v1134 = vpop.f32.mrf.mxu0
        %v1135 = vadd.f32 %v1061, %v1134
        %1136 = vmatmul.f32.gmra.mxu0 %v1038
        %v1137 = vpop.f32.mrf.mxu0
        %v1138 = vadd.f32 %v1062, %v1137
        %1139 = vmatmul.f32.gmra.mxu0 %v1039
        %v1140 = vpop.f32.mrf.mxu0
        %v1141 = vadd.f32 %v1063, %v1140
        %1142 = vmatmul.f32.gmra.mxu0 %v1040
        %v1143 = vpop.f32.mrf.mxu0
        %v1144 = vadd.f32 %v1064, %v1143
        %1145 = vmatmul.f32.gmra.mxu0 %v1041
        %v1146 = vpop.f32.mrf.mxu0
        %v1147 = vadd.f32 %v1065, %v1146
        %1148 = vmatmul.f32.gmra.mxu0 %v1042
        %v1149 = vpop.f32.mrf.mxu0
        %v1150 = vadd.f32 %v1066, %v1149
        %1151 = vmatmul.f32.gmra.mxu0 %v1043
        %v1152 = vpop.f32.mrf.mxu0
        %v1153 = vadd.f32 %v1067, %v1152
        %1154 = vmatmul.f32.gmra.mxu0 %v1044
        %v1155 = vpop.f32.mrf.mxu0
        %v1156 = vadd.f32 %v1068, %v1155
        %1157 = vdwg.mxu0
        %v1158 = vmax.f32 %v1087, 0.0
        %v1159 = vmax.f32 %v1090, 0.0
        %v1160 = vmax.f32 %v1093, 0.0
        %v1161 = vmax.f32 %v1096, 0.0
        %v1162 = vmax.f32 %v1099, 0.0
        %v1163 = vmax.f32 %v1102, 0.0
        %v1164 = vmax.f32 %v1105, 0.0
        %v1165 = vmax.f32 %v1108, 0.0
        %v1166 = vmax.f32 %v1111, 0.0
        %v1167 = vmax.f32 %v1114, 0.0
        %v1168 = vmax.f32 %v1117, 0.0
        %v1169 = vmax.f32 %v1120, 0.0
        %v1170 = vmax.f32 %v1123, 0.0
        %v1171 = vmax.f32 %v1126, 0.0
        %v1172 = vmax.f32 %v1129, 0.0
        %v1173 = vmax.f32 %v1132, 0.0
        %v1174 = vmax.f32 %v1135, 0.0
        %v1175 = vmax.f32 %v1138, 0.0
        %v1176 = vmax.f32 %v1141, 0.0
        %v1177 = vmax.f32 %v1144, 0.0
        %v1178 = vmax.f32 %v1147, 0.0
        %v1179 = vmax.f32 %v1150, 0.0
        %v1180 = vmax.f32 %v1153, 0.0
        %v1181 = vmax.f32 %v1156, 0.0
        %1182 = vst [vmem:[#allocation3 + $0xd8] sm:$0xff] %v1158
        %1183 = vst [vmem:[#allocation3 + $0xe0] sm:$0xff] %v1159
        %1184 = vst [vmem:[#allocation3 + $0xe8] sm:$0xff] %v1160
        %1185 = vst [vmem:[#allocation3 + $0xf0] sm:$0xff] %v1161
        %1186 = vst [vmem:[#allocation3 + $0xf8] sm:$0xff] %v1162
        %1187 = vst [vmem:[#allocation3 + $0x100] sm:$0xff] %v1163
        %1188 = vst [vmem:[#allocation3 + $0x108] sm:$0xff] %v1164
        %1189 = vst [vmem:[#allocation3 + $0x110] sm:$0xff] %v1165
        %1190 = vst [vmem:[#allocation3 + $0x118] sm:$0xff] %v1166
        %1191 = vst [vmem:[#allocation3 + $0x120] sm:$0xff] %v1167
        %1192 = vst [vmem:[#allocation3 + $0x128] sm:$0xff] %v1168
        %1193 = vst [vmem:[#allocation3 + $0x130] sm:$0xff] %v1169
        %1194 = vst [vmem:[#allocation3 + $0x138] sm:$0xff] %v1170
        %1195 = vst [vmem:[#allocation3 + $0x140] sm:$0xff] %v1171
        %1196 = vst [vmem:[#allocation3 + $0x148] sm:$0xff] %v1172
        %1197 = vst [vmem:[#allocation3 + $0x150] sm:$0xff] %v1173
        %1198 = vst [vmem:[#allocation3 + $0x158] sm:$0xff] %v1174
        %1199 = vst [vmem:[#allocation3 + $0x160] sm:$0xff] %v1175
        %1200 = vst [vmem:[#allocation3 + $0x168] sm:$0xff] %v1176
        %1201 = vst [vmem:[#allocation3 + $0x170] sm:$0xff] %v1177
        %1202 = vst [vmem:[#allocation3 + $0x178] sm:$0xff] %v1178
        %1203 = vst [vmem:[#allocation3 + $0x180] sm:$0xff] %v1179
        %1204 = vst [vmem:[#allocation3 + $0x188] sm:$0xff] %v1180
        %1205 = vst [vmem:[#allocation3 + $0x190] sm:$0xff] %v1181
        %1206 = vst [vmem:[#allocation3] sm:$0xff] 0.0
        %1207 = vst [vmem:[#allocation3 + $0x8] sm:$0xff] 0.0
        %1208 = vst [vmem:[#allocation3 + $0x10] sm:$0xff] 0.0
        %1209 = vst [vmem:[#allocation3 + $0x198] sm:$0xff] 0.0
        %1210 = vst [vmem:[#allocation3 + $0x1a0] sm:$0xff] 0.0
        %1211 = vst [vmem:[#allocation3 + $0x1a8] sm:$0xff] 0.0
        %s1212 = scalar_lea.vmem %s2, 16
        %v1213 = vld [vmem:[%s1212] sm:$0xff]
        %v1214 = vld [vmem:[%s1212 + $0x8] sm:$0x1]
        %v1215 = vperm.slane %v1213, 0
        %v1216 = vperm.slane %v1213, 1
        %v1217 = vperm.slane %v1213, 2
        %v1218 = vperm.slane %v1213, 3
        %v1219 = vperm.slane %v1213, 4
        %v1220 = vperm.slane %v1213, 5
        %v1221 = vperm.slane %v1213, 6
        %v1222 = vperm.slane %v1213, 7
        %v1223 = vperm.slane %v1214, 0
        %s1224 = scalar_lea.vmem %s3, 1
        %v1225 = vld [vmem:[%s1224] sm:$0x1]
        %v1227 = vperm.slane %v1225, 0
        %s1229 = scalar_lea.vmem %s8, 24
        %v1230 = vld [vmem:[%s1229] sm:$0xff]
        %v1231 = vld [vmem:[%s1229 + $0x8] sm:$0xff]
        %v1232 = vld [vmem:[%s1229 + $0x10] sm:$0xff]
        %1234 = vset.pattern.permute.xlu0 0
        %1235 = vperm.xlu0 %1234, %v1230
        %v1236 = vpop.permute.xlu0 %1235
        %1239 = vset.pattern.permute.xlu0 0
        %1240 = vperm.xlu0 %1239, %v1231
        %v1241 = vpop.permute.xlu0 %1240
        %1244 = vset.pattern.permute.xlu0 0
        %1245 = vperm.xlu0 %1244, %v1232
        %v1246 = vpop.permute.xlu0 %1245
        %1248 = vst [vmem:[#allocation7] sm:$0xff] 0.0
        %1249 = vst [vmem:[#allocation7 + $0x8] sm:$0xff] 0.0
        %1250 = vst [vmem:[#allocation7 + $0x10] sm:$0xff] 0.0
        %1251 = vst [vmem:[#allocation7 + $0x198] sm:$0xff] 0.0
        %1252 = vst [vmem:[#allocation7 + $0x1a0] sm:$0xff] 0.0
        %1253 = vst [vmem:[#allocation7 + $0x1a8] sm:$0xff] 0.0
        loop: start=1, step=1, limit=17
        $region64: #{depthwise_separable_conv_forward.1} parent=55 // loop_pre_header
          _
        $region65: #{depthwise_separable_conv_forward.1} parent=55 // loop_header
          %s1255 = sphi 1, %s1259
          %p1256 = scmp.ge.s32.totalorder %s1255, 17
        $region66: #{depthwise_separable_conv_forward.1} parent=55 // loop_header_branch
          %1258 = sbr.rel (%p1256) target = $region70
        $region67: #{depthwise_separable_conv_forward.1} parent=55 // loop_body
          %s1260 = ssub.s32 %s1255, 1
          %s1261 = smul.u32 %s1260, 24
          %s1262 = smul.u32 %s1255, 24
          %s1263 = sadd.s32 %s1255, 1
          %s1264 = smul.u32 %s1263, 24
          %s1265 = scalar_lea.vmem [#allocation3], %s1261
          %v1266 = vld [vmem:[%s1265] sm:$0xff]
          %v1267 = vld [vmem:[%s1265 + $0x8] sm:$0xff]
          %v1268 = vld [vmem:[%s1265 + $0x10] sm:$0xff]
          %s1269 = scalar_lea.vmem [#allocation3], %s1262
          %v1270 = vld [vmem:[%s1269] sm:$0xff]
          %v1271 = vld [vmem:[%s1269 + $0x8] sm:$0xff]
          %v1272 = vld [vmem:[%s1269 + $0x10] sm:$0xff]
          %s1273 = scalar_lea.vmem [#allocation3], %s1264
          %v1274 = vld [vmem:[%s1273] sm:$0xff]
          %v1275 = vld [vmem:[%s1273 + $0x8] sm:$0xff]
          %v1276 = vld [vmem:[%s1273 + $0x10] sm:$0xff]
          %v1277 = vmul.f32 %v1266, %v1215
          %v1278 = vmul.f32 %v1267, %v1215
          %v1279 = vmul.f32 %v1268, %v1215
          %v1280 = vmul.f32 %v1270, %v1218
          %v1281 = vmul.f32 %v1271, %v1218
          %v1282 = vmul.f32 %v1272, %v1218
          %v1283 = vadd.f32 %v1277, %v1280
          %v1284 = vadd.f32 %v1278, %v1281
          %v1285 = vadd.f32 %v1279, %v1282
          %v1286 = vmul.f32 %v1274, %v1221
          %v1287 = vmul.f32 %v1275, %v1221
          %v1288 = vmul.f32 %v1276, %v1221
          %v1289 = vadd.f32 %v1283, %v1286
          %v1290 = vadd.f32 %v1284, %v1287
          %v1291 = vadd.f32 %v1285, %v1288
          %v1292 = vmul.f32 %v1266, %v1216
          %v1293 = vmul.f32 %v1267, %v1216
          %v1294 = vmul.f32 %v1268, %v1216
          %v1295 = vmul.f32 %v1270, %v1219
          %v1296 = vmul.f32 %v1271, %v1219
          %v1297 = vmul.f32 %v1272, %v1219
          %v1298 = vadd.f32 %v1292, %v1295
          %v1299 = vadd.f32 %v1293, %v1296
          %v1300 = vadd.f32 %v1294, %v1297
          %v1301 = vmul.f32 %v1274, %v1222
          %v1302 = vmul.f32 %v1275, %v1222
          %v1303 = vmul.f32 %v1276, %v1222
          %v1304 = vadd.f32 %v1298, %v1301
          %v1305 = vadd.f32 %v1299, %v1302
          %v1306 = vadd.f32 %v1300, %v1303
          %v1307 = vmul.f32 %v1266, %v1217
          %v1308 = vmul.f32 %v1267, %v1217
          %v1309 = vmul.f32 %v1268, %v1217
          %v1310 = vmul.f32 %v1270, %v1220
          %v1311 = vmul.f32 %v1271, %v1220
          %v1312 = vmul.f32 %v1272, %v1220
          %v1313 = vadd.f32 %v1307, %v1310
          %v1314 = vadd.f32 %v1308, %v1311
          %v1315 = vadd.f32 %v1309, %v1312
          %v1316 = vmul.f32 %v1274, %v1223
          %v1317 = vmul.f32 %v1275, %v1223
          %v1318 = vmul.f32 %v1276, %v1223
          %v1319 = vadd.f32 %v1313, %v1316
          %v1320 = vadd.f32 %v1314, %v1317
          %v1321 = vadd.f32 %v1315, %v1318
          %v1322 = vrot.slane %v1289, 6
          %v1323 = vrot.slane %v1290, 6
          %v1324 = vrot.slane %v1291, 6
          %v1325 = vlaneseq
          %v1326 = vshrl.u32 %v1325, 7
          %vm1327 = vcmp.lt.s32.totalorder %v1326, 2
          %v1328 = vsel %vm1327, %v1323, %v1324
          %v1329 = vsel %vm1327, %v1322, %v1323
          %v1330 = vsel %vm1327, %v1324, %v1322
          %v1331 = vadd.f32 %v1227, %v1330
          %v1332 = vadd.f32 %v1227, %v1329
          %v1333 = vadd.f32 %v1227, %v1328
          %v1334 = vrot.slane %v1304, 7
          %v1335 = vrot.slane %v1305, 7
          %v1336 = vrot.slane %v1306, 7
          %vm1337 = vcmp.lt.s32.totalorder %v1326, 1
          %v1338 = vsel %vm1337, %v1335, %v1336
          %v1339 = vsel %vm1337, %v1334, %v1335
          %v1340 = vsel %vm1337, %v1336, %v1334
          %v1341 = vadd.f32 %v1331, %v1340
          %v1342 = vadd.f32 %v1332, %v1339
          %v1343 = vadd.f32 %v1333, %v1338
          %v1344 = vadd.f32 %v1341, %v1319
          %v1345 = vadd.f32 %v1342, %v1320
          %v1346 = vadd.f32 %v1343, %v1321
          %v1347 = vmul.f32 %v1344, %v1236
          %v1348 = vmul.f32 %v1345, %v1241
          %v1349 = vmul.f32 %v1346, %v1246
          %s1350 = scalar_lea.vmem [#allocation7], %s1262
          %1351 = vst [vmem:[%s1350] sm:$0xff] %v1347
          %1352 = vst [vmem:[%s1350 + $0x8] sm:$0xff] %v1348
          %1353 = vst [vmem:[%s1350 + $0x10] sm:$0xff] %v1349
        $region68: #{depthwise_separable_conv_forward.1} parent=55 // loop_footer
          %s1259 = sadd.s32 1, %s1255
        $region69: #{depthwise_separable_conv_forward.1} parent=55 // loop_footer_branch
          %1254 = sbr.rel target = $region65
        $region70: #{depthwise_separable_conv_forward.1} parent=55 // loop_exit
          _
        %s1354 = scalar_lea.vmem %s4, 128
        %v1355 = vld [vmem:[%s1354] sm:$0xff]
        %v1356 = vld [vmem:[%s1354 + $0x8] sm:$0xff]
        %v1357 = vld [vmem:[%s1354 + $0x10] sm:$0xff]
        %v1358 = vld [vmem:[%s1354 + $0x18] sm:$0xff]
        %v1359 = vld [vmem:[%s1354 + $0x20] sm:$0xff]
        %v1360 = vld [vmem:[%s1354 + $0x28] sm:$0xff]
        %v1361 = vld [vmem:[%s1354 + $0x30] sm:$0xff]
        %v1362 = vld [vmem:[%s1354 + $0x38] sm:$0xff]
        %v1363 = vld [vmem:[%s1354 + $0x40] sm:$0xff]
        %v1364 = vld [vmem:[%s1354 + $0x48] sm:$0xff]
        %v1365 = vld [vmem:[%s1354 + $0x50] sm:$0xff]
        %v1366 = vld [vmem:[%s1354 + $0x58] sm:$0xff]
        %v1367 = vld [vmem:[%s1354 + $0x60] sm:$0xff]
        %v1368 = vld [vmem:[%s1354 + $0x68] sm:$0xff]
        %v1369 = vld [vmem:[%s1354 + $0x70] sm:$0xff]
        %v1370 = vld [vmem:[%s1354 + $0x78] sm:$0xff]
        %v1371 = vld [vmem:[#allocation7] sm:$0xff]
        %v1372 = vld [vmem:[#allocation7 + $0x8] sm:$0xff]
        %v1373 = vld [vmem:[#allocation7 + $0x10] sm:$0xff]
        %v1374 = vld [vmem:[#allocation7 + $0x18] sm:$0xff]
        %v1375 = vld [vmem:[#allocation7 + $0x20] sm:$0xff]
        %v1376 = vld [vmem:[#allocation7 + $0x28] sm:$0xff]
        %v1377 = vld [vmem:[#allocation7 + $0x30] sm:$0xff]
        %v1378 = vld [vmem:[#allocation7 + $0x38] sm:$0xff]
        %v1379 = vld [vmem:[#allocation7 + $0x40] sm:$0xff]
        %v1380 = vld [vmem:[#allocation7 + $0x48] sm:$0xff]
        %v1381 = vld [vmem:[#allocation7 + $0x50] sm:$0xff]
        %v1382 = vld [vmem:[#allocation7 + $0x58] sm:$0xff]
        %v1383 = vld [vmem:[#allocation7 + $0x60] sm:$0xff]
        %v1384 = vld [vmem:[#allocation7 + $0x68] sm:$0xff]
        %v1385 = vld [vmem:[#allocation7 + $0x70] sm:$0xff]
        %v1386 = vld [vmem:[#allocation7 + $0x78] sm:$0xff]
        %v1387 = vld [vmem:[#allocation7 + $0x80] sm:$0xff]
        %v1388 = vld [vmem:[#allocation7 + $0x88] sm:$0xff]
        %v1389 = vld [vmem:[#allocation7 + $0x90] sm:$0xff]
        %v1390 = vld [vmem:[#allocation7 + $0x98] sm:$0xff]
        %v1391 = vld [vmem:[#allocation7 + $0xa0] sm:$0xff]
        %v1392 = vld [vmem:[#allocation7 + $0xa8] sm:$0xff]
        %v1393 = vld [vmem:[#allocation7 + $0xb0] sm:$0xff]
        %v1394 = vld [vmem:[#allocation7 + $0xb8] sm:$0xff]
        %s1395 = scalar_lea.vmem %s7, 384
        %v1396 = vld [vmem:[%s1395] sm:$0xff]
        %v1397 = vld [vmem:[%s1395 + $0x8] sm:$0xff]
        %v1398 = vld [vmem:[%s1395 + $0x10] sm:$0xff]
        %v1399 = vld [vmem:[%s1395 + $0x18] sm:$0xff]
        %v1400 = vld [vmem:[%s1395 + $0x20] sm:$0xff]
        %v1401 = vld [vmem:[%s1395 + $0x28] sm:$0xff]
        %v1402 = vld [vmem:[%s1395 + $0x30] sm:$0xff]
        %v1403 = vld [vmem:[%s1395 + $0x38] sm:$0xff]
        %v1404 = vld [vmem:[%s1395 + $0x40] sm:$0xff]
        %v1405 = vld [vmem:[%s1395 + $0x48] sm:$0xff]
        %v1406 = vld [vmem:[%s1395 + $0x50] sm:$0xff]
        %v1407 = vld [vmem:[%s1395 + $0x58] sm:$0xff]
        %v1408 = vld [vmem:[%s1395 + $0x60] sm:$0xff]
        %v1409 = vld [vmem:[%s1395 + $0x68] sm:$0xff]
        %v1410 = vld [vmem:[%s1395 + $0x70] sm:$0xff]
        %v1411 = vld [vmem:[%s1395 + $0x78] sm:$0xff]
        %v1412 = vld [vmem:[%s1395 + $0x80] sm:$0xff]
        %v1413 = vld [vmem:[%s1395 + $0x88] sm:$0xff]
        %v1414 = vld [vmem:[%s1395 + $0x90] sm:$0xff]
        %v1415 = vld [vmem:[%s1395 + $0x98] sm:$0xff]
        %v1416 = vld [vmem:[%s1395 + $0xa0] sm:$0xff]
        %v1417 = vld [vmem:[%s1395 + $0xa8] sm:$0xff]
        %v1418 = vld [vmem:[%s1395 + $0xb0] sm:$0xff]
        %v1419 = vld [vmem:[%s1395 + $0xb8] sm:$0xff]
        %1420 = vmatpush.msra.mxu0 %v1370
        %1421 = vmatpush.msra.mxu0 %v1369
        %1422 = vmatpush.msra.mxu0 %v1368
        %1423 = vmatpush.msra.mxu0 %v1367
        %1424 = vmatpush.msra.mxu0 %v1366
        %1425 = vmatpush.msra.mxu0 %v1365
        %1426 = vmatpush.msra.mxu0 %v1364
        %1427 = vmatpush.msra.mxu0 %v1363
        %1428 = vmatpush.msra.mxu0 %v1362
        %1429 = vmatpush.msra.mxu0 %v1361
        %1430 = vmatpush.msra.mxu0 %v1360
        %1431 = vmatpush.msra.mxu0 %v1359
        %1432 = vmatpush.msra.mxu0 %v1358
        %1433 = vmatpush.msra.mxu0 %v1357
        %1434 = vmatpush.msra.mxu0 %v1356
        %1435 = vmatpush.msra.mxu0 %v1355
        %1436 = vmatmul.f32.gmra.mxu0 %v1371
        %v1437 = vpop.f32.mrf.mxu0
        %v1438 = vadd.f32 %v1396, %v1437
        %1439 = vmatmul.f32.gmra.mxu0 %v1372
        %v1440 = vpop.f32.mrf.mxu0
        %v1441 = vadd.f32 %v1397, %v1440
        %1442 = vmatmul.f32.gmra.mxu0 %v1373
        %v1443 = vpop.f32.mrf.mxu0
        %v1444 = vadd.f32 %v1398, %v1443
        %1445 = vmatmul.f32.gmra.mxu0 %v1374
        %v1446 = vpop.f32.mrf.mxu0
        %v1447 = vadd.f32 %v1399, %v1446
        %1448 = vmatmul.f32.gmra.mxu0 %v1375
        %v1449 = vpop.f32.mrf.mxu0
        %v1450 = vadd.f32 %v1400, %v1449
        %1451 = vmatmul.f32.gmra.mxu0 %v1376
        %v1452 = vpop.f32.mrf.mxu0
        %v1453 = vadd.f32 %v1401, %v1452
        %1454 = vmatmul.f32.gmra.mxu0 %v1377
        %v1455 = vpop.f32.mrf.mxu0
        %v1456 = vadd.f32 %v1402, %v1455
        %1457 = vmatmul.f32.gmra.mxu0 %v1378
        %v1458 = vpop.f32.mrf.mxu0
        %v1459 = vadd.f32 %v1403, %v1458
        %1460 = vmatmul.f32.gmra.mxu0 %v1379
        %v1461 = vpop.f32.mrf.mxu0
        %v1462 = vadd.f32 %v1404, %v1461
        %1463 = vmatmul.f32.gmra.mxu0 %v1380
        %v1464 = vpop.f32.mrf.mxu0
        %v1465 = vadd.f32 %v1405, %v1464
        %1466 = vmatmul.f32.gmra.mxu0 %v1381
        %v1467 = vpop.f32.mrf.mxu0
        %v1468 = vadd.f32 %v1406, %v1467
        %1469 = vmatmul.f32.gmra.mxu0 %v1382
        %v1470 = vpop.f32.mrf.mxu0
        %v1471 = vadd.f32 %v1407, %v1470
        %1472 = vmatmul.f32.gmra.mxu0 %v1383
        %v1473 = vpop.f32.mrf.mxu0
        %v1474 = vadd.f32 %v1408, %v1473
        %1475 = vmatmul.f32.gmra.mxu0 %v1384
        %v1476 = vpop.f32.mrf.mxu0
        %v1477 = vadd.f32 %v1409, %v1476
        %1478 = vmatmul.f32.gmra.mxu0 %v1385
        %v1479 = vpop.f32.mrf.mxu0
        %v1480 = vadd.f32 %v1410, %v1479
        %1481 = vmatmul.f32.gmra.mxu0 %v1386
        %v1482 = vpop.f32.mrf.mxu0
        %v1483 = vadd.f32 %v1411, %v1482
        %1484 = vmatmul.f32.gmra.mxu0 %v1387
        %v1485 = vpop.f32.mrf.mxu0
        %v1486 = vadd.f32 %v1412, %v1485
        %1487 = vmatmul.f32.gmra.mxu0 %v1388
        %v1488 = vpop.f32.mrf.mxu0
        %v1489 = vadd.f32 %v1413, %v1488
        %1490 = vmatmul.f32.gmra.mxu0 %v1389
        %v1491 = vpop.f32.mrf.mxu0
        %v1492 = vadd.f32 %v1414, %v1491
        %1493 = vmatmul.f32.gmra.mxu0 %v1390
        %v1494 = vpop.f32.mrf.mxu0
        %v1495 = vadd.f32 %v1415, %v1494
        %1496 = vmatmul.f32.gmra.mxu0 %v1391
        %v1497 = vpop.f32.mrf.mxu0
        %v1498 = vadd.f32 %v1416, %v1497
        %1499 = vmatmul.f32.gmra.mxu0 %v1392
        %v1500 = vpop.f32.mrf.mxu0
        %v1501 = vadd.f32 %v1417, %v1500
        %1502 = vmatmul.f32.gmra.mxu0 %v1393
        %v1503 = vpop.f32.mrf.mxu0
        %v1504 = vadd.f32 %v1418, %v1503
        %1505 = vmatmul.f32.gmra.mxu0 %v1394
        %v1506 = vpop.f32.mrf.mxu0
        %v1507 = vadd.f32 %v1419, %v1506
        %1508 = vdwg.mxu0
        %v1509 = vmax.f32 %v1438, 0.0
        %v1510 = vmax.f32 %v1441, 0.0
        %v1511 = vmax.f32 %v1444, 0.0
        %v1512 = vmax.f32 %v1447, 0.0
        %v1513 = vmax.f32 %v1450, 0.0
        %v1514 = vmax.f32 %v1453, 0.0
        %v1515 = vmax.f32 %v1456, 0.0
        %v1516 = vmax.f32 %v1459, 0.0
        %v1517 = vmax.f32 %v1462, 0.0
        %v1518 = vmax.f32 %v1465, 0.0
        %v1519 = vmax.f32 %v1468, 0.0
        %v1520 = vmax.f32 %v1471, 0.0
        %v1521 = vmax.f32 %v1474, 0.0
        %v1522 = vmax.f32 %v1477, 0.0
        %v1523 = vmax.f32 %v1480, 0.0
        %v1524 = vmax.f32 %v1483, 0.0
        %v1525 = vmax.f32 %v1486, 0.0
        %v1526 = vmax.f32 %v1489, 0.0
        %v1527 = vmax.f32 %v1492, 0.0
        %v1528 = vmax.f32 %v1495, 0.0
        %v1529 = vmax.f32 %v1498, 0.0
        %v1530 = vmax.f32 %v1501, 0.0
        %v1531 = vmax.f32 %v1504, 0.0
        %v1532 = vmax.f32 %v1507, 0.0
        %1533 = vst [vmem:[#allocation4 + $0x18] sm:$0xff] %v1509
        %1534 = vst [vmem:[#allocation4 + $0x20] sm:$0xff] %v1510
        %1535 = vst [vmem:[#allocation4 + $0x28] sm:$0xff] %v1511
        %1536 = vst [vmem:[#allocation4 + $0x30] sm:$0xff] %v1512
        %1537 = vst [vmem:[#allocation4 + $0x38] sm:$0xff] %v1513
        %1538 = vst [vmem:[#allocation4 + $0x40] sm:$0xff] %v1514
        %1539 = vst [vmem:[#allocation4 + $0x48] sm:$0xff] %v1515
        %1540 = vst [vmem:[#allocation4 + $0x50] sm:$0xff] %v1516
        %1541 = vst [vmem:[#allocation4 + $0x58] sm:$0xff] %v1517
        %1542 = vst [vmem:[#allocation4 + $0x60] sm:$0xff] %v1518
        %1543 = vst [vmem:[#allocation4 + $0x68] sm:$0xff] %v1519
        %1544 = vst [vmem:[#allocation4 + $0x70] sm:$0xff] %v1520
        %1545 = vst [vmem:[#allocation4 + $0x78] sm:$0xff] %v1521
        %1546 = vst [vmem:[#allocation4 + $0x80] sm:$0xff] %v1522
        %1547 = vst [vmem:[#allocation4 + $0x88] sm:$0xff] %v1523
        %1548 = vst [vmem:[#allocation4 + $0x90] sm:$0xff] %v1524
        %1549 = vst [vmem:[#allocation4 + $0x98] sm:$0xff] %v1525
        %1550 = vst [vmem:[#allocation4 + $0xa0] sm:$0xff] %v1526
        %1551 = vst [vmem:[#allocation4 + $0xa8] sm:$0xff] %v1527
        %1552 = vst [vmem:[#allocation4 + $0xb0] sm:$0xff] %v1528
        %1553 = vst [vmem:[#allocation4 + $0xb8] sm:$0xff] %v1529
        %1554 = vst [vmem:[#allocation4 + $0xc0] sm:$0xff] %v1530
        %1555 = vst [vmem:[#allocation4 + $0xc8] sm:$0xff] %v1531
        %1556 = vst [vmem:[#allocation4 + $0xd0] sm:$0xff] %v1532
        %v1557 = vld [vmem:[#allocation7 + $0xc0] sm:$0xff]
        %v1558 = vld [vmem:[#allocation7 + $0xc8] sm:$0xff]
        %v1559 = vld [vmem:[#allocation7 + $0xd0] sm:$0xff]
        %v1560 = vld [vmem:[#allocation7 + $0xd8] sm:$0xff]
        %v1561 = vld [vmem:[#allocation7 + $0xe0] sm:$0xff]
        %v1562 = vld [vmem:[#allocation7 + $0xe8] sm:$0xff]
        %v1563 = vld [vmem:[#allocation7 + $0xf0] sm:$0xff]
        %v1564 = vld [vmem:[#allocation7 + $0xf8] sm:$0xff]
        %v1565 = vld [vmem:[#allocation7 + $0x100] sm:$0xff]
        %v1566 = vld [vmem:[#allocation7 + $0x108] sm:$0xff]
        %v1567 = vld [vmem:[#allocation7 + $0x110] sm:$0xff]
        %v1568 = vld [vmem:[#allocation7 + $0x118] sm:$0xff]
        %v1569 = vld [vmem:[#allocation7 + $0x120] sm:$0xff]
        %v1570 = vld [vmem:[#allocation7 + $0x128] sm:$0xff]
        %v1571 = vld [vmem:[#allocation7 + $0x130] sm:$0xff]
        %v1572 = vld [vmem:[#allocation7 + $0x138] sm:$0xff]
        %v1573 = vld [vmem:[#allocation7 + $0x140] sm:$0xff]
        %v1574 = vld [vmem:[#allocation7 + $0x148] sm:$0xff]
        %v1575 = vld [vmem:[#allocation7 + $0x150] sm:$0xff]
        %v1576 = vld [vmem:[#allocation7 + $0x158] sm:$0xff]
        %v1577 = vld [vmem:[#allocation7 + $0x160] sm:$0xff]
        %v1578 = vld [vmem:[#allocation7 + $0x168] sm:$0xff]
        %v1579 = vld [vmem:[#allocation7 + $0x170] sm:$0xff]
        %v1580 = vld [vmem:[#allocation7 + $0x178] sm:$0xff]
        %v1581 = vld [vmem:[%s1395] sm:$0xff]
        %v1582 = vld [vmem:[%s1395 + $0x8] sm:$0xff]
        %v1583 = vld [vmem:[%s1395 + $0x10] sm:$0xff]
        %v1584 = vld [vmem:[%s1395 + $0x18] sm:$0xff]
        %v1585 = vld [vmem:[%s1395 + $0x20] sm:$0xff]
        %v1586 = vld [vmem:[%s1395 + $0x28] sm:$0xff]
        %v1587 = vld [vmem:[%s1395 + $0x30] sm:$0xff]
        %v1588 = vld [vmem:[%s1395 + $0x38] sm:$0xff]
        %v1589 = vld [vmem:[%s1395 + $0x40] sm:$0xff]
        %v1590 = vld [vmem:[%s1395 + $0x48] sm:$0xff]
        %v1591 = vld [vmem:[%s1395 + $0x50] sm:$0xff]
        %v1592 = vld [vmem:[%s1395 + $0x58] sm:$0xff]
        %v1593 = vld [vmem:[%s1395 + $0x60] sm:$0xff]
        %v1594 = vld [vmem:[%s1395 + $0x68] sm:$0xff]
        %v1595 = vld [vmem:[%s1395 + $0x70] sm:$0xff]
        %v1596 = vld [vmem:[%s1395 + $0x78] sm:$0xff]
        %v1597 = vld [vmem:[%s1395 + $0x80] sm:$0xff]
        %v1598 = vld [vmem:[%s1395 + $0x88] sm:$0xff]
        %v1599 = vld [vmem:[%s1395 + $0x90] sm:$0xff]
        %v1600 = vld [vmem:[%s1395 + $0x98] sm:$0xff]
        %v1601 = vld [vmem:[%s1395 + $0xa0] sm:$0xff]
        %v1602 = vld [vmem:[%s1395 + $0xa8] sm:$0xff]
        %v1603 = vld [vmem:[%s1395 + $0xb0] sm:$0xff]
        %v1604 = vld [vmem:[%s1395 + $0xb8] sm:$0xff]
        %1605 = vmatpush.msra.mxu0 %v1370
        %1606 = vmatpush.msra.mxu0 %v1369
        %1607 = vmatpush.msra.mxu0 %v1368
        %1608 = vmatpush.msra.mxu0 %v1367
        %1609 = vmatpush.msra.mxu0 %v1366
        %1610 = vmatpush.msra.mxu0 %v1365
        %1611 = vmatpush.msra.mxu0 %v1364
        %1612 = vmatpush.msra.mxu0 %v1363
        %1613 = vmatpush.msra.mxu0 %v1362
        %1614 = vmatpush.msra.mxu0 %v1361
        %1615 = vmatpush.msra.mxu0 %v1360
        %1616 = vmatpush.msra.mxu0 %v1359
        %1617 = vmatpush.msra.mxu0 %v1358
        %1618 = vmatpush.msra.mxu0 %v1357
        %1619 = vmatpush.msra.mxu0 %v1356
        %1620 = vmatpush.msra.mxu0 %v1355
        %1621 = vmatmul.f32.gmra.mxu0 %v1557
        %v1622 = vpop.f32.mrf.mxu0
        %v1623 = vadd.f32 %v1581, %v1622
        %1624 = vmatmul.f32.gmra.mxu0 %v1558
        %v1625 = vpop.f32.mrf.mxu0
        %v1626 = vadd.f32 %v1582, %v1625
        %1627 = vmatmul.f32.gmra.mxu0 %v1559
        %v1628 = vpop.f32.mrf.mxu0
        %v1629 = vadd.f32 %v1583, %v1628
        %1630 = vmatmul.f32.gmra.mxu0 %v1560
        %v1631 = vpop.f32.mrf.mxu0
        %v1632 = vadd.f32 %v1584, %v1631
        %1633 = vmatmul.f32.gmra.mxu0 %v1561
        %v1634 = vpop.f32.mrf.mxu0
        %v1635 = vadd.f32 %v1585, %v1634
        %1636 = vmatmul.f32.gmra.mxu0 %v1562
        %v1637 = vpop.f32.mrf.mxu0
        %v1638 = vadd.f32 %v1586, %v1637
        %1639 = vmatmul.f32.gmra.mxu0 %v1563
        %v1640 = vpop.f32.mrf.mxu0
        %v1641 = vadd.f32 %v1587, %v1640
        %1642 = vmatmul.f32.gmra.mxu0 %v1564
        %v1643 = vpop.f32.mrf.mxu0
        %v1644 = vadd.f32 %v1588, %v1643
        %1645 = vmatmul.f32.gmra.mxu0 %v1565
        %v1646 = vpop.f32.mrf.mxu0
        %v1647 = vadd.f32 %v1589, %v1646
        %1648 = vmatmul.f32.gmra.mxu0 %v1566
        %v1649 = vpop.f32.mrf.mxu0
        %v1650 = vadd.f32 %v1590, %v1649
        %1651 = vmatmul.f32.gmra.mxu0 %v1567
        %v1652 = vpop.f32.mrf.mxu0
        %v1653 = vadd.f32 %v1591, %v1652
        %1654 = vmatmul.f32.gmra.mxu0 %v1568
        %v1655 = vpop.f32.mrf.mxu0
        %v1656 = vadd.f32 %v1592, %v1655
        %1657 = vmatmul.f32.gmra.mxu0 %v1569
        %v1658 = vpop.f32.mrf.mxu0
        %v1659 = vadd.f32 %v1593, %v1658
        %1660 = vmatmul.f32.gmra.mxu0 %v1570
        %v1661 = vpop.f32.mrf.mxu0
        %v1662 = vadd.f32 %v1594, %v1661
        %1663 = vmatmul.f32.gmra.mxu0 %v1571
        %v1664 = vpop.f32.mrf.mxu0
        %v1665 = vadd.f32 %v1595, %v1664
        %1666 = vmatmul.f32.gmra.mxu0 %v1572
        %v1667 = vpop.f32.mrf.mxu0
        %v1668 = vadd.f32 %v1596, %v1667
        %1669 = vmatmul.f32.gmra.mxu0 %v1573
        %v1670 = vpop.f32.mrf.mxu0
        %v1671 = vadd.f32 %v1597, %v1670
        %1672 = vmatmul.f32.gmra.mxu0 %v1574
        %v1673 = vpop.f32.mrf.mxu0
        %v1674 = vadd.f32 %v1598, %v1673
        %1675 = vmatmul.f32.gmra.mxu0 %v1575
        %v1676 = vpop.f32.mrf.mxu0
        %v1677 = vadd.f32 %v1599, %v1676
        %1678 = vmatmul.f32.gmra.mxu0 %v1576
        %v1679 = vpop.f32.mrf.mxu0
        %v1680 = vadd.f32 %v1600, %v1679
        %1681 = vmatmul.f32.gmra.mxu0 %v1577
        %v1682 = vpop.f32.mrf.mxu0
        %v1683 = vadd.f32 %v1601, %v1682
        %1684 = vmatmul.f32.gmra.mxu0 %v1578
        %v1685 = vpop.f32.mrf.mxu0
        %v1686 = vadd.f32 %v1602, %v1685
        %1687 = vmatmul.f32.gmra.mxu0 %v1579
        %v1688 = vpop.f32.mrf.mxu0
        %v1689 = vadd.f32 %v1603, %v1688
        %1690 = vmatmul.f32.gmra.mxu0 %v1580
        %v1691 = vpop.f32.mrf.mxu0
        %v1692 = vadd.f32 %v1604, %v1691
        %1693 = vdwg.mxu0
        %v1694 = vmax.f32 %v1623, 0.0
        %v1695 = vmax.f32 %v1626, 0.0
        %v1696 = vmax.f32 %v1629, 0.0
        %v1697 = vmax.f32 %v1632, 0.0
        %v1698 = vmax.f32 %v1635, 0.0
        %v1699 = vmax.f32 %v1638, 0.0
        %v1700 = vmax.f32 %v1641, 0.0
        %v1701 = vmax.f32 %v1644, 0.0
        %v1702 = vmax.f32 %v1647, 0.0
        %v1703 = vmax.f32 %v1650, 0.0
        %v1704 = vmax.f32 %v1653, 0.0
        %v1705 = vmax.f32 %v1656, 0.0
        %v1706 = vmax.f32 %v1659, 0.0
        %v1707 = vmax.f32 %v1662, 0.0
        %v1708 = vmax.f32 %v1665, 0.0
        %v1709 = vmax.f32 %v1668, 0.0
        %v1710 = vmax.f32 %v1671, 0.0
        %v1711 = vmax.f32 %v1674, 0.0
        %v1712 = vmax.f32 %v1677, 0.0
        %v1713 = vmax.f32 %v1680, 0.0
        %v1714 = vmax.f32 %v1683, 0.0
        %v1715 = vmax.f32 %v1686, 0.0
        %v1716 = vmax.f32 %v1689, 0.0
        %v1717 = vmax.f32 %v1692, 0.0
        %1718 = vst [vmem:[#allocation4 + $0xd8] sm:$0xff] %v1694
        %1719 = vst [vmem:[#allocation4 + $0xe0] sm:$0xff] %v1695
        %1720 = vst [vmem:[#allocation4 + $0xe8] sm:$0xff] %v1696
        %1721 = vst [vmem:[#allocation4 + $0xf0] sm:$0xff] %v1697
        %1722 = vst [vmem:[#allocation4 + $0xf8] sm:$0xff] %v1698
        %1723 = vst [vmem:[#allocation4 + $0x100] sm:$0xff] %v1699
        %1724 = vst [vmem:[#allocation4 + $0x108] sm:$0xff] %v1700
        %1725 = vst [vmem:[#allocation4 + $0x110] sm:$0xff] %v1701
        %1726 = vst [vmem:[#allocation4 + $0x118] sm:$0xff] %v1702
        %1727 = vst [vmem:[#allocation4 + $0x120] sm:$0xff] %v1703
        %1728 = vst [vmem:[#allocation4 + $0x128] sm:$0xff] %v1704
        %1729 = vst [vmem:[#allocation4 + $0x130] sm:$0xff] %v1705
        %1730 = vst [vmem:[#allocation4 + $0x138] sm:$0xff] %v1706
        %1731 = vst [vmem:[#allocation4 + $0x140] sm:$0xff] %v1707
        %1732 = vst [vmem:[#allocation4 + $0x148] sm:$0xff] %v1708
        %1733 = vst [vmem:[#allocation4 + $0x150] sm:$0xff] %v1709
        %1734 = vst [vmem:[#allocation4 + $0x158] sm:$0xff] %v1710
        %1735 = vst [vmem:[#allocation4 + $0x160] sm:$0xff] %v1711
        %1736 = vst [vmem:[#allocation4 + $0x168] sm:$0xff] %v1712
        %1737 = vst [vmem:[#allocation4 + $0x170] sm:$0xff] %v1713
        %1738 = vst [vmem:[#allocation4 + $0x178] sm:$0xff] %v1714
        %1739 = vst [vmem:[#allocation4 + $0x180] sm:$0xff] %v1715
        %1740 = vst [vmem:[#allocation4 + $0x188] sm:$0xff] %v1716
        %1741 = vst [vmem:[#allocation4 + $0x190] sm:$0xff] %v1717
        %v1742 = vld [vmem:[#allocation7 + $0x180] sm:$0xff]
        %v1743 = vld [vmem:[#allocation7 + $0x188] sm:$0xff]
        %v1744 = vld [vmem:[#allocation7 + $0x190] sm:$0xff]
        %v1745 = vld [vmem:[#allocation7 + $0x198] sm:$0xff]
        %v1746 = vld [vmem:[#allocation7 + $0x1a0] sm:$0xff]
        %v1747 = vld [vmem:[#allocation7 + $0x1a8] sm:$0xff]
        %v1748 = vld [vmem:[%s1395] sm:$0xff]
        %v1749 = vld [vmem:[%s1395 + $0x8] sm:$0xff]
        %v1750 = vld [vmem:[%s1395 + $0x10] sm:$0xff]
        %v1751 = vld [vmem:[%s1395 + $0x18] sm:$0xff]
        %v1752 = vld [vmem:[%s1395 + $0x20] sm:$0xff]
        %v1753 = vld [vmem:[%s1395 + $0x28] sm:$0xff]
        %1754 = vmatpush.msra.mxu0 %v1370
        %1755 = vmatpush.msra.mxu0 %v1369
        %1756 = vmatpush.msra.mxu0 %v1368
        %1757 = vmatpush.msra.mxu0 %v1367
        %1758 = vmatpush.msra.mxu0 %v1366
        %1759 = vmatpush.msra.mxu0 %v1365
        %1760 = vmatpush.msra.mxu0 %v1364
        %1761 = vmatpush.msra.mxu0 %v1363
        %1762 = vmatpush.msra.mxu0 %v1362
        %1763 = vmatpush.msra.mxu0 %v1361
        %1764 = vmatpush.msra.mxu0 %v1360
        %1765 = vmatpush.msra.mxu0 %v1359
        %1766 = vmatpush.msra.mxu0 %v1358
        %1767 = vmatpush.msra.mxu0 %v1357
        %1768 = vmatpush.msra.mxu0 %v1356
        %1769 = vmatpush.msra.mxu0 %v1355
        %1770 = vmatmul.f32.gmra.mxu0 %v1742
        %v1771 = vpop.f32.mrf.mxu0
        %v1772 = vadd.f32 %v1748, %v1771
        %1773 = vmatmul.f32.gmra.mxu0 %v1743
        %v1774 = vpop.f32.mrf.mxu0
        %v1775 = vadd.f32 %v1749, %v1774
        %1776 = vmatmul.f32.gmra.mxu0 %v1744
        %v1777 = vpop.f32.mrf.mxu0
        %v1778 = vadd.f32 %v1750, %v1777
        %1779 = vmatmul.f32.gmra.mxu0 %v1745
        %v1780 = vpop.f32.mrf.mxu0
        %v1781 = vadd.f32 %v1751, %v1780
        %1782 = vmatmul.f32.gmra.mxu0 %v1746
        %v1783 = vpop.f32.mrf.mxu0
        %v1784 = vadd.f32 %v1752, %v1783
        %1785 = vmatmul.f32.gmra.mxu0 %v1747
        %v1786 = vpop.f32.mrf.mxu0
        %v1787 = vadd.f32 %v1753, %v1786
        %1788 = vdwg.mxu0
        %v1789 = vmax.f32 %v1772, 0.0
        %v1790 = vmax.f32 %v1775, 0.0
        %v1791 = vmax.f32 %v1778, 0.0
        %v1792 = vmax.f32 %v1781, 0.0
        %v1793 = vmax.f32 %v1784, 0.0
        %v1794 = vmax.f32 %v1787, 0.0
        %1795 = vst [vmem:[#allocation4 + $0x198] sm:$0xff] %v1789
        %1796 = vst [vmem:[#allocation4 + $0x1a0] sm:$0xff] %v1790
        %1797 = vst [vmem:[#allocation4 + $0x1a8] sm:$0xff] %v1791
        %1798 = vst [vmem:[#allocation4 + $0x1b0] sm:$0xff] %v1792
        %1799 = vst [vmem:[#allocation4 + $0x1b8] sm:$0xff] %v1793
        %1800 = vst [vmem:[#allocation4 + $0x1c0] sm:$0xff] %v1794
        %1801 = vst [vmem:[#allocation4] sm:$0xff] 0.0
        %1802 = vst [vmem:[#allocation4 + $0x8] sm:$0xff] 0.0
        %1803 = vst [vmem:[#allocation4 + $0x10] sm:$0xff] 0.0
        %1804 = vst [vmem:[#allocation4 + $0x1c8] sm:$0xff] 0.0
        %1805 = vst [vmem:[#allocation4 + $0x1d0] sm:$0xff] 0.0
        %1806 = vst [vmem:[#allocation4 + $0x1d8] sm:$0xff] 0.0
        %s1807 = scalar_lea.vmem %s2, 32
        %v1808 = vld [vmem:[%s1807] sm:$0xff]
        %v1809 = vld [vmem:[%s1807 + $0x8] sm:$0x1]
        %v1810 = vperm.slane %v1808, 0
        %v1811 = vperm.slane %v1808, 1
        %v1812 = vperm.slane %v1808, 2
        %v1813 = vperm.slane %v1808, 3
        %v1814 = vperm.slane %v1808, 4
        %v1815 = vperm.slane %v1808, 5
        %v1816 = vperm.slane %v1808, 6
        %v1817 = vperm.slane %v1808, 7
        %v1818 = vperm.slane %v1809, 0
        %s1819 = scalar_lea.vmem %s3, 2
        %v1820 = vld [vmem:[%s1819] sm:$0x1]
        %v1822 = vperm.slane %v1820, 0
        %s1824 = scalar_lea.vmem %s8, 48
        %v1825 = vld [vmem:[%s1824] sm:$0xff]
        %v1826 = vld [vmem:[%s1824 + $0x8] sm:$0xff]
        %v1827 = vld [vmem:[%s1824 + $0x10] sm:$0xff]
        %1829 = vset.pattern.permute.xlu0 0
        %1830 = vperm.xlu0 %1829, %v1825
        %v1831 = vpop.permute.xlu0 %1830
        %1834 = vset.pattern.permute.xlu0 0
        %1835 = vperm.xlu0 %1834, %v1826
        %v1836 = vpop.permute.xlu0 %1835
        %1839 = vset.pattern.permute.xlu0 0
        %1840 = vperm.xlu0 %1839, %v1827
        %v1841 = vpop.permute.xlu0 %1840
        %1843 = vst [vmem:[#allocation7] sm:$0xff] 0.0
        %1844 = vst [vmem:[#allocation7 + $0x8] sm:$0xff] 0.0
        %1845 = vst [vmem:[#allocation7 + $0x10] sm:$0xff] 0.0
        %1846 = vst [vmem:[#allocation7 + $0x1c8] sm:$0xff] 0.0
        %1847 = vst [vmem:[#allocation7 + $0x1d0] sm:$0xff] 0.0
        %1848 = vst [vmem:[#allocation7 + $0x1d8] sm:$0xff] 0.0
        loop: start=1, step=1, limit=19
        $region71: #{depthwise_separable_conv_forward.1} parent=55 // loop_pre_header
          _
        $region72: #{depthwise_separable_conv_forward.1} parent=55 // loop_header
          %s1850 = sphi 1, %s1854
          %p1851 = scmp.ge.s32.totalorder %s1850, 19
        $region73: #{depthwise_separable_conv_forward.1} parent=55 // loop_header_branch
          %1853 = sbr.rel (%p1851) target = $region77
        $region74: #{depthwise_separable_conv_forward.1} parent=55 // loop_body
          %s1855 = ssub.s32 %s1850, 1
          %s1856 = smul.u32 %s1855, 24
          %s1857 = smul.u32 %s1850, 24
          %s1858 = sadd.s32 %s1850, 1
          %s1859 = smul.u32 %s1858, 24
          %s1860 = scalar_lea.vmem [#allocation4], %s1856
          %v1861 = vld [vmem:[%s1860] sm:$0xff]
          %v1862 = vld [vmem:[%s1860 + $0x8] sm:$0xff]
          %v1863 = vld [vmem:[%s1860 + $0x10] sm:$0xff]
          %s1864 = scalar_lea.vmem [#allocation4], %s1857
          %v1865 = vld [vmem:[%s1864] sm:$0xff]
          %v1866 = vld [vmem:[%s1864 + $0x8] sm:$0xff]
          %v1867 = vld [vmem:[%s1864 + $0x10] sm:$0xff]
          %s1868 = scalar_lea.vmem [#allocation4], %s1859
          %v1869 = vld [vmem:[%s1868] sm:$0xff]
          %v1870 = vld [vmem:[%s1868 + $0x8] sm:$0xff]
          %v1871 = vld [vmem:[%s1868 + $0x10] sm:$0xff]
          %v1872 = vmul.f32 %v1861, %v1810
          %v1873 = vmul.f32 %v1862, %v1810
          %v1874 = vmul.f32 %v1863, %v1810
          %v1875 = vmul.f32 %v1865, %v1813
          %v1876 = vmul.f32 %v1866, %v1813
          %v1877 = vmul.f32 %v1867, %v1813
          %v1878 = vadd.f32 %v1872, %v1875
          %v1879 = vadd.f32 %v1873, %v1876
          %v1880 = vadd.f32 %v1874, %v1877
          %v1881 = vmul.f32 %v1869, %v1816
          %v1882 = vmul.f32 %v1870, %v1816
          %v1883 = vmul.f32 %v1871, %v1816
          %v1884 = vadd.f32 %v1878, %v1881
          %v1885 = vadd.f32 %v1879, %v1882
          %v1886 = vadd.f32 %v1880, %v1883
          %v1887 = vmul.f32 %v1861, %v1811
          %v1888 = vmul.f32 %v1862, %v1811
          %v1889 = vmul.f32 %v1863, %v1811
          %v1890 = vmul.f32 %v1865, %v1814
          %v1891 = vmul.f32 %v1866, %v1814
          %v1892 = vmul.f32 %v1867, %v1814
          %v1893 = vadd.f32 %v1887, %v1890
          %v1894 = vadd.f32 %v1888, %v1891
          %v1895 = vadd.f32 %v1889, %v1892
          %v1896 = vmul.f32 %v1869, %v1817
          %v1897 = vmul.f32 %v1870, %v1817
          %v1898 = vmul.f32 %v1871, %v1817
          %v1899 = vadd.f32 %v1893, %v1896
          %v1900 = vadd.f32 %v1894, %v1897
          %v1901 = vadd.f32 %v1895, %v1898
          %v1902 = vmul.f32 %v1861, %v1812
          %v1903 = vmul.f32 %v1862, %v1812
          %v1904 = vmul.f32 %v1863, %v1812
          %v1905 = vmul.f32 %v1865, %v1815
          %v1906 = vmul.f32 %v1866, %v1815
          %v1907 = vmul.f32 %v1867, %v1815
          %v1908 = vadd.f32 %v1902, %v1905
          %v1909 = vadd.f32 %v1903, %v1906
          %v1910 = vadd.f32 %v1904, %v1907
          %v1911 = vmul.f32 %v1869, %v1818
          %v1912 = vmul.f32 %v1870, %v1818
          %v1913 = vmul.f32 %v1871, %v1818
          %v1914 = vadd.f32 %v1908, %v1911
          %v1915 = vadd.f32 %v1909, %v1912
          %v1916 = vadd.f32 %v1910, %v1913
          %v1917 = vrot.slane %v1884, 6
          %v1918 = vrot.slane %v1885, 6
          %v1919 = vrot.slane %v1886, 6
          %v1920 = vlaneseq
          %v1921 = vshrl.u32 %v1920, 7
          %vm1922 = vcmp.lt.s32.totalorder %v1921, 2
          %v1923 = vsel %vm1922, %v1918, %v1919
          %v1924 = vsel %vm1922, %v1917, %v1918
          %v1925 = vsel %vm1922, %v1919, %v1917
          %v1926 = vadd.f32 %v1822, %v1925
          %v1927 = vadd.f32 %v1822, %v1924
          %v1928 = vadd.f32 %v1822, %v1923
          %v1929 = vrot.slane %v1899, 7
          %v1930 = vrot.slane %v1900, 7
          %v1931 = vrot.slane %v1901, 7
          %vm1932 = vcmp.lt.s32.totalorder %v1921, 1
          %v1933 = vsel %vm1932, %v1930, %v1931
          %v1934 = vsel %vm1932, %v1929, %v1930
          %v1935 = vsel %vm1932, %v1931, %v1929
          %v1936 = vadd.f32 %v1926, %v1935
          %v1937 = vadd.f32 %v1927, %v1934
          %v1938 = vadd.f32 %v1928, %v1933
          %v1939 = vadd.f32 %v1936, %v1914
          %v1940 = vadd.f32 %v1937, %v1915
          %v1941 = vadd.f32 %v1938, %v1916
          %v1942 = vmul.f32 %v1939, %v1831
          %v1943 = vmul.f32 %v1940, %v1836
          %v1944 = vmul.f32 %v1941, %v1841
          %s1945 = scalar_lea.vmem [#allocation7], %s1857
          %1946 = vst [vmem:[%s1945] sm:$0xff] %v1942
          %1947 = vst [vmem:[%s1945 + $0x8] sm:$0xff] %v1943
          %1948 = vst [vmem:[%s1945 + $0x10] sm:$0xff] %v1944
        $region75: #{depthwise_separable_conv_forward.1} parent=55 // loop_footer
          %s1854 = sadd.s32 1, %s1850
        $region76: #{depthwise_separable_conv_forward.1} parent=55 // loop_footer_branch
          %1849 = sbr.rel target = $region72
        $region77: #{depthwise_separable_conv_forward.1} parent=55 // loop_exit
          _
        %s1949 = scalar_lea.vmem %s4, 256
        %v1950 = vld [vmem:[%s1949] sm:$0xff]
        %v1951 = vld [vmem:[%s1949 + $0x8] sm:$0xff]
        %v1952 = vld [vmem:[%s1949 + $0x10] sm:$0xff]
        %v1953 = vld [vmem:[%s1949 + $0x18] sm:$0xff]
        %v1954 = vld [vmem:[%s1949 + $0x20] sm:$0xff]
        %v1955 = vld [vmem:[%s1949 + $0x28] sm:$0xff]
        %v1956 = vld [vmem:[%s1949 + $0x30] sm:$0xff]
        %v1957 = vld [vmem:[%s1949 + $0x38] sm:$0xff]
        %v1958 = vld [vmem:[%s1949 + $0x40] sm:$0xff]
        %v1959 = vld [vmem:[%s1949 + $0x48] sm:$0xff]
        %v1960 = vld [vmem:[%s1949 + $0x50] sm:$0xff]
        %v1961 = vld [vmem:[%s1949 + $0x58] sm:$0xff]
        %v1962 = vld [vmem:[%s1949 + $0x60] sm:$0xff]
        %v1963 = vld [vmem:[%s1949 + $0x68] sm:$0xff]
        %v1964 = vld [vmem:[%s1949 + $0x70] sm:$0xff]
        %v1965 = vld [vmem:[%s1949 + $0x78] sm:$0xff]
        %v1966 = vld [vmem:[#allocation7] sm:$0xff]
        %v1967 = vld [vmem:[#allocation7 + $0x8] sm:$0xff]
        %v1968 = vld [vmem:[#allocation7 + $0x10] sm:$0xff]
        %v1969 = vld [vmem:[#allocation7 + $0x18] sm:$0xff]
        %v1970 = vld [vmem:[#allocation7 + $0x20] sm:$0xff]
        %v1971 = vld [vmem:[#allocation7 + $0x28] sm:$0xff]
        %v1972 = vld [vmem:[#allocation7 + $0x30] sm:$0xff]
        %v1973 = vld [vmem:[#allocation7 + $0x38] sm:$0xff]
        %v1974 = vld [vmem:[#allocation7 + $0x40] sm:$0xff]
        %v1975 = vld [vmem:[#allocation7 + $0x48] sm:$0xff]
        %v1976 = vld [vmem:[#allocation7 + $0x50] sm:$0xff]
        %v1977 = vld [vmem:[#allocation7 + $0x58] sm:$0xff]
        %v1978 = vld [vmem:[#allocation7 + $0x60] sm:$0xff]
        %v1979 = vld [vmem:[#allocation7 + $0x68] sm:$0xff]
        %v1980 = vld [vmem:[#allocation7 + $0x70] sm:$0xff]
        %v1981 = vld [vmem:[#allocation7 + $0x78] sm:$0xff]
        %v1982 = vld [vmem:[#allocation7 + $0x80] sm:$0xff]
        %v1983 = vld [vmem:[#allocation7 + $0x88] sm:$0xff]
        %v1984 = vld [vmem:[#allocation7 + $0x90] sm:$0xff]
        %v1985 = vld [vmem:[#allocation7 + $0x98] sm:$0xff]
        %v1986 = vld [vmem:[#allocation7 + $0xa0] sm:$0xff]
        %v1987 = vld [vmem:[#allocation7 + $0xa8] sm:$0xff]
        %v1988 = vld [vmem:[#allocation7 + $0xb0] sm:$0xff]
        %v1989 = vld [vmem:[#allocation7 + $0xb8] sm:$0xff]
        %s1990 = scalar_lea.vmem %s7, 576
        %v1991 = vld [vmem:[%s1990] sm:$0xff]
        %v1992 = vld [vmem:[%s1990 + $0x8] sm:$0xff]
        %v1993 = vld [vmem:[%s1990 + $0x10] sm:$0xff]
        %v1994 = vld [vmem:[%s1990 + $0x18] sm:$0xff]
        %v1995 = vld [vmem:[%s1990 + $0x20] sm:$0xff]
        %v1996 = vld [vmem:[%s1990 + $0x28] sm:$0xff]
        %v1997 = vld [vmem:[%s1990 + $0x30] sm:$0xff]
        %v1998 = vld [vmem:[%s1990 + $0x38] sm:$0xff]
        %v1999 = vld [vmem:[%s1990 + $0x40] sm:$0xff]
        %v2000 = vld [vmem:[%s1990 + $0x48] sm:$0xff]
        %v2001 = vld [vmem:[%s1990 + $0x50] sm:$0xff]
        %v2002 = vld [vmem:[%s1990 + $0x58] sm:$0xff]
        %v2003 = vld [vmem:[%s1990 + $0x60] sm:$0xff]
        %v2004 = vld [vmem:[%s1990 + $0x68] sm:$0xff]
        %v2005 = vld [vmem:[%s1990 + $0x70] sm:$0xff]
        %v2006 = vld [vmem:[%s1990 + $0x78] sm:$0xff]
        %v2007 = vld [vmem:[%s1990 + $0x80] sm:$0xff]
        %v2008 = vld [vmem:[%s1990 + $0x88] sm:$0xff]
        %v2009 = vld [vmem:[%s1990 + $0x90] sm:$0xff]
        %v2010 = vld [vmem:[%s1990 + $0x98] sm:$0xff]
        %v2011 = vld [vmem:[%s1990 + $0xa0] sm:$0xff]
        %v2012 = vld [vmem:[%s1990 + $0xa8] sm:$0xff]
        %v2013 = vld [vmem:[%s1990 + $0xb0] sm:$0xff]
        %v2014 = vld [vmem:[%s1990 + $0xb8] sm:$0xff]
        %2015 = vmatpush.msra.mxu0 %v1965
        %2016 = vmatpush.msra.mxu0 %v1964
        %2017 = vmatpush.msra.mxu0 %v1963
        %2018 = vmatpush.msra.mxu0 %v1962
        %2019 = vmatpush.msra.mxu0 %v1961
        %2020 = vmatpush.msra.mxu0 %v1960
        %2021 = vmatpush.msra.mxu0 %v1959
        %2022 = vmatpush.msra.mxu0 %v1958
        %2023 = vmatpush.msra.mxu0 %v1957
        %2024 = vmatpush.msra.mxu0 %v1956
        %2025 = vmatpush.msra.mxu0 %v1955
        %2026 = vmatpush.msra.mxu0 %v1954
        %2027 = vmatpush.msra.mxu0 %v1953
        %2028 = vmatpush.msra.mxu0 %v1952
        %2029 = vmatpush.msra.mxu0 %v1951
        %2030 = vmatpush.msra.mxu0 %v1950
        %2031 = vmatmul.f32.gmra.mxu0 %v1966
        %v2032 = vpop.f32.mrf.mxu0
        %v2033 = vadd.f32 %v1991, %v2032
        %2034 = vmatmul.f32.gmra.mxu0 %v1967
        %v2035 = vpop.f32.mrf.mxu0
        %v2036 = vadd.f32 %v1992, %v2035
        %2037 = vmatmul.f32.gmra.mxu0 %v1968
        %v2038 = vpop.f32.mrf.mxu0
        %v2039 = vadd.f32 %v1993, %v2038
        %2040 = vmatmul.f32.gmra.mxu0 %v1969
        %v2041 = vpop.f32.mrf.mxu0
        %v2042 = vadd.f32 %v1994, %v2041
        %2043 = vmatmul.f32.gmra.mxu0 %v1970
        %v2044 = vpop.f32.mrf.mxu0
        %v2045 = vadd.f32 %v1995, %v2044
        %2046 = vmatmul.f32.gmra.mxu0 %v1971
        %v2047 = vpop.f32.mrf.mxu0
        %v2048 = vadd.f32 %v1996, %v2047
        %2049 = vmatmul.f32.gmra.mxu0 %v1972
        %v2050 = vpop.f32.mrf.mxu0
        %v2051 = vadd.f32 %v1997, %v2050
        %2052 = vmatmul.f32.gmra.mxu0 %v1973
        %v2053 = vpop.f32.mrf.mxu0
        %v2054 = vadd.f32 %v1998, %v2053
        %2055 = vmatmul.f32.gmra.mxu0 %v1974
        %v2056 = vpop.f32.mrf.mxu0
        %v2057 = vadd.f32 %v1999, %v2056
        %2058 = vmatmul.f32.gmra.mxu0 %v1975
        %v2059 = vpop.f32.mrf.mxu0
        %v2060 = vadd.f32 %v2000, %v2059
        %2061 = vmatmul.f32.gmra.mxu0 %v1976
        %v2062 = vpop.f32.mrf.mxu0
        %v2063 = vadd.f32 %v2001, %v2062
        %2064 = vmatmul.f32.gmra.mxu0 %v1977
        %v2065 = vpop.f32.mrf.mxu0
        %v2066 = vadd.f32 %v2002, %v2065
        %2067 = vmatmul.f32.gmra.mxu0 %v1978
        %v2068 = vpop.f32.mrf.mxu0
        %v2069 = vadd.f32 %v2003, %v2068
        %2070 = vmatmul.f32.gmra.mxu0 %v1979
        %v2071 = vpop.f32.mrf.mxu0
        %v2072 = vadd.f32 %v2004, %v2071
        %2073 = vmatmul.f32.gmra.mxu0 %v1980
        %v2074 = vpop.f32.mrf.mxu0
        %v2075 = vadd.f32 %v2005, %v2074
        %2076 = vmatmul.f32.gmra.mxu0 %v1981
        %v2077 = vpop.f32.mrf.mxu0
        %v2078 = vadd.f32 %v2006, %v2077
        %2079 = vmatmul.f32.gmra.mxu0 %v1982
        %v2080 = vpop.f32.mrf.mxu0
        %v2081 = vadd.f32 %v2007, %v2080
        %2082 = vmatmul.f32.gmra.mxu0 %v1983
        %v2083 = vpop.f32.mrf.mxu0
        %v2084 = vadd.f32 %v2008, %v2083
        %2085 = vmatmul.f32.gmra.mxu0 %v1984
        %v2086 = vpop.f32.mrf.mxu0
        %v2087 = vadd.f32 %v2009, %v2086
        %2088 = vmatmul.f32.gmra.mxu0 %v1985
        %v2089 = vpop.f32.mrf.mxu0
        %v2090 = vadd.f32 %v2010, %v2089
        %2091 = vmatmul.f32.gmra.mxu0 %v1986
        %v2092 = vpop.f32.mrf.mxu0
        %v2093 = vadd.f32 %v2011, %v2092
        %2094 = vmatmul.f32.gmra.mxu0 %v1987
        %v2095 = vpop.f32.mrf.mxu0
        %v2096 = vadd.f32 %v2012, %v2095
        %2097 = vmatmul.f32.gmra.mxu0 %v1988
        %v2098 = vpop.f32.mrf.mxu0
        %v2099 = vadd.f32 %v2013, %v2098
        %2100 = vmatmul.f32.gmra.mxu0 %v1989
        %v2101 = vpop.f32.mrf.mxu0
        %v2102 = vadd.f32 %v2014, %v2101
        %2103 = vdwg.mxu0
        %v2104 = vmax.f32 %v2033, 0.0
        %v2105 = vmax.f32 %v2036, 0.0
        %v2106 = vmax.f32 %v2039, 0.0
        %v2107 = vmax.f32 %v2042, 0.0
        %v2108 = vmax.f32 %v2045, 0.0
        %v2109 = vmax.f32 %v2048, 0.0
        %v2110 = vmax.f32 %v2051, 0.0
        %v2111 = vmax.f32 %v2054, 0.0
        %v2112 = vmax.f32 %v2057, 0.0
        %v2113 = vmax.f32 %v2060, 0.0
        %v2114 = vmax.f32 %v2063, 0.0
        %v2115 = vmax.f32 %v2066, 0.0
        %v2116 = vmax.f32 %v2069, 0.0
        %v2117 = vmax.f32 %v2072, 0.0
        %v2118 = vmax.f32 %v2075, 0.0
        %v2119 = vmax.f32 %v2078, 0.0
        %v2120 = vmax.f32 %v2081, 0.0
        %v2121 = vmax.f32 %v2084, 0.0
        %v2122 = vmax.f32 %v2087, 0.0
        %v2123 = vmax.f32 %v2090, 0.0
        %v2124 = vmax.f32 %v2093, 0.0
        %v2125 = vmax.f32 %v2096, 0.0
        %v2126 = vmax.f32 %v2099, 0.0
        %v2127 = vmax.f32 %v2102, 0.0
        %2128 = vst [vmem:[#allocation5 + $0x18] sm:$0xff] %v2104
        %2129 = vst [vmem:[#allocation5 + $0x20] sm:$0xff] %v2105
        %2130 = vst [vmem:[#allocation5 + $0x28] sm:$0xff] %v2106
        %2131 = vst [vmem:[#allocation5 + $0x30] sm:$0xff] %v2107
        %2132 = vst [vmem:[#allocation5 + $0x38] sm:$0xff] %v2108
        %2133 = vst [vmem:[#allocation5 + $0x40] sm:$0xff] %v2109
        %2134 = vst [vmem:[#allocation5 + $0x48] sm:$0xff] %v2110
        %2135 = vst [vmem:[#allocation5 + $0x50] sm:$0xff] %v2111
        %2136 = vst [vmem:[#allocation5 + $0x58] sm:$0xff] %v2112
        %2137 = vst [vmem:[#allocation5 + $0x60] sm:$0xff] %v2113
        %2138 = vst [vmem:[#allocation5 + $0x68] sm:$0xff] %v2114
        %2139 = vst [vmem:[#allocation5 + $0x70] sm:$0xff] %v2115
        %2140 = vst [vmem:[#allocation5 + $0x78] sm:$0xff] %v2116
        %2141 = vst [vmem:[#allocation5 + $0x80] sm:$0xff] %v2117
        %2142 = vst [vmem:[#allocation5 + $0x88] sm:$0xff] %v2118
        %2143 = vst [vmem:[#allocation5 + $0x90] sm:$0xff] %v2119
        %2144 = vst [vmem:[#allocation5 + $0x98] sm:$0xff] %v2120
        %2145 = vst [vmem:[#allocation5 + $0xa0] sm:$0xff] %v2121
        %2146 = vst [vmem:[#allocation5 + $0xa8] sm:$0xff] %v2122
        %2147 = vst [vmem:[#allocation5 + $0xb0] sm:$0xff] %v2123
        %2148 = vst [vmem:[#allocation5 + $0xb8] sm:$0xff] %v2124
        %2149 = vst [vmem:[#allocation5 + $0xc0] sm:$0xff] %v2125
        %2150 = vst [vmem:[#allocation5 + $0xc8] sm:$0xff] %v2126
        %2151 = vst [vmem:[#allocation5 + $0xd0] sm:$0xff] %v2127
        %v2152 = vld [vmem:[#allocation7 + $0xc0] sm:$0xff]
        %v2153 = vld [vmem:[#allocation7 + $0xc8] sm:$0xff]
        %v2154 = vld [vmem:[#allocation7 + $0xd0] sm:$0xff]
        %v2155 = vld [vmem:[#allocation7 + $0xd8] sm:$0xff]
        %v2156 = vld [vmem:[#allocation7 + $0xe0] sm:$0xff]
        %v2157 = vld [vmem:[#allocation7 + $0xe8] sm:$0xff]
        %v2158 = vld [vmem:[#allocation7 + $0xf0] sm:$0xff]
        %v2159 = vld [vmem:[#allocation7 + $0xf8] sm:$0xff]
        %v2160 = vld [vmem:[#allocation7 + $0x100] sm:$0xff]
        %v2161 = vld [vmem:[#allocation7 + $0x108] sm:$0xff]
        %v2162 = vld [vmem:[#allocation7 + $0x110] sm:$0xff]
        %v2163 = vld [vmem:[#allocation7 + $0x118] sm:$0xff]
        %v2164 = vld [vmem:[#allocation7 + $0x120] sm:$0xff]
        %v2165 = vld [vmem:[#allocation7 + $0x128] sm:$0xff]
        %v2166 = vld [vmem:[#allocation7 + $0x130] sm:$0xff]
        %v2167 = vld [vmem:[#allocation7 + $0x138] sm:$0xff]
        %v2168 = vld [vmem:[#allocation7 + $0x140] sm:$0xff]
        %v2169 = vld [vmem:[#allocation7 + $0x148] sm:$0xff]
        %v2170 = vld [vmem:[#allocation7 + $0x150] sm:$0xff]
        %v2171 = vld [vmem:[#allocation7 + $0x158] sm:$0xff]
        %v2172 = vld [vmem:[#allocation7 + $0x160] sm:$0xff]
        %v2173 = vld [vmem:[#allocation7 + $0x168] sm:$0xff]
        %v2174 = vld [vmem:[#allocation7 + $0x170] sm:$0xff]
        %v2175 = vld [vmem:[#allocation7 + $0x178] sm:$0xff]
        %v2176 = vld [vmem:[%s1990] sm:$0xff]
        %v2177 = vld [vmem:[%s1990 + $0x8] sm:$0xff]
        %v2178 = vld [vmem:[%s1990 + $0x10] sm:$0xff]
        %v2179 = vld [vmem:[%s1990 + $0x18] sm:$0xff]
        %v2180 = vld [vmem:[%s1990 + $0x20] sm:$0xff]
        %v2181 = vld [vmem:[%s1990 + $0x28] sm:$0xff]
        %v2182 = vld [vmem:[%s1990 + $0x30] sm:$0xff]
        %v2183 = vld [vmem:[%s1990 + $0x38] sm:$0xff]
        %v2184 = vld [vmem:[%s1990 + $0x40] sm:$0xff]
        %v2185 = vld [vmem:[%s1990 + $0x48] sm:$0xff]
        %v2186 = vld [vmem:[%s1990 + $0x50] sm:$0xff]
        %v2187 = vld [vmem:[%s1990 + $0x58] sm:$0xff]
        %v2188 = vld [vmem:[%s1990 + $0x60] sm:$0xff]
        %v2189 = vld [vmem:[%s1990 + $0x68] sm:$0xff]
        %v2190 = vld [vmem:[%s1990 + $0x70] sm:$0xff]
        %v2191 = vld [vmem:[%s1990 + $0x78] sm:$0xff]
        %v2192 = vld [vmem:[%s1990 + $0x80] sm:$0xff]
        %v2193 = vld [vmem:[%s1990 + $0x88] sm:$0xff]
        %v2194 = vld [vmem:[%s1990 + $0x90] sm:$0xff]
        %v2195 = vld [vmem:[%s1990 + $0x98] sm:$0xff]
        %v2196 = vld [vmem:[%s1990 + $0xa0] sm:$0xff]
        %v2197 = vld [vmem:[%s1990 + $0xa8] sm:$0xff]
        %v2198 = vld [vmem:[%s1990 + $0xb0] sm:$0xff]
        %v2199 = vld [vmem:[%s1990 + $0xb8] sm:$0xff]
        %2200 = vmatpush.msra.mxu0 %v1965
        %2201 = vmatpush.msra.mxu0 %v1964
        %2202 = vmatpush.msra.mxu0 %v1963
        %2203 = vmatpush.msra.mxu0 %v1962
        %2204 = vmatpush.msra.mxu0 %v1961
        %2205 = vmatpush.msra.mxu0 %v1960
        %2206 = vmatpush.msra.mxu0 %v1959
        %2207 = vmatpush.msra.mxu0 %v1958
        %2208 = vmatpush.msra.mxu0 %v1957
        %2209 = vmatpush.msra.mxu0 %v1956
        %2210 = vmatpush.msra.mxu0 %v1955
        %2211 = vmatpush.msra.mxu0 %v1954
        %2212 = vmatpush.msra.mxu0 %v1953
        %2213 = vmatpush.msra.mxu0 %v1952
        %2214 = vmatpush.msra.mxu0 %v1951
        %2215 = vmatpush.msra.mxu0 %v1950
        %2216 = vmatmul.f32.gmra.mxu0 %v2152
        %v2217 = vpop.f32.mrf.mxu0
        %v2218 = vadd.f32 %v2176, %v2217
        %2219 = vmatmul.f32.gmra.mxu0 %v2153
        %v2220 = vpop.f32.mrf.mxu0
        %v2221 = vadd.f32 %v2177, %v2220
        %2222 = vmatmul.f32.gmra.mxu0 %v2154
        %v2223 = vpop.f32.mrf.mxu0
        %v2224 = vadd.f32 %v2178, %v2223
        %2225 = vmatmul.f32.gmra.mxu0 %v2155
        %v2226 = vpop.f32.mrf.mxu0
        %v2227 = vadd.f32 %v2179, %v2226
        %2228 = vmatmul.f32.gmra.mxu0 %v2156
        %v2229 = vpop.f32.mrf.mxu0
        %v2230 = vadd.f32 %v2180, %v2229
        %2231 = vmatmul.f32.gmra.mxu0 %v2157
        %v2232 = vpop.f32.mrf.mxu0
        %v2233 = vadd.f32 %v2181, %v2232
        %2234 = vmatmul.f32.gmra.mxu0 %v2158
        %v2235 = vpop.f32.mrf.mxu0
        %v2236 = vadd.f32 %v2182, %v2235
        %2237 = vmatmul.f32.gmra.mxu0 %v2159
        %v2238 = vpop.f32.mrf.mxu0
        %v2239 = vadd.f32 %v2183, %v2238
        %2240 = vmatmul.f32.gmra.mxu0 %v2160
        %v2241 = vpop.f32.mrf.mxu0
        %v2242 = vadd.f32 %v2184, %v2241
        %2243 = vmatmul.f32.gmra.mxu0 %v2161
        %v2244 = vpop.f32.mrf.mxu0
        %v2245 = vadd.f32 %v2185, %v2244
        %2246 = vmatmul.f32.gmra.mxu0 %v2162
        %v2247 = vpop.f32.mrf.mxu0
        %v2248 = vadd.f32 %v2186, %v2247
        %2249 = vmatmul.f32.gmra.mxu0 %v2163
        %v2250 = vpop.f32.mrf.mxu0
        %v2251 = vadd.f32 %v2187, %v2250
        %2252 = vmatmul.f32.gmra.mxu0 %v2164
        %v2253 = vpop.f32.mrf.mxu0
        %v2254 = vadd.f32 %v2188, %v2253
        %2255 = vmatmul.f32.gmra.mxu0 %v2165
        %v2256 = vpop.f32.mrf.mxu0
        %v2257 = vadd.f32 %v2189, %v2256
        %2258 = vmatmul.f32.gmra.mxu0 %v2166
        %v2259 = vpop.f32.mrf.mxu0
        %v2260 = vadd.f32 %v2190, %v2259
        %2261 = vmatmul.f32.gmra.mxu0 %v2167
        %v2262 = vpop.f32.mrf.mxu0
        %v2263 = vadd.f32 %v2191, %v2262
        %2264 = vmatmul.f32.gmra.mxu0 %v2168
        %v2265 = vpop.f32.mrf.mxu0
        %v2266 = vadd.f32 %v2192, %v2265
        %2267 = vmatmul.f32.gmra.mxu0 %v2169
        %v2268 = vpop.f32.mrf.mxu0
        %v2269 = vadd.f32 %v2193, %v2268
        %2270 = vmatmul.f32.gmra.mxu0 %v2170
        %v2271 = vpop.f32.mrf.mxu0
        %v2272 = vadd.f32 %v2194, %v2271
        %2273 = vmatmul.f32.gmra.mxu0 %v2171
        %v2274 = vpop.f32.mrf.mxu0
        %v2275 = vadd.f32 %v2195, %v2274
        %2276 = vmatmul.f32.gmra.mxu0 %v2172
        %v2277 = vpop.f32.mrf.mxu0
        %v2278 = vadd.f32 %v2196, %v2277
        %2279 = vmatmul.f32.gmra.mxu0 %v2173
        %v2280 = vpop.f32.mrf.mxu0
        %v2281 = vadd.f32 %v2197, %v2280
        %2282 = vmatmul.f32.gmra.mxu0 %v2174
        %v2283 = vpop.f32.mrf.mxu0
        %v2284 = vadd.f32 %v2198, %v2283
        %2285 = vmatmul.f32.gmra.mxu0 %v2175
        %v2286 = vpop.f32.mrf.mxu0
        %v2287 = vadd.f32 %v2199, %v2286
        %2288 = vdwg.mxu0
        %v2289 = vmax.f32 %v2218, 0.0
        %v2290 = vmax.f32 %v2221, 0.0
        %v2291 = vmax.f32 %v2224, 0.0
        %v2292 = vmax.f32 %v2227, 0.0
        %v2293 = vmax.f32 %v2230, 0.0
        %v2294 = vmax.f32 %v2233, 0.0
        %v2295 = vmax.f32 %v2236, 0.0
        %v2296 = vmax.f32 %v2239, 0.0
        %v2297 = vmax.f32 %v2242, 0.0
        %v2298 = vmax.f32 %v2245, 0.0
        %v2299 = vmax.f32 %v2248, 0.0
        %v2300 = vmax.f32 %v2251, 0.0
        %v2301 = vmax.f32 %v2254, 0.0
        %v2302 = vmax.f32 %v2257, 0.0
        %v2303 = vmax.f32 %v2260, 0.0
        %v2304 = vmax.f32 %v2263, 0.0
        %v2305 = vmax.f32 %v2266, 0.0
        %v2306 = vmax.f32 %v2269, 0.0
        %v2307 = vmax.f32 %v2272, 0.0
        %v2308 = vmax.f32 %v2275, 0.0
        %v2309 = vmax.f32 %v2278, 0.0
        %v2310 = vmax.f32 %v2281, 0.0
        %v2311 = vmax.f32 %v2284, 0.0
        %v2312 = vmax.f32 %v2287, 0.0
        %2313 = vst [vmem:[#allocation5 + $0xd8] sm:$0xff] %v2289
        %2314 = vst [vmem:[#allocation5 + $0xe0] sm:$0xff] %v2290
        %2315 = vst [vmem:[#allocation5 + $0xe8] sm:$0xff] %v2291
        %2316 = vst [vmem:[#allocation5 + $0xf0] sm:$0xff] %v2292
        %2317 = vst [vmem:[#allocation5 + $0xf8] sm:$0xff] %v2293
        %2318 = vst [vmem:[#allocation5 + $0x100] sm:$0xff] %v2294
        %2319 = vst [vmem:[#allocation5 + $0x108] sm:$0xff] %v2295
        %2320 = vst [vmem:[#allocation5 + $0x110] sm:$0xff] %v2296
        %2321 = vst [vmem:[#allocation5 + $0x118] sm:$0xff] %v2297
        %2322 = vst [vmem:[#allocation5 + $0x120] sm:$0xff] %v2298
        %2323 = vst [vmem:[#allocation5 + $0x128] sm:$0xff] %v2299
        %2324 = vst [vmem:[#allocation5 + $0x130] sm:$0xff] %v2300
        %2325 = vst [vmem:[#allocation5 + $0x138] sm:$0xff] %v2301
        %2326 = vst [vmem:[#allocation5 + $0x140] sm:$0xff] %v2302
        %2327 = vst [vmem:[#allocation5 + $0x148] sm:$0xff] %v2303
        %2328 = vst [vmem:[#allocation5 + $0x150] sm:$0xff] %v2304
        %2329 = vst [vmem:[#allocation5 + $0x158] sm:$0xff] %v2305
        %2330 = vst [vmem:[#allocation5 + $0x160] sm:$0xff] %v2306
        %2331 = vst [vmem:[#allocation5 + $0x168] sm:$0xff] %v2307
        %2332 = vst [vmem:[#allocation5 + $0x170] sm:$0xff] %v2308
        %2333 = vst [vmem:[#allocation5 + $0x178] sm:$0xff] %v2309
        %2334 = vst [vmem:[#allocation5 + $0x180] sm:$0xff] %v2310
        %2335 = vst [vmem:[#allocation5 + $0x188] sm:$0xff] %v2311
        %2336 = vst [vmem:[#allocation5 + $0x190] sm:$0xff] %v2312
        %v2337 = vld [vmem:[#allocation7 + $0x180] sm:$0xff]
        %v2338 = vld [vmem:[#allocation7 + $0x188] sm:$0xff]
        %v2339 = vld [vmem:[#allocation7 + $0x190] sm:$0xff]
        %v2340 = vld [vmem:[#allocation7 + $0x198] sm:$0xff]
        %v2341 = vld [vmem:[#allocation7 + $0x1a0] sm:$0xff]
        %v2342 = vld [vmem:[#allocation7 + $0x1a8] sm:$0xff]
        %v2343 = vld [vmem:[#allocation7 + $0x1b0] sm:$0xff]
        %v2344 = vld [vmem:[#allocation7 + $0x1b8] sm:$0xff]
        %v2345 = vld [vmem:[#allocation7 + $0x1c0] sm:$0xff]
        %v2346 = vld [vmem:[#allocation7 + $0x1c8] sm:$0xff]
        %v2347 = vld [vmem:[#allocation7 + $0x1d0] sm:$0xff]
        %v2348 = vld [vmem:[#allocation7 + $0x1d8] sm:$0xff]
        %v2349 = vld [vmem:[%s1990] sm:$0xff]
        %v2350 = vld [vmem:[%s1990 + $0x8] sm:$0xff]
        %v2351 = vld [vmem:[%s1990 + $0x10] sm:$0xff]
        %v2352 = vld [vmem:[%s1990 + $0x18] sm:$0xff]
        %v2353 = vld [vmem:[%s1990 + $0x20] sm:$0xff]
        %v2354 = vld [vmem:[%s1990 + $0x28] sm:$0xff]
        %v2355 = vld [vmem:[%s1990 + $0x30] sm:$0xff]
        %v2356 = vld [vmem:[%s1990 + $0x38] sm:$0xff]
        %v2357 = vld [vmem:[%s1990 + $0x40] sm:$0xff]
        %v2358 = vld [vmem:[%s1990 + $0x48] sm:$0xff]
        %v2359 = vld [vmem:[%s1990 + $0x50] sm:$0xff]
        %v2360 = vld [vmem:[%s1990 + $0x58] sm:$0xff]
        %2361 = vmatpush.msra.mxu0 %v1965
        %2362 = vmatpush.msra.mxu0 %v1964
        %2363 = vmatpush.msra.mxu0 %v1963
        %2364 = vmatpush.msra.mxu0 %v1962
        %2365 = vmatpush.msra.mxu0 %v1961
        %2366 = vmatpush.msra.mxu0 %v1960
        %2367 = vmatpush.msra.mxu0 %v1959
        %2368 = vmatpush.msra.mxu0 %v1958
        %2369 = vmatpush.msra.mxu0 %v1957
        %2370 = vmatpush.msra.mxu0 %v1956
        %2371 = vmatpush.msra.mxu0 %v1955
        %2372 = vmatpush.msra.mxu0 %v1954
        %2373 = vmatpush.msra.mxu0 %v1953
        %2374 = vmatpush.msra.mxu0 %v1952
        %2375 = vmatpush.msra.mxu0 %v1951
        %2376 = vmatpush.msra.mxu0 %v1950
        %2377 = vmatmul.f32.gmra.mxu0 %v2337
        %v2378 = vpop.f32.mrf.mxu0
        %v2379 = vadd.f32 %v2349, %v2378
        %2380 = vmatmul.f32.gmra.mxu0 %v2338
        %v2381 = vpop.f32.mrf.mxu0
        %v2382 = vadd.f32 %v2350, %v2381
        %2383 = vmatmul.f32.gmra.mxu0 %v2339
        %v2384 = vpop.f32.mrf.mxu0
        %v2385 = vadd.f32 %v2351, %v2384
        %2386 = vmatmul.f32.gmra.mxu0 %v2340
        %v2387 = vpop.f32.mrf.mxu0
        %v2388 = vadd.f32 %v2352, %v2387
        %2389 = vmatmul.f32.gmra.mxu0 %v2341
        %v2390 = vpop.f32.mrf.mxu0
        %v2391 = vadd.f32 %v2353, %v2390
        %2392 = vmatmul.f32.gmra.mxu0 %v2342
        %v2393 = vpop.f32.mrf.mxu0
        %v2394 = vadd.f32 %v2354, %v2393
        %2395 = vmatmul.f32.gmra.mxu0 %v2343
        %v2396 = vpop.f32.mrf.mxu0
        %v2397 = vadd.f32 %v2355, %v2396
        %2398 = vmatmul.f32.gmra.mxu0 %v2344
        %v2399 = vpop.f32.mrf.mxu0
        %v2400 = vadd.f32 %v2356, %v2399
        %2401 = vmatmul.f32.gmra.mxu0 %v2345
        %v2402 = vpop.f32.mrf.mxu0
        %v2403 = vadd.f32 %v2357, %v2402
        %2404 = vmatmul.f32.gmra.mxu0 %v2346
        %v2405 = vpop.f32.mrf.mxu0
        %v2406 = vadd.f32 %v2358, %v2405
        %2407 = vmatmul.f32.gmra.mxu0 %v2347
        %v2408 = vpop.f32.mrf.mxu0
        %v2409 = vadd.f32 %v2359, %v2408
        %2410 = vmatmul.f32.gmra.mxu0 %v2348
        %v2411 = vpop.f32.mrf.mxu0
        %v2412 = vadd.f32 %v2360, %v2411
        %2413 = vdwg.mxu0
        %v2414 = vmax.f32 %v2379, 0.0
        %v2415 = vmax.f32 %v2382, 0.0
        %v2416 = vmax.f32 %v2385, 0.0
        %v2417 = vmax.f32 %v2388, 0.0
        %v2418 = vmax.f32 %v2391, 0.0
        %v2419 = vmax.f32 %v2394, 0.0
        %v2420 = vmax.f32 %v2397, 0.0
        %v2421 = vmax.f32 %v2400, 0.0
        %v2422 = vmax.f32 %v2403, 0.0
        %v2423 = vmax.f32 %v2406, 0.0
        %v2424 = vmax.f32 %v2409, 0.0
        %v2425 = vmax.f32 %v2412, 0.0
        %2426 = vst [vmem:[#allocation5 + $0x198] sm:$0xff] %v2414
        %2427 = vst [vmem:[#allocation5 + $0x1a0] sm:$0xff] %v2415
        %2428 = vst [vmem:[#allocation5 + $0x1a8] sm:$0xff] %v2416
        %2429 = vst [vmem:[#allocation5 + $0x1b0] sm:$0xff] %v2417
        %2430 = vst [vmem:[#allocation5 + $0x1b8] sm:$0xff] %v2418
        %2431 = vst [vmem:[#allocation5 + $0x1c0] sm:$0xff] %v2419
        %2432 = vst [vmem:[#allocation5 + $0x1c8] sm:$0xff] %v2420
        %2433 = vst [vmem:[#allocation5 + $0x1d0] sm:$0xff] %v2421
        %2434 = vst [vmem:[#allocation5 + $0x1d8] sm:$0xff] %v2422
        %2435 = vst [vmem:[#allocation5 + $0x1e0] sm:$0xff] %v2423
        %2436 = vst [vmem:[#allocation5 + $0x1e8] sm:$0xff] %v2424
        %2437 = vst [vmem:[#allocation5 + $0x1f0] sm:$0xff] %v2425
        %2438 = vst [vmem:[#allocation5] sm:$0xff] 0.0
        %2439 = vst [vmem:[#allocation5 + $0x8] sm:$0xff] 0.0
        %2440 = vst [vmem:[#allocation5 + $0x10] sm:$0xff] 0.0
        %2441 = vst [vmem:[#allocation5 + $0x1f8] sm:$0xff] 0.0
        %2442 = vst [vmem:[#allocation5 + $0x200] sm:$0xff] 0.0
        %2443 = vst [vmem:[#allocation5 + $0x208] sm:$0xff] 0.0
        %s2444 = scalar_lea.vmem %s2, 48
        %v2445 = vld [vmem:[%s2444] sm:$0xff]
        %v2446 = vld [vmem:[%s2444 + $0x8] sm:$0x1]
        %v2447 = vperm.slane %v2445, 0
        %v2448 = vperm.slane %v2445, 1
        %v2449 = vperm.slane %v2445, 2
        %v2450 = vperm.slane %v2445, 3
        %v2451 = vperm.slane %v2445, 4
        %v2452 = vperm.slane %v2445, 5
        %v2453 = vperm.slane %v2445, 6
        %v2454 = vperm.slane %v2445, 7
        %v2455 = vperm.slane %v2446, 0
        %s2456 = scalar_lea.vmem %s3, 3
        %v2457 = vld [vmem:[%s2456] sm:$0x1]
        %v2459 = vperm.slane %v2457, 0
        %s2461 = scalar_lea.vmem %s8, 72
        %v2462 = vld [vmem:[%s2461] sm:$0xff]
        %v2463 = vld [vmem:[%s2461 + $0x8] sm:$0xff]
        %v2464 = vld [vmem:[%s2461 + $0x10] sm:$0xff]
        %2466 = vset.pattern.permute.xlu0 0
        %2467 = vperm.xlu0 %2466, %v2462
        %v2468 = vpop.permute.xlu0 %2467
        %2471 = vset.pattern.permute.xlu0 0
        %2472 = vperm.xlu0 %2471, %v2463
        %v2473 = vpop.permute.xlu0 %2472
        %2476 = vset.pattern.permute.xlu0 0
        %2477 = vperm.xlu0 %2476, %v2464
        %v2478 = vpop.permute.xlu0 %2477
        %2480 = vst [vmem:[#allocation7] sm:$0xff] 0.0
        %2481 = vst [vmem:[#allocation7 + $0x8] sm:$0xff] 0.0
        %2482 = vst [vmem:[#allocation7 + $0x10] sm:$0xff] 0.0
        %2483 = vst [vmem:[#allocation7 + $0x1f8] sm:$0xff] 0.0
        %2484 = vst [vmem:[#allocation7 + $0x200] sm:$0xff] 0.0
        %2485 = vst [vmem:[#allocation7 + $0x208] sm:$0xff] 0.0
        loop: start=1, step=1, limit=21
        $region78: #{depthwise_separable_conv_forward.1} parent=55 // loop_pre_header
          _
        $region79: #{depthwise_separable_conv_forward.1} parent=55 // loop_header
          %s2487 = sphi 1, %s2491
          %p2488 = scmp.ge.s32.totalorder %s2487, 21
        $region80: #{depthwise_separable_conv_forward.1} parent=55 // loop_header_branch
          %2490 = sbr.rel (%p2488) target = $region84
        $region81: #{depthwise_separable_conv_forward.1} parent=55 // loop_body
          %s2492 = ssub.s32 %s2487, 1
          %s2493 = smul.u32 %s2492, 24
          %s2494 = smul.u32 %s2487, 24
          %s2495 = sadd.s32 %s2487, 1
          %s2496 = smul.u32 %s2495, 24
          %s2497 = scalar_lea.vmem [#allocation5], %s2493
          %v2498 = vld [vmem:[%s2497] sm:$0xff]
          %v2499 = vld [vmem:[%s2497 + $0x8] sm:$0xff]
          %v2500 = vld [vmem:[%s2497 + $0x10] sm:$0xff]
          %s2501 = scalar_lea.vmem [#allocation5], %s2494
          %v2502 = vld [vmem:[%s2501] sm:$0xff]
          %v2503 = vld [vmem:[%s2501 + $0x8] sm:$0xff]
          %v2504 = vld [vmem:[%s2501 + $0x10] sm:$0xff]
          %s2505 = scalar_lea.vmem [#allocation5], %s2496
          %v2506 = vld [vmem:[%s2505] sm:$0xff]
          %v2507 = vld [vmem:[%s2505 + $0x8] sm:$0xff]
          %v2508 = vld [vmem:[%s2505 + $0x10] sm:$0xff]
          %v2509 = vmul.f32 %v2498, %v2447
          %v2510 = vmul.f32 %v2499, %v2447
          %v2511 = vmul.f32 %v2500, %v2447
          %v2512 = vmul.f32 %v2502, %v2450
          %v2513 = vmul.f32 %v2503, %v2450
          %v2514 = vmul.f32 %v2504, %v2450
          %v2515 = vadd.f32 %v2509, %v2512
          %v2516 = vadd.f32 %v2510, %v2513
          %v2517 = vadd.f32 %v2511, %v2514
          %v2518 = vmul.f32 %v2506, %v2453
          %v2519 = vmul.f32 %v2507, %v2453
          %v2520 = vmul.f32 %v2508, %v2453
          %v2521 = vadd.f32 %v2515, %v2518
          %v2522 = vadd.f32 %v2516, %v2519
          %v2523 = vadd.f32 %v2517, %v2520
          %v2524 = vmul.f32 %v2498, %v2448
          %v2525 = vmul.f32 %v2499, %v2448
          %v2526 = vmul.f32 %v2500, %v2448
          %v2527 = vmul.f32 %v2502, %v2451
          %v2528 = vmul.f32 %v2503, %v2451
          %v2529 = vmul.f32 %v2504, %v2451
          %v2530 = vadd.f32 %v2524, %v2527
          %v2531 = vadd.f32 %v2525, %v2528
          %v2532 = vadd.f32 %v2526, %v2529
          %v2533 = vmul.f32 %v2506, %v2454
          %v2534 = vmul.f32 %v2507, %v2454
          %v2535 = vmul.f32 %v2508, %v2454
          %v2536 = vadd.f32 %v2530, %v2533
          %v2537 = vadd.f32 %v2531, %v2534
          %v2538 = vadd.f32 %v2532, %v2535
          %v2539 = vmul.f32 %v2498, %v2449
          %v2540 = vmul.f32 %v2499, %v2449
          %v2541 = vmul.f32 %v2500, %v2449
          %v2542 = vmul.f32 %v2502, %v2452
          %v2543 = vmul.f32 %v2503, %v2452
          %v2544 = vmul.f32 %v2504, %v2452
          %v2545 = vadd.f32 %v2539, %v2542
          %v2546 = vadd.f32 %v2540, %v2543
          %v2547 = vadd.f32 %v2541, %v2544
          %v2548 = vmul.f32 %v2506, %v2455
          %v2549 = vmul.f32 %v2507, %v2455
          %v2550 = vmul.f32 %v2508, %v2455
          %v2551 = vadd.f32 %v2545, %v2548
          %v2552 = vadd.f32 %v2546, %v2549
          %v2553 = vadd.f32 %v2547, %v2550
          %v2554 = vrot.slane %v2521, 6
          %v2555 = vrot.slane %v2522, 6
          %v2556 = vrot.slane %v2523, 6
          %v2557 = vlaneseq
          %v2558 = vshrl.u32 %v2557, 7
          %vm2559 = vcmp.lt.s32.totalorder %v2558, 2
          %v2560 = vsel %vm2559, %v2555, %v2556
          %v2561 = vsel %vm2559, %v2554, %v2555
          %v2562 = vsel %vm2559, %v2556, %v2554
          %v2563 = vadd.f32 %v2459, %v2562
          %v2564 = vadd.f32 %v2459, %v2561
          %v2565 = vadd.f32 %v2459, %v2560
          %v2566 = vrot.slane %v2536, 7
          %v2567 = vrot.slane %v2537, 7
          %v2568 = vrot.slane %v2538, 7
          %vm2569 = vcmp.lt.s32.totalorder %v2558, 1
          %v2570 = vsel %vm2569, %v2567, %v2568
          %v2571 = vsel %vm2569, %v2566, %v2567
          %v2572 = vsel %vm2569, %v2568, %v2566
          %v2573 = vadd.f32 %v2563, %v2572
          %v2574 = vadd.f32 %v2564, %v2571
          %v2575 = vadd.f32 %v2565, %v2570
          %v2576 = vadd.f32 %v2573, %v2551
          %v2577 = vadd.f32 %v2574, %v2552
          %v2578 = vadd.f32 %v2575, %v2553
          %v2579 = vmul.f32 %v2576, %v2468
          %v2580 = vmul.f32 %v2577, %v2473
          %v2581 = vmul.f32 %v2578, %v2478
          %s2582 = scalar_lea.vmem [#allocation7], %s2494
          %2583 = vst [vmem:[%s2582] sm:$0xff] %v2579
          %2584 = vst [vmem:[%s2582 + $0x8] sm:$0xff] %v2580
          %2585 = vst [vmem:[%s2582 + $0x10] sm:$0xff] %v2581
        $region82: #{depthwise_separable_conv_forward.1} parent=55 // loop_footer
          %s2491 = sadd.s32 1, %s2487
        $region83: #{depthwise_separable_conv_forward.1} parent=55 // loop_footer_branch
          %2486 = sbr.rel target = $region79
        $region84: #{depthwise_separable_conv_forward.1} parent=55 // loop_exit
          _
        %s2586 = scalar_lea.vmem %s4, 384
        %v2587 = vld [vmem:[%s2586] sm:$0xff]
        %v2588 = vld [vmem:[%s2586 + $0x8] sm:$0xff]
        %v2589 = vld [vmem:[%s2586 + $0x10] sm:$0xff]
        %v2590 = vld [vmem:[%s2586 + $0x18] sm:$0xff]
        %v2591 = vld [vmem:[%s2586 + $0x20] sm:$0xff]
        %v2592 = vld [vmem:[%s2586 + $0x28] sm:$0xff]
        %v2593 = vld [vmem:[%s2586 + $0x30] sm:$0xff]
        %v2594 = vld [vmem:[%s2586 + $0x38] sm:$0xff]
        %v2595 = vld [vmem:[%s2586 + $0x40] sm:$0xff]
        %v2596 = vld [vmem:[%s2586 + $0x48] sm:$0xff]
        %v2597 = vld [vmem:[%s2586 + $0x50] sm:$0xff]
        %v2598 = vld [vmem:[%s2586 + $0x58] sm:$0xff]
        %v2599 = vld [vmem:[%s2586 + $0x60] sm:$0xff]
        %v2600 = vld [vmem:[%s2586 + $0x68] sm:$0xff]
        %v2601 = vld [vmem:[%s2586 + $0x70] sm:$0xff]
        %v2602 = vld [vmem:[%s2586 + $0x78] sm:$0xff]
        %v2603 = vld [vmem:[#allocation7] sm:$0xff]
        %v2604 = vld [vmem:[#allocation7 + $0x8] sm:$0xff]
        %v2605 = vld [vmem:[#allocation7 + $0x10] sm:$0xff]
        %v2606 = vld [vmem:[#allocation7 + $0x18] sm:$0xff]
        %v2607 = vld [vmem:[#allocation7 + $0x20] sm:$0xff]
        %v2608 = vld [vmem:[#allocation7 + $0x28] sm:$0xff]
        %v2609 = vld [vmem:[#allocation7 + $0x30] sm:$0xff]
        %v2610 = vld [vmem:[#allocation7 + $0x38] sm:$0xff]
        %v2611 = vld [vmem:[#allocation7 + $0x40] sm:$0xff]
        %v2612 = vld [vmem:[#allocation7 + $0x48] sm:$0xff]
        %v2613 = vld [vmem:[#allocation7 + $0x50] sm:$0xff]
        %v2614 = vld [vmem:[#allocation7 + $0x58] sm:$0xff]
        %v2615 = vld [vmem:[#allocation7 + $0x60] sm:$0xff]
        %v2616 = vld [vmem:[#allocation7 + $0x68] sm:$0xff]
        %v2617 = vld [vmem:[#allocation7 + $0x70] sm:$0xff]
        %v2618 = vld [vmem:[#allocation7 + $0x78] sm:$0xff]
        %v2619 = vld [vmem:[#allocation7 + $0x80] sm:$0xff]
        %v2620 = vld [vmem:[#allocation7 + $0x88] sm:$0xff]
        %v2621 = vld [vmem:[#allocation7 + $0x90] sm:$0xff]
        %v2622 = vld [vmem:[#allocation7 + $0x98] sm:$0xff]
        %v2623 = vld [vmem:[#allocation7 + $0xa0] sm:$0xff]
        %v2624 = vld [vmem:[#allocation7 + $0xa8] sm:$0xff]
        %v2625 = vld [vmem:[#allocation7 + $0xb0] sm:$0xff]
        %v2626 = vld [vmem:[#allocation7 + $0xb8] sm:$0xff]
        %s2627 = scalar_lea.vmem %s7, 768
        %v2628 = vld [vmem:[%s2627] sm:$0xff]
        %v2629 = vld [vmem:[%s2627 + $0x8] sm:$0xff]
        %v2630 = vld [vmem:[%s2627 + $0x10] sm:$0xff]
        %v2631 = vld [vmem:[%s2627 + $0x18] sm:$0xff]
        %v2632 = vld [vmem:[%s2627 + $0x20] sm:$0xff]
        %v2633 = vld [vmem:[%s2627 + $0x28] sm:$0xff]
        %v2634 = vld [vmem:[%s2627 + $0x30] sm:$0xff]
        %v2635 = vld [vmem:[%s2627 + $0x38] sm:$0xff]
        %v2636 = vld [vmem:[%s2627 + $0x40] sm:$0xff]
        %v2637 = vld [vmem:[%s2627 + $0x48] sm:$0xff]
        %v2638 = vld [vmem:[%s2627 + $0x50] sm:$0xff]
        %v2639 = vld [vmem:[%s2627 + $0x58] sm:$0xff]
        %v2640 = vld [vmem:[%s2627 + $0x60] sm:$0xff]
        %v2641 = vld [vmem:[%s2627 + $0x68] sm:$0xff]
        %v2642 = vld [vmem:[%s2627 + $0x70] sm:$0xff]
        %v2643 = vld [vmem:[%s2627 + $0x78] sm:$0xff]
        %v2644 = vld [vmem:[%s2627 + $0x80] sm:$0xff]
        %v2645 = vld [vmem:[%s2627 + $0x88] sm:$0xff]
        %v2646 = vld [vmem:[%s2627 + $0x90] sm:$0xff]
        %v2647 = vld [vmem:[%s2627 + $0x98] sm:$0xff]
        %v2648 = vld [vmem:[%s2627 + $0xa0] sm:$0xff]
        %v2649 = vld [vmem:[%s2627 + $0xa8] sm:$0xff]
        %v2650 = vld [vmem:[%s2627 + $0xb0] sm:$0xff]
        %v2651 = vld [vmem:[%s2627 + $0xb8] sm:$0xff]
        %2652 = vmatpush.msra.mxu0 %v2602
        %2653 = vmatpush.msra.mxu0 %v2601
        %2654 = vmatpush.msra.mxu0 %v2600
        %2655 = vmatpush.msra.mxu0 %v2599
        %2656 = vmatpush.msra.mxu0 %v2598
        %2657 = vmatpush.msra.mxu0 %v2597
        %2658 = vmatpush.msra.mxu0 %v2596
        %2659 = vmatpush.msra.mxu0 %v2595
        %2660 = vmatpush.msra.mxu0 %v2594
        %2661 = vmatpush.msra.mxu0 %v2593
        %2662 = vmatpush.msra.mxu0 %v2592
        %2663 = vmatpush.msra.mxu0 %v2591
        %2664 = vmatpush.msra.mxu0 %v2590
        %2665 = vmatpush.msra.mxu0 %v2589
        %2666 = vmatpush.msra.mxu0 %v2588
        %2667 = vmatpush.msra.mxu0 %v2587
        %2668 = vmatmul.f32.gmra.mxu0 %v2603
        %v2669 = vpop.f32.mrf.mxu0
        %v2670 = vadd.f32 %v2628, %v2669
        %2671 = vmatmul.f32.gmra.mxu0 %v2604
        %v2672 = vpop.f32.mrf.mxu0
        %v2673 = vadd.f32 %v2629, %v2672
        %2674 = vmatmul.f32.gmra.mxu0 %v2605
        %v2675 = vpop.f32.mrf.mxu0
        %v2676 = vadd.f32 %v2630, %v2675
        %2677 = vmatmul.f32.gmra.mxu0 %v2606
        %v2678 = vpop.f32.mrf.mxu0
        %v2679 = vadd.f32 %v2631, %v2678
        %2680 = vmatmul.f32.gmra.mxu0 %v2607
        %v2681 = vpop.f32.mrf.mxu0
        %v2682 = vadd.f32 %v2632, %v2681
        %2683 = vmatmul.f32.gmra.mxu0 %v2608
        %v2684 = vpop.f32.mrf.mxu0
        %v2685 = vadd.f32 %v2633, %v2684
        %2686 = vmatmul.f32.gmra.mxu0 %v2609
        %v2687 = vpop.f32.mrf.mxu0
        %v2688 = vadd.f32 %v2634, %v2687
        %2689 = vmatmul.f32.gmra.mxu0 %v2610
        %v2690 = vpop.f32.mrf.mxu0
        %v2691 = vadd.f32 %v2635, %v2690
        %2692 = vmatmul.f32.gmra.mxu0 %v2611
        %v2693 = vpop.f32.mrf.mxu0
        %v2694 = vadd.f32 %v2636, %v2693
        %2695 = vmatmul.f32.gmra.mxu0 %v2612
        %v2696 = vpop.f32.mrf.mxu0
        %v2697 = vadd.f32 %v2637, %v2696
        %2698 = vmatmul.f32.gmra.mxu0 %v2613
        %v2699 = vpop.f32.mrf.mxu0
        %v2700 = vadd.f32 %v2638, %v2699
        %2701 = vmatmul.f32.gmra.mxu0 %v2614
        %v2702 = vpop.f32.mrf.mxu0
        %v2703 = vadd.f32 %v2639, %v2702
        %2704 = vmatmul.f32.gmra.mxu0 %v2615
        %v2705 = vpop.f32.mrf.mxu0
        %v2706 = vadd.f32 %v2640, %v2705
        %2707 = vmatmul.f32.gmra.mxu0 %v2616
        %v2708 = vpop.f32.mrf.mxu0
        %v2709 = vadd.f32 %v2641, %v2708
        %2710 = vmatmul.f32.gmra.mxu0 %v2617
        %v2711 = vpop.f32.mrf.mxu0
        %v2712 = vadd.f32 %v2642, %v2711
        %2713 = vmatmul.f32.gmra.mxu0 %v2618
        %v2714 = vpop.f32.mrf.mxu0
        %v2715 = vadd.f32 %v2643, %v2714
        %2716 = vmatmul.f32.gmra.mxu0 %v2619
        %v2717 = vpop.f32.mrf.mxu0
        %v2718 = vadd.f32 %v2644, %v2717
        %2719 = vmatmul.f32.gmra.mxu0 %v2620
        %v2720 = vpop.f32.mrf.mxu0
        %v2721 = vadd.f32 %v2645, %v2720
        %2722 = vmatmul.f32.gmra.mxu0 %v2621
        %v2723 = vpop.f32.mrf.mxu0
        %v2724 = vadd.f32 %v2646, %v2723
        %2725 = vmatmul.f32.gmra.mxu0 %v2622
        %v2726 = vpop.f32.mrf.mxu0
        %v2727 = vadd.f32 %v2647, %v2726
        %2728 = vmatmul.f32.gmra.mxu0 %v2623
        %v2729 = vpop.f32.mrf.mxu0
        %v2730 = vadd.f32 %v2648, %v2729
        %2731 = vmatmul.f32.gmra.mxu0 %v2624
        %v2732 = vpop.f32.mrf.mxu0
        %v2733 = vadd.f32 %v2649, %v2732
        %2734 = vmatmul.f32.gmra.mxu0 %v2625
        %v2735 = vpop.f32.mrf.mxu0
        %v2736 = vadd.f32 %v2650, %v2735
        %2737 = vmatmul.f32.gmra.mxu0 %v2626
        %v2738 = vpop.f32.mrf.mxu0
        %v2739 = vadd.f32 %v2651, %v2738
        %2740 = vdwg.mxu0
        %v2741 = vmax.f32 %v2670, 0.0
        %v2742 = vmax.f32 %v2673, 0.0
        %v2743 = vmax.f32 %v2676, 0.0
        %v2744 = vmax.f32 %v2679, 0.0
        %v2745 = vmax.f32 %v2682, 0.0
        %v2746 = vmax.f32 %v2685, 0.0
        %v2747 = vmax.f32 %v2688, 0.0
        %v2748 = vmax.f32 %v2691, 0.0
        %v2749 = vmax.f32 %v2694, 0.0
        %v2750 = vmax.f32 %v2697, 0.0
        %v2751 = vmax.f32 %v2700, 0.0
        %v2752 = vmax.f32 %v2703, 0.0
        %v2753 = vmax.f32 %v2706, 0.0
        %v2754 = vmax.f32 %v2709, 0.0
        %v2755 = vmax.f32 %v2712, 0.0
        %v2756 = vmax.f32 %v2715, 0.0
        %v2757 = vmax.f32 %v2718, 0.0
        %v2758 = vmax.f32 %v2721, 0.0
        %v2759 = vmax.f32 %v2724, 0.0
        %v2760 = vmax.f32 %v2727, 0.0
        %v2761 = vmax.f32 %v2730, 0.0
        %v2762 = vmax.f32 %v2733, 0.0
        %v2763 = vmax.f32 %v2736, 0.0
        %v2764 = vmax.f32 %v2739, 0.0
        %2765 = vst [vmem:[#allocation6 + $0x18] sm:$0xff] %v2741
        %2766 = vst [vmem:[#allocation6 + $0x20] sm:$0xff] %v2742
        %2767 = vst [vmem:[#allocation6 + $0x28] sm:$0xff] %v2743
        %2768 = vst [vmem:[#allocation6 + $0x30] sm:$0xff] %v2744
        %2769 = vst [vmem:[#allocation6 + $0x38] sm:$0xff] %v2745
        %2770 = vst [vmem:[#allocation6 + $0x40] sm:$0xff] %v2746
        %2771 = vst [vmem:[#allocation6 + $0x48] sm:$0xff] %v2747
        %2772 = vst [vmem:[#allocation6 + $0x50] sm:$0xff] %v2748
        %2773 = vst [vmem:[#allocation6 + $0x58] sm:$0xff] %v2749
        %2774 = vst [vmem:[#allocation6 + $0x60] sm:$0xff] %v2750
        %2775 = vst [vmem:[#allocation6 + $0x68] sm:$0xff] %v2751
        %2776 = vst [vmem:[#allocation6 + $0x70] sm:$0xff] %v2752
        %2777 = vst [vmem:[#allocation6 + $0x78] sm:$0xff] %v2753
        %2778 = vst [vmem:[#allocation6 + $0x80] sm:$0xff] %v2754
        %2779 = vst [vmem:[#allocation6 + $0x88] sm:$0xff] %v2755
        %2780 = vst [vmem:[#allocation6 + $0x90] sm:$0xff] %v2756
        %2781 = vst [vmem:[#allocation6 + $0x98] sm:$0xff] %v2757
        %2782 = vst [vmem:[#allocation6 + $0xa0] sm:$0xff] %v2758
        %2783 = vst [vmem:[#allocation6 + $0xa8] sm:$0xff] %v2759
        %2784 = vst [vmem:[#allocation6 + $0xb0] sm:$0xff] %v2760
        %2785 = vst [vmem:[#allocation6 + $0xb8] sm:$0xff] %v2761
        %2786 = vst [vmem:[#allocation6 + $0xc0] sm:$0xff] %v2762
        %2787 = vst [vmem:[#allocation6 + $0xc8] sm:$0xff] %v2763
        %2788 = vst [vmem:[#allocation6 + $0xd0] sm:$0xff] %v2764
        %v2789 = vld [vmem:[#allocation7 + $0xc0] sm:$0xff]
        %v2790 = vld [vmem:[#allocation7 + $0xc8] sm:$0xff]
        %v2791 = vld [vmem:[#allocation7 + $0xd0] sm:$0xff]
        %v2792 = vld [vmem:[#allocation7 + $0xd8] sm:$0xff]
        %v2793 = vld [vmem:[#allocation7 + $0xe0] sm:$0xff]
        %v2794 = vld [vmem:[#allocation7 + $0xe8] sm:$0xff]
        %v2795 = vld [vmem:[#allocation7 + $0xf0] sm:$0xff]
        %v2796 = vld [vmem:[#allocation7 + $0xf8] sm:$0xff]
        %v2797 = vld [vmem:[#allocation7 + $0x100] sm:$0xff]
        %v2798 = vld [vmem:[#allocation7 + $0x108] sm:$0xff]
        %v2799 = vld [vmem:[#allocation7 + $0x110] sm:$0xff]
        %v2800 = vld [vmem:[#allocation7 + $0x118] sm:$0xff]
        %v2801 = vld [vmem:[#allocation7 + $0x120] sm:$0xff]
        %v2802 = vld [vmem:[#allocation7 + $0x128] sm:$0xff]
        %v2803 = vld [vmem:[#allocation7 + $0x130] sm:$0xff]
        %v2804 = vld [vmem:[#allocation7 + $0x138] sm:$0xff]
        %v2805 = vld [vmem:[#allocation7 + $0x140] sm:$0xff]
        %v2806 = vld [vmem:[#allocation7 + $0x148] sm:$0xff]
        %v2807 = vld [vmem:[#allocation7 + $0x150] sm:$0xff]
        %v2808 = vld [vmem:[#allocation7 + $0x158] sm:$0xff]
        %v2809 = vld [vmem:[#allocation7 + $0x160] sm:$0xff]
        %v2810 = vld [vmem:[#allocation7 + $0x168] sm:$0xff]
        %v2811 = vld [vmem:[#allocation7 + $0x170] sm:$0xff]
        %v2812 = vld [vmem:[#allocation7 + $0x178] sm:$0xff]
        %v2813 = vld [vmem:[%s2627] sm:$0xff]
        %v2814 = vld [vmem:[%s2627 + $0x8] sm:$0xff]
        %v2815 = vld [vmem:[%s2627 + $0x10] sm:$0xff]
        %v2816 = vld [vmem:[%s2627 + $0x18] sm:$0xff]
        %v2817 = vld [vmem:[%s2627 + $0x20] sm:$0xff]
        %v2818 = vld [vmem:[%s2627 + $0x28] sm:$0xff]
        %v2819 = vld [vmem:[%s2627 + $0x30] sm:$0xff]
        %v2820 = vld [vmem:[%s2627 + $0x38] sm:$0xff]
        %v2821 = vld [vmem:[%s2627 + $0x40] sm:$0xff]
        %v2822 = vld [vmem:[%s2627 + $0x48] sm:$0xff]
        %v2823 = vld [vmem:[%s2627 + $0x50] sm:$0xff]
        %v2824 = vld [vmem:[%s2627 + $0x58] sm:$0xff]
        %v2825 = vld [vmem:[%s2627 + $0x60] sm:$0xff]
        %v2826 = vld [vmem:[%s2627 + $0x68] sm:$0xff]
        %v2827 = vld [vmem:[%s2627 + $0x70] sm:$0xff]
        %v2828 = vld [vmem:[%s2627 + $0x78] sm:$0xff]
        %v2829 = vld [vmem:[%s2627 + $0x80] sm:$0xff]
        %v2830 = vld [vmem:[%s2627 + $0x88] sm:$0xff]
        %v2831 = vld [vmem:[%s2627 + $0x90] sm:$0xff]
        %v2832 = vld [vmem:[%s2627 + $0x98] sm:$0xff]
        %v2833 = vld [vmem:[%s2627 + $0xa0] sm:$0xff]
        %v2834 = vld [vmem:[%s2627 + $0xa8] sm:$0xff]
        %v2835 = vld [vmem:[%s2627 + $0xb0] sm:$0xff]
        %v2836 = vld [vmem:[%s2627 + $0xb8] sm:$0xff]
        %2837 = vmatpush.msra.mxu0 %v2602
        %2838 = vmatpush.msra.mxu0 %v2601
        %2839 = vmatpush.msra.mxu0 %v2600
        %2840 = vmatpush.msra.mxu0 %v2599
        %2841 = vmatpush.msra.mxu0 %v2598
        %2842 = vmatpush.msra.mxu0 %v2597
        %2843 = vmatpush.msra.mxu0 %v2596
        %2844 = vmatpush.msra.mxu0 %v2595
        %2845 = vmatpush.msra.mxu0 %v2594
        %2846 = vmatpush.msra.mxu0 %v2593
        %2847 = vmatpush.msra.mxu0 %v2592
        %2848 = vmatpush.msra.mxu0 %v2591
        %2849 = vmatpush.msra.mxu0 %v2590
        %2850 = vmatpush.msra.mxu0 %v2589
        %2851 = vmatpush.msra.mxu0 %v2588
        %2852 = vmatpush.msra.mxu0 %v2587
        %2853 = vmatmul.f32.gmra.mxu0 %v2789
        %v2854 = vpop.f32.mrf.mxu0
        %v2855 = vadd.f32 %v2813, %v2854
        %2856 = vmatmul.f32.gmra.mxu0 %v2790
        %v2857 = vpop.f32.mrf.mxu0
        %v2858 = vadd.f32 %v2814, %v2857
        %2859 = vmatmul.f32.gmra.mxu0 %v2791
        %v2860 = vpop.f32.mrf.mxu0
        %v2861 = vadd.f32 %v2815, %v2860
        %2862 = vmatmul.f32.gmra.mxu0 %v2792
        %v2863 = vpop.f32.mrf.mxu0
        %v2864 = vadd.f32 %v2816, %v2863
        %2865 = vmatmul.f32.gmra.mxu0 %v2793
        %v2866 = vpop.f32.mrf.mxu0
        %v2867 = vadd.f32 %v2817, %v2866
        %2868 = vmatmul.f32.gmra.mxu0 %v2794
        %v2869 = vpop.f32.mrf.mxu0
        %v2870 = vadd.f32 %v2818, %v2869
        %2871 = vmatmul.f32.gmra.mxu0 %v2795
        %v2872 = vpop.f32.mrf.mxu0
        %v2873 = vadd.f32 %v2819, %v2872
        %2874 = vmatmul.f32.gmra.mxu0 %v2796
        %v2875 = vpop.f32.mrf.mxu0
        %v2876 = vadd.f32 %v2820, %v2875
        %2877 = vmatmul.f32.gmra.mxu0 %v2797
        %v2878 = vpop.f32.mrf.mxu0
        %v2879 = vadd.f32 %v2821, %v2878
        %2880 = vmatmul.f32.gmra.mxu0 %v2798
        %v2881 = vpop.f32.mrf.mxu0
        %v2882 = vadd.f32 %v2822, %v2881
        %2883 = vmatmul.f32.gmra.mxu0 %v2799
        %v2884 = vpop.f32.mrf.mxu0
        %v2885 = vadd.f32 %v2823, %v2884
        %2886 = vmatmul.f32.gmra.mxu0 %v2800
        %v2887 = vpop.f32.mrf.mxu0
        %v2888 = vadd.f32 %v2824, %v2887
        %2889 = vmatmul.f32.gmra.mxu0 %v2801
        %v2890 = vpop.f32.mrf.mxu0
        %v2891 = vadd.f32 %v2825, %v2890
        %2892 = vmatmul.f32.gmra.mxu0 %v2802
        %v2893 = vpop.f32.mrf.mxu0
        %v2894 = vadd.f32 %v2826, %v2893
        %2895 = vmatmul.f32.gmra.mxu0 %v2803
        %v2896 = vpop.f32.mrf.mxu0
        %v2897 = vadd.f32 %v2827, %v2896
        %2898 = vmatmul.f32.gmra.mxu0 %v2804
        %v2899 = vpop.f32.mrf.mxu0
        %v2900 = vadd.f32 %v2828, %v2899
        %2901 = vmatmul.f32.gmra.mxu0 %v2805
        %v2902 = vpop.f32.mrf.mxu0
        %v2903 = vadd.f32 %v2829, %v2902
        %2904 = vmatmul.f32.gmra.mxu0 %v2806
        %v2905 = vpop.f32.mrf.mxu0
        %v2906 = vadd.f32 %v2830, %v2905
        %2907 = vmatmul.f32.gmra.mxu0 %v2807
        %v2908 = vpop.f32.mrf.mxu0
        %v2909 = vadd.f32 %v2831, %v2908
        %2910 = vmatmul.f32.gmra.mxu0 %v2808
        %v2911 = vpop.f32.mrf.mxu0
        %v2912 = vadd.f32 %v2832, %v2911
        %2913 = vmatmul.f32.gmra.mxu0 %v2809
        %v2914 = vpop.f32.mrf.mxu0
        %v2915 = vadd.f32 %v2833, %v2914
        %2916 = vmatmul.f32.gmra.mxu0 %v2810
        %v2917 = vpop.f32.mrf.mxu0
        %v2918 = vadd.f32 %v2834, %v2917
        %2919 = vmatmul.f32.gmra.mxu0 %v2811
        %v2920 = vpop.f32.mrf.mxu0
        %v2921 = vadd.f32 %v2835, %v2920
        %2922 = vmatmul.f32.gmra.mxu0 %v2812
        %v2923 = vpop.f32.mrf.mxu0
        %v2924 = vadd.f32 %v2836, %v2923
        %2925 = vdwg.mxu0
        %v2926 = vmax.f32 %v2855, 0.0
        %v2927 = vmax.f32 %v2858, 0.0
        %v2928 = vmax.f32 %v2861, 0.0
        %v2929 = vmax.f32 %v2864, 0.0
        %v2930 = vmax.f32 %v2867, 0.0
        %v2931 = vmax.f32 %v2870, 0.0
        %v2932 = vmax.f32 %v2873, 0.0
        %v2933 = vmax.f32 %v2876, 0.0
        %v2934 = vmax.f32 %v2879, 0.0
        %v2935 = vmax.f32 %v2882, 0.0
        %v2936 = vmax.f32 %v2885, 0.0
        %v2937 = vmax.f32 %v2888, 0.0
        %v2938 = vmax.f32 %v2891, 0.0
        %v2939 = vmax.f32 %v2894, 0.0
        %v2940 = vmax.f32 %v2897, 0.0
        %v2941 = vmax.f32 %v2900, 0.0
        %v2942 = vmax.f32 %v2903, 0.0
        %v2943 = vmax.f32 %v2906, 0.0
        %v2944 = vmax.f32 %v2909, 0.0
        %v2945 = vmax.f32 %v2912, 0.0
        %v2946 = vmax.f32 %v2915, 0.0
        %v2947 = vmax.f32 %v2918, 0.0
        %v2948 = vmax.f32 %v2921, 0.0
        %v2949 = vmax.f32 %v2924, 0.0
        %2950 = vst [vmem:[#allocation6 + $0xd8] sm:$0xff] %v2926
        %2951 = vst [vmem:[#allocation6 + $0xe0] sm:$0xff] %v2927
        %2952 = vst [vmem:[#allocation6 + $0xe8] sm:$0xff] %v2928
        %2953 = vst [vmem:[#allocation6 + $0xf0] sm:$0xff] %v2929
        %2954 = vst [vmem:[#allocation6 + $0xf8] sm:$0xff] %v2930
        %2955 = vst [vmem:[#allocation6 + $0x100] sm:$0xff] %v2931
        %2956 = vst [vmem:[#allocation6 + $0x108] sm:$0xff] %v2932
        %2957 = vst [vmem:[#allocation6 + $0x110] sm:$0xff] %v2933
        %2958 = vst [vmem:[#allocation6 + $0x118] sm:$0xff] %v2934
        %2959 = vst [vmem:[#allocation6 + $0x120] sm:$0xff] %v2935
        %2960 = vst [vmem:[#allocation6 + $0x128] sm:$0xff] %v2936
        %2961 = vst [vmem:[#allocation6 + $0x130] sm:$0xff] %v2937
        %2962 = vst [vmem:[#allocation6 + $0x138] sm:$0xff] %v2938
        %2963 = vst [vmem:[#allocation6 + $0x140] sm:$0xff] %v2939
        %2964 = vst [vmem:[#allocation6 + $0x148] sm:$0xff] %v2940
        %2965 = vst [vmem:[#allocation6 + $0x150] sm:$0xff] %v2941
        %2966 = vst [vmem:[#allocation6 + $0x158] sm:$0xff] %v2942
        %2967 = vst [vmem:[#allocation6 + $0x160] sm:$0xff] %v2943
        %2968 = vst [vmem:[#allocation6 + $0x168] sm:$0xff] %v2944
        %2969 = vst [vmem:[#allocation6 + $0x170] sm:$0xff] %v2945
        %2970 = vst [vmem:[#allocation6 + $0x178] sm:$0xff] %v2946
        %2971 = vst [vmem:[#allocation6 + $0x180] sm:$0xff] %v2947
        %2972 = vst [vmem:[#allocation6 + $0x188] sm:$0xff] %v2948
        %2973 = vst [vmem:[#allocation6 + $0x190] sm:$0xff] %v2949
        %v2974 = vld [vmem:[#allocation7 + $0x180] sm:$0xff]
        %v2975 = vld [vmem:[#allocation7 + $0x188] sm:$0xff]
        %v2976 = vld [vmem:[#allocation7 + $0x190] sm:$0xff]
        %v2977 = vld [vmem:[#allocation7 + $0x198] sm:$0xff]
        %v2978 = vld [vmem:[#allocation7 + $0x1a0] sm:$0xff]
        %v2979 = vld [vmem:[#allocation7 + $0x1a8] sm:$0xff]
        %v2980 = vld [vmem:[#allocation7 + $0x1b0] sm:$0xff]
        %v2981 = vld [vmem:[#allocation7 + $0x1b8] sm:$0xff]
        %v2982 = vld [vmem:[#allocation7 + $0x1c0] sm:$0xff]
        %v2983 = vld [vmem:[#allocation7 + $0x1c8] sm:$0xff]
        %v2984 = vld [vmem:[#allocation7 + $0x1d0] sm:$0xff]
        %v2985 = vld [vmem:[#allocation7 + $0x1d8] sm:$0xff]
        %v2986 = vld [vmem:[#allocation7 + $0x1e0] sm:$0xff]
        %v2987 = vld [vmem:[#allocation7 + $0x1e8] sm:$0xff]
        %v2988 = vld [vmem:[#allocation7 + $0x1f0] sm:$0xff]
        %v2989 = vld [vmem:[#allocation7 + $0x1f8] sm:$0xff]
        %v2990 = vld [vmem:[#allocation7 + $0x200] sm:$0xff]
        %v2991 = vld [vmem:[#allocation7 + $0x208] sm:$0xff]
        %v2992 = vld [vmem:[%s2627] sm:$0xff]
        %v2993 = vld [vmem:[%s2627 + $0x8] sm:$0xff]
        %v2994 = vld [vmem:[%s2627 + $0x10] sm:$0xff]
        %v2995 = vld [vmem:[%s2627 + $0x18] sm:$0xff]
        %v2996 = vld [vmem:[%s2627 + $0x20] sm:$0xff]
        %v2997 = vld [vmem:[%s2627 + $0x28] sm:$0xff]
        %v2998 = vld [vmem:[%s2627 + $0x30] sm:$0xff]
        %v2999 = vld [vmem:[%s2627 + $0x38] sm:$0xff]
        %v3000 = vld [vmem:[%s2627 + $0x40] sm:$0xff]
        %v3001 = vld [vmem:[%s2627 + $0x48] sm:$0xff]
        %v3002 = vld [vmem:[%s2627 + $0x50] sm:$0xff]
        %v3003 = vld [vmem:[%s2627 + $0x58] sm:$0xff]
        %v3004 = vld [vmem:[%s2627 + $0x60] sm:$0xff]
        %v3005 = vld [vmem:[%s2627 + $0x68] sm:$0xff]
        %v3006 = vld [vmem:[%s2627 + $0x70] sm:$0xff]
        %v3007 = vld [vmem:[%s2627 + $0x78] sm:$0xff]
        %v3008 = vld [vmem:[%s2627 + $0x80] sm:$0xff]
        %v3009 = vld [vmem:[%s2627 + $0x88] sm:$0xff]
        %3010 = vmatpush.msra.mxu0 %v2602
        %3011 = vmatpush.msra.mxu0 %v2601
        %3012 = vmatpush.msra.mxu0 %v2600
        %3013 = vmatpush.msra.mxu0 %v2599
        %3014 = vmatpush.msra.mxu0 %v2598
        %3015 = vmatpush.msra.mxu0 %v2597
        %3016 = vmatpush.msra.mxu0 %v2596
        %3017 = vmatpush.msra.mxu0 %v2595
        %3018 = vmatpush.msra.mxu0 %v2594
        %3019 = vmatpush.msra.mxu0 %v2593
        %3020 = vmatpush.msra.mxu0 %v2592
        %3021 = vmatpush.msra.mxu0 %v2591
        %3022 = vmatpush.msra.mxu0 %v2590
        %3023 = vmatpush.msra.mxu0 %v2589
        %3024 = vmatpush.msra.mxu0 %v2588
        %3025 = vmatpush.msra.mxu0 %v2587
        %3026 = vmatmul.f32.gmra.mxu0 %v2974
        %v3027 = vpop.f32.mrf.mxu0
        %v3028 = vadd.f32 %v2992, %v3027
        %3029 = vmatmul.f32.gmra.mxu0 %v2975
        %v3030 = vpop.f32.mrf.mxu0
        %v3031 = vadd.f32 %v2993, %v3030
        %3032 = vmatmul.f32.gmra.mxu0 %v2976
        %v3033 = vpop.f32.mrf.mxu0
        %v3034 = vadd.f32 %v2994, %v3033
        %3035 = vmatmul.f32.gmra.mxu0 %v2977
        %v3036 = vpop.f32.mrf.mxu0
        %v3037 = vadd.f32 %v2995, %v3036
        %3038 = vmatmul.f32.gmra.mxu0 %v2978
        %v3039 = vpop.f32.mrf.mxu0
        %v3040 = vadd.f32 %v2996, %v3039
        %3041 = vmatmul.f32.gmra.mxu0 %v2979
        %v3042 = vpop.f32.mrf.mxu0
        %v3043 = vadd.f32 %v2997, %v3042
        %3044 = vmatmul.f32.gmra.mxu0 %v2980
        %v3045 = vpop.f32.mrf.mxu0
        %v3046 = vadd.f32 %v2998, %v3045
        %3047 = vmatmul.f32.gmra.mxu0 %v2981
        %v3048 = vpop.f32.mrf.mxu0
        %v3049 = vadd.f32 %v2999, %v3048
        %3050 = vmatmul.f32.gmra.mxu0 %v2982
        %v3051 = vpop.f32.mrf.mxu0
        %v3052 = vadd.f32 %v3000, %v3051
        %3053 = vmatmul.f32.gmra.mxu0 %v2983
        %v3054 = vpop.f32.mrf.mxu0
        %v3055 = vadd.f32 %v3001, %v3054
        %3056 = vmatmul.f32.gmra.mxu0 %v2984
        %v3057 = vpop.f32.mrf.mxu0
        %v3058 = vadd.f32 %v3002, %v3057
        %3059 = vmatmul.f32.gmra.mxu0 %v2985
        %v3060 = vpop.f32.mrf.mxu0
        %v3061 = vadd.f32 %v3003, %v3060
        %3062 = vmatmul.f32.gmra.mxu0 %v2986
        %v3063 = vpop.f32.mrf.mxu0
        %v3064 = vadd.f32 %v3004, %v3063
        %3065 = vmatmul.f32.gmra.mxu0 %v2987
        %v3066 = vpop.f32.mrf.mxu0
        %v3067 = vadd.f32 %v3005, %v3066
        %3068 = vmatmul.f32.gmra.mxu0 %v2988
        %v3069 = vpop.f32.mrf.mxu0
        %v3070 = vadd.f32 %v3006, %v3069
        %3071 = vmatmul.f32.gmra.mxu0 %v2989
        %v3072 = vpop.f32.mrf.mxu0
        %v3073 = vadd.f32 %v3007, %v3072
        %3074 = vmatmul.f32.gmra.mxu0 %v2990
        %v3075 = vpop.f32.mrf.mxu0
        %v3076 = vadd.f32 %v3008, %v3075
        %3077 = vmatmul.f32.gmra.mxu0 %v2991
        %v3078 = vpop.f32.mrf.mxu0
        %v3079 = vadd.f32 %v3009, %v3078
        %3080 = vdwg.mxu0
        %v3081 = vmax.f32 %v3028, 0.0
        %v3082 = vmax.f32 %v3031, 0.0
        %v3083 = vmax.f32 %v3034, 0.0
        %v3084 = vmax.f32 %v3037, 0.0
        %v3085 = vmax.f32 %v3040, 0.0
        %v3086 = vmax.f32 %v3043, 0.0
        %v3087 = vmax.f32 %v3046, 0.0
        %v3088 = vmax.f32 %v3049, 0.0
        %v3089 = vmax.f32 %v3052, 0.0
        %v3090 = vmax.f32 %v3055, 0.0
        %v3091 = vmax.f32 %v3058, 0.0
        %v3092 = vmax.f32 %v3061, 0.0
        %v3093 = vmax.f32 %v3064, 0.0
        %v3094 = vmax.f32 %v3067, 0.0
        %v3095 = vmax.f32 %v3070, 0.0
        %v3096 = vmax.f32 %v3073, 0.0
        %v3097 = vmax.f32 %v3076, 0.0
        %v3098 = vmax.f32 %v3079, 0.0
        %3099 = vst [vmem:[#allocation6 + $0x198] sm:$0xff] %v3081
        %3100 = vst [vmem:[#allocation6 + $0x1a0] sm:$0xff] %v3082
        %3101 = vst [vmem:[#allocation6 + $0x1a8] sm:$0xff] %v3083
        %3102 = vst [vmem:[#allocation6 + $0x1b0] sm:$0xff] %v3084
        %3103 = vst [vmem:[#allocation6 + $0x1b8] sm:$0xff] %v3085
        %3104 = vst [vmem:[#allocation6 + $0x1c0] sm:$0xff] %v3086
        %3105 = vst [vmem:[#allocation6 + $0x1c8] sm:$0xff] %v3087
        %3106 = vst [vmem:[#allocation6 + $0x1d0] sm:$0xff] %v3088
        %3107 = vst [vmem:[#allocation6 + $0x1d8] sm:$0xff] %v3089
        %3108 = vst [vmem:[#allocation6 + $0x1e0] sm:$0xff] %v3090
        %3109 = vst [vmem:[#allocation6 + $0x1e8] sm:$0xff] %v3091
        %3110 = vst [vmem:[#allocation6 + $0x1f0] sm:$0xff] %v3092
        %3111 = vst [vmem:[#allocation6 + $0x1f8] sm:$0xff] %v3093
        %3112 = vst [vmem:[#allocation6 + $0x200] sm:$0xff] %v3094
        %3113 = vst [vmem:[#allocation6 + $0x208] sm:$0xff] %v3095
        %3114 = vst [vmem:[#allocation6 + $0x210] sm:$0xff] %v3096
        %3115 = vst [vmem:[#allocation6 + $0x218] sm:$0xff] %v3097
        %3116 = vst [vmem:[#allocation6 + $0x220] sm:$0xff] %v3098
        %3117 = vst [vmem:[#allocation6] sm:$0xff] 0.0
        %3118 = vst [vmem:[#allocation6 + $0x8] sm:$0xff] 0.0
        %3119 = vst [vmem:[#allocation6 + $0x10] sm:$0xff] 0.0
        %3120 = vst [vmem:[#allocation6 + $0x228] sm:$0xff] 0.0
        %3121 = vst [vmem:[#allocation6 + $0x230] sm:$0xff] 0.0
        %3122 = vst [vmem:[#allocation6 + $0x238] sm:$0xff] 0.0
        %v3123 = vld [vmem:[#allocation6] sm:$0xff]
        %v3124 = vld [vmem:[#allocation6 + $0x8] sm:$0xff]
        %v3125 = vld [vmem:[#allocation6 + $0x10] sm:$0xff]
        %v3126 = vld [vmem:[#allocation6 + $0x18] sm:$0xff]
        %v3127 = vld [vmem:[#allocation6 + $0x20] sm:$0xff]
        %v3128 = vld [vmem:[#allocation6 + $0x28] sm:$0xff]
        %v3129 = vld [vmem:[#allocation6 + $0x30] sm:$0xff]
        %v3130 = vld [vmem:[#allocation6 + $0x38] sm:$0xff]
        %v3131 = vld [vmem:[#allocation6 + $0x40] sm:$0xff]
        %v3132 = vld [vmem:[#allocation6 + $0x48] sm:$0xff]
        %v3133 = vld [vmem:[#allocation6 + $0x50] sm:$0xff]
        %v3134 = vld [vmem:[#allocation6 + $0x58] sm:$0xff]
        %v3135 = vld [vmem:[#allocation6 + $0x60] sm:$0xff]
        %v3136 = vld [vmem:[#allocation6 + $0x68] sm:$0xff]
        %v3137 = vld [vmem:[#allocation6 + $0x70] sm:$0xff]
        %v3138 = vld [vmem:[#allocation6 + $0x78] sm:$0xff]
        %v3139 = vld [vmem:[#allocation6 + $0x80] sm:$0xff]
        %v3140 = vld [vmem:[#allocation6 + $0x88] sm:$0xff]
        %v3141 = vld [vmem:[#allocation6 + $0x90] sm:$0xff]
        %v3142 = vld [vmem:[#allocation6 + $0x98] sm:$0xff]
        %v3143 = vld [vmem:[#allocation6 + $0xa0] sm:$0xff]
        %v3144 = vld [vmem:[#allocation6 + $0xa8] sm:$0xff]
        %v3145 = vld [vmem:[#allocation6 + $0xb0] sm:$0xff]
        %v3146 = vld [vmem:[#allocation6 + $0xb8] sm:$0xff]
        %v3147 = vadd.f32 %v3123, %v3124
        %v3148 = vadd.f32 %v3147, %v3125
        %v3149 = vadd.f32 %v3148, %v3126
        %v3150 = vadd.f32 %v3149, %v3127
        %v3151 = vadd.f32 %v3150, %v3128
        %v3152 = vadd.f32 %v3151, %v3129
        %v3153 = vadd.f32 %v3152, %v3130
        %v3154 = vadd.f32 %v3153, %v3131
        %v3155 = vadd.f32 %v3154, %v3132
        %v3156 = vadd.f32 %v3155, %v3133
        %v3157 = vadd.f32 %v3156, %v3134
        %v3158 = vadd.f32 %v3157, %v3135
        %v3159 = vadd.f32 %v3158, %v3136
        %v3160 = vadd.f32 %v3159, %v3137
        %v3161 = vadd.f32 %v3160, %v3138
        %v3162 = vadd.f32 %v3161, %v3139
        %v3163 = vadd.f32 %v3162, %v3140
        %v3164 = vadd.f32 %v3163, %v3141
        %v3165 = vadd.f32 %v3164, %v3142
        %v3166 = vadd.f32 %v3165, %v3143
        %v3167 = vadd.f32 %v3166, %v3144
        %v3168 = vadd.f32 %v3167, %v3145
        %v3169 = vadd.f32 %v3168, %v3146
        %v3170 = vrot.slane %v3169, 4
        %v3171 = vadd.f32 %v3169, %v3170
        %v3172 = vrot.slane %v3171, 2
        %v3173 = vadd.f32 %v3171, %v3172
        %v3174 = vrot.slane %v3173, 1
        %v3175 = vadd.f32 %v3173, %v3174
        %v3176 = vadd.f32 %v3175, 0.0
        %v3177 = vld [vmem:[#allocation6 + $0xc0] sm:$0xff]
        %v3178 = vld [vmem:[#allocation6 + $0xc8] sm:$0xff]
        %v3179 = vld [vmem:[#allocation6 + $0xd0] sm:$0xff]
        %v3180 = vld [vmem:[#allocation6 + $0xd8] sm:$0xff]
        %v3181 = vld [vmem:[#allocation6 + $0xe0] sm:$0xff]
        %v3182 = vld [vmem:[#allocation6 + $0xe8] sm:$0xff]
        %v3183 = vld [vmem:[#allocation6 + $0xf0] sm:$0xff]
        %v3184 = vld [vmem:[#allocation6 + $0xf8] sm:$0xff]
        %v3185 = vld [vmem:[#allocation6 + $0x100] sm:$0xff]
        %v3186 = vld [vmem:[#allocation6 + $0x108] sm:$0xff]
        %v3187 = vld [vmem:[#allocation6 + $0x110] sm:$0xff]
        %v3188 = vld [vmem:[#allocation6 + $0x118] sm:$0xff]
        %v3189 = vld [vmem:[#allocation6 + $0x120] sm:$0xff]
        %v3190 = vld [vmem:[#allocation6 + $0x128] sm:$0xff]
        %v3191 = vld [vmem:[#allocation6 + $0x130] sm:$0xff]
        %v3192 = vld [vmem:[#allocation6 + $0x138] sm:$0xff]
        %v3193 = vld [vmem:[#allocation6 + $0x140] sm:$0xff]
        %v3194 = vld [vmem:[#allocation6 + $0x148] sm:$0xff]
        %v3195 = vld [vmem:[#allocation6 + $0x150] sm:$0xff]
        %v3196 = vld [vmem:[#allocation6 + $0x158] sm:$0xff]
        %v3197 = vld [vmem:[#allocation6 + $0x160] sm:$0xff]
        %v3198 = vld [vmem:[#allocation6 + $0x168] sm:$0xff]
        %v3199 = vld [vmem:[#allocation6 + $0x170] sm:$0xff]
        %v3200 = vld [vmem:[#allocation6 + $0x178] sm:$0xff]
        %v3201 = vadd.f32 %v3177, %v3178
        %v3202 = vadd.f32 %v3201, %v3179
        %v3203 = vadd.f32 %v3202, %v3180
        %v3204 = vadd.f32 %v3203, %v3181
        %v3205 = vadd.f32 %v3204, %v3182
        %v3206 = vadd.f32 %v3205, %v3183
        %v3207 = vadd.f32 %v3206, %v3184
        %v3208 = vadd.f32 %v3207, %v3185
        %v3209 = vadd.f32 %v3208, %v3186
        %v3210 = vadd.f32 %v3209, %v3187
        %v3211 = vadd.f32 %v3210, %v3188
        %v3212 = vadd.f32 %v3211, %v3189
        %v3213 = vadd.f32 %v3212, %v3190
        %v3214 = vadd.f32 %v3213, %v3191
        %v3215 = vadd.f32 %v3214, %v3192
        %v3216 = vadd.f32 %v3215, %v3193
        %v3217 = vadd.f32 %v3216, %v3194
        %v3218 = vadd.f32 %v3217, %v3195
        %v3219 = vadd.f32 %v3218, %v3196
        %v3220 = vadd.f32 %v3219, %v3197
        %v3221 = vadd.f32 %v3220, %v3198
        %v3222 = vadd.f32 %v3221, %v3199
        %v3223 = vadd.f32 %v3222, %v3200
        %v3224 = vrot.slane %v3223, 4
        %v3225 = vadd.f32 %v3223, %v3224
        %v3226 = vrot.slane %v3225, 2
        %v3227 = vadd.f32 %v3225, %v3226
        %v3228 = vrot.slane %v3227, 1
        %v3229 = vadd.f32 %v3227, %v3228
        %v3230 = vadd.f32 %v3176, %v3229
        %v3231 = vld [vmem:[#allocation6 + $0x180] sm:$0xff]
        %v3232 = vld [vmem:[#allocation6 + $0x188] sm:$0xff]
        %v3233 = vld [vmem:[#allocation6 + $0x190] sm:$0xff]
        %v3234 = vld [vmem:[#allocation6 + $0x198] sm:$0xff]
        %v3235 = vld [vmem:[#allocation6 + $0x1a0] sm:$0xff]
        %v3236 = vld [vmem:[#allocation6 + $0x1a8] sm:$0xff]
        %v3237 = vld [vmem:[#allocation6 + $0x1b0] sm:$0xff]
        %v3238 = vld [vmem:[#allocation6 + $0x1b8] sm:$0xff]
        %v3239 = vld [vmem:[#allocation6 + $0x1c0] sm:$0xff]
        %v3240 = vld [vmem:[#allocation6 + $0x1c8] sm:$0xff]
        %v3241 = vld [vmem:[#allocation6 + $0x1d0] sm:$0xff]
        %v3242 = vld [vmem:[#allocation6 + $0x1d8] sm:$0xff]
        %v3243 = vld [vmem:[#allocation6 + $0x1e0] sm:$0xff]
        %v3244 = vld [vmem:[#allocation6 + $0x1e8] sm:$0xff]
        %v3245 = vld [vmem:[#allocation6 + $0x1f0] sm:$0xff]
        %v3246 = vld [vmem:[#allocation6 + $0x1f8] sm:$0xff]
        %v3247 = vld [vmem:[#allocation6 + $0x200] sm:$0xff]
        %v3248 = vld [vmem:[#allocation6 + $0x208] sm:$0xff]
        %v3249 = vld [vmem:[#allocation6 + $0x210] sm:$0xff]
        %v3250 = vld [vmem:[#allocation6 + $0x218] sm:$0xff]
        %v3251 = vld [vmem:[#allocation6 + $0x220] sm:$0xff]
        %v3252 = vld [vmem:[#allocation6 + $0x228] sm:$0xff]
        %v3253 = vld [vmem:[#allocation6 + $0x230] sm:$0xff]
        %v3254 = vld [vmem:[#allocation6 + $0x238] sm:$0xff]
        %v3255 = vadd.f32 %v3231, %v3232
        %v3256 = vadd.f32 %v3255, %v3233
        %v3257 = vadd.f32 %v3256, %v3234
        %v3258 = vadd.f32 %v3257, %v3235
        %v3259 = vadd.f32 %v3258, %v3236
        %v3260 = vadd.f32 %v3259, %v3237
        %v3261 = vadd.f32 %v3260, %v3238
        %v3262 = vadd.f32 %v3261, %v3239
        %v3263 = vadd.f32 %v3262, %v3240
        %v3264 = vadd.f32 %v3263, %v3241
        %v3265 = vadd.f32 %v3264, %v3242
        %v3266 = vadd.f32 %v3265, %v3243
        %v3267 = vadd.f32 %v3266, %v3244
        %v3268 = vadd.f32 %v3267, %v3245
        %v3269 = vadd.f32 %v3268, %v3246
        %v3270 = vadd.f32 %v3269, %v3247
        %v3271 = vadd.f32 %v3270, %v3248
        %v3272 = vadd.f32 %v3271, %v3249
        %v3273 = vadd.f32 %v3272, %v3250
        %v3274 = vadd.f32 %v3273, %v3251
        %v3275 = vadd.f32 %v3274, %v3252
        %v3276 = vadd.f32 %v3275, %v3253
        %v3277 = vadd.f32 %v3276, %v3254
        %v3278 = vrot.slane %v3277, 4
        %v3279 = vadd.f32 %v3277, %v3278
        %v3280 = vrot.slane %v3279, 2
        %v3281 = vadd.f32 %v3279, %v3280
        %v3282 = vrot.slane %v3281, 1
        %v3283 = vadd.f32 %v3281, %v3282
        %v3284 = vadd.f32 %v3230, %v3283
        %v3285 = vmul.f32 %v3284, 0.0020661156
        %v3286 = vld [vmem:[%s5] sm:$0xff]
        %v3287 = vld [vmem:[%s5 + $0x8] sm:$0xff]
        %v3288 = vld [vmem:[%s5 + $0x10] sm:$0xff]
        %v3289 = vld [vmem:[%s5 + $0x18] sm:$0xff]
        %v3290 = vld [vmem:[%s5 + $0x20] sm:$0xff]
        %v3291 = vld [vmem:[%s5 + $0x28] sm:$0xff]
        %v3292 = vld [vmem:[%s5 + $0x30] sm:$0xff]
        %v3293 = vld [vmem:[%s5 + $0x38] sm:$0xff]
        %v3294 = vld [vmem:[%s5 + $0x40] sm:$0xff]
        %v3295 = vld [vmem:[%s5 + $0x48] sm:$0xff]
        %v3296 = vld [vmem:[%s5 + $0x50] sm:$0xff]
        %v3297 = vld [vmem:[%s5 + $0x58] sm:$0xff]
        %v3298 = vld [vmem:[%s5 + $0x60] sm:$0xff]
        %v3299 = vld [vmem:[%s5 + $0x68] sm:$0xff]
        %v3300 = vld [vmem:[%s5 + $0x70] sm:$0xff]
        %v3301 = vld [vmem:[%s5 + $0x78] sm:$0xff]
        %3302 = vmatpush.msra.mxu0 %v3301
        %3303 = vmatpush.msra.mxu0 %v3300
        %3304 = vmatpush.msra.mxu0 %v3299
        %3305 = vmatpush.msra.mxu0 %v3298
        %3306 = vmatpush.msra.mxu0 %v3297
        %3307 = vmatpush.msra.mxu0 %v3296
        %3308 = vmatpush.msra.mxu0 %v3295
        %3309 = vmatpush.msra.mxu0 %v3294
        %3310 = vmatpush.msra.mxu0 %v3293
        %3311 = vmatpush.msra.mxu0 %v3292
        %3312 = vmatpush.msra.mxu0 %v3291
        %3313 = vmatpush.msra.mxu0 %v3290
        %3314 = vmatpush.msra.mxu0 %v3289
        %3315 = vmatpush.msra.mxu0 %v3288
        %3316 = vmatpush.msra.mxu0 %v3287
        %3317 = vmatpush.msra.mxu0 %v3286
        %3318 = vmatmul.f32.gmra.mxu0 %v3285
        %v3319 = vpop.f32.mrf.mxu0
        %v3320 = vadd.f32 0.0, %v3319
        %3321 = vdwg.mxu0
        %v3322 = vld [vmem:[%s6] sm:$0x1]
        %v3323 = vadd.f32 %v3320, %v3322
        %3324 = vst [vmem:[%s324] sm:$0x1] %v3323
        %s3325 = sand.u32 %s225, 1
        %s3326 = scalar_lea.sflag [#allocation9], %s3325
        %s3327 = sand.u32 %s225, 1
        %s3328 = scalar_lea.vmem [#allocation8], %s3327
        // Predicated region
        $region85: #{depthwise_separable_conv_forward.1} parent=55 // pred_check
          %p3329 = pneg %p235
        $region86: #{depthwise_separable_conv_forward.1} parent=55 // pred_check_branch
          %3331 = sbr.rel (%p3329) target = $region88
        $region87: #{depthwise_separable_conv_forward.1} parent=55 // pred_region
          %3333 = vsyncadd %s3326, 0
          %s3334 = scalar_lea.hbm %s9, %s23
          %s3336 = sshll.u32 %s3328, 4
          %s3337 = int_to_ptr.vmem [resolvable:$true] %s3336
          %s3338 = sshll.u32 %s3334, 4
          %s3339 = int_to_ptr.hbm [resolvable:$true] %s3338
          %3341 = dma.vmem_to_hbm [thread:$0]  %s3337, 16, %s3339, %s3326
        $region88: #{depthwise_separable_conv_forward.1} parent=55 // pred_fallthru
          _
      $region56: #{depthwise_separable_conv_forward.1} parent=5 // pred_fallthru
        _
      %p3342 = scmp.le.s32.totalorder 2, %s18
      // Predicated region
      $region89: #{depthwise_separable_conv_forward.1} parent=5 // pred_check
        %p3343 = pneg %p3342
      $region90: #{depthwise_separable_conv_forward.1} parent=5 // pred_check_branch
        %3345 = sbr.rel (%p3343) target = $region92
      $region91: #{depthwise_separable_conv_forward.1} parent=5 // pred_region
        %s3346 = ssub.s32 %s18, 2
        // Predicated region
        $region93: #{depthwise_separable_conv_forward.1} parent=91 // pred_check
          %p3347 = pneg %p241
        $region94: #{depthwise_separable_conv_forward.1} parent=91 // pred_check_branch
          %3349 = sbr.rel (%p3347) target = $region96
        $region95: #{depthwise_separable_conv_forward.1} parent=91 // pred_region
          %s3350 = sand.u32 %s226, 1
          %s3351 = scalar_lea.sflag [#allocation9], %s3350
          %s3352 = sand.u32 %s226, 1
          %s3353 = scalar_lea.vmem [#allocation8], %s3352
          %3355 = dma.done %s3351, 16
        $region96: #{depthwise_separable_conv_forward.1} parent=91 // pred_fallthru
          _
      $region92: #{depthwise_separable_conv_forward.1} parent=5 // pred_fallthru
        _
    $region6: #{depthwise_separable_conv_forward.1} parent=1 // loop_footer
      %s22 = sadd.s32 1, %s18
    $region7: #{depthwise_separable_conv_forward.1} parent=1 // loop_footer_branch
      %17 = sbr.rel target = $region3
    $region8: #{depthwise_separable_conv_forward.1} parent=1 // loop_exit
      _
    %3356 = vsyncpa [#allocation9], 1
    %s3357 = scalar_lea.sflag [#allocation9], 1
    %3358 = vsyncpa %s3357, 1

</llo_original>
